<compile_context>
chip_gen: v5e
topology: v5e:2x2
jax: 0.10.0
libtpu: 0.0.40
codegen_flags: <defaults>
</compile_context>

<pallas_src>
import functools

import jax
import jax.numpy as jnp
from jax.experimental import pallas as pl
from jax.experimental.pallas import tpu as pltpu

LEAKY_SLOPE = 0.2
BN_EPS = 0.8                       # nn.BatchNorm2d(out_filters, 0.8) -> eps = 0.8
FILTERS = (16, 32, 64, 128)


# ----------------------------------------------------------------------------
# Fused Pallas kernel: 4 conv blocks + flatten + Linear, one batch item / step
# ----------------------------------------------------------------------------
def _fused_kernel(x_ref, w1, c1, w2, c2, w3, c3, w4, c4, wlin_ref, o_ref,
                  a1, a2, a3, *, ds):
    # Each activation scratch holds the *padded*, width-parity-packed input of
    # the next block; its zero border is (re)established every grid step.
    a1[...] = jnp.zeros(a1.shape, a1.dtype)
    a2[...] = jnp.zeros(a2.shape, a2.dtype)
    a3[...] = jnp.zeros(a3.shape, a3.dtype)

    def run_block(read, wf_ref, coef_ref, apply_bn, ho, wo, emit):
        """3x3 / stride-2 / pad-1 conv + bias + LeakyReLU (+ folded eval BN)."""
        wf = wf_ref[...]                             # (12*C_in, C_out) bf16
        bias = coef_ref[0:1, :]
        if apply_bn:
            scale = coef_ref[1:2, :]
            shift = coef_ref[2:3, :]
        for oh in range(ho):                         # static unroll (<= img/2)
            pieces = []
            for kh in range(3):
                r = 2 * oh + kh
                pieces.append(read(r, 0, wo))        # taps kw=0,1 (parity lanes)
                pieces.append(read(r, 1, wo))        # tap  kw=2 (+ lanes hit 0-weights)
            patch = jnp.concatenate(pieces, axis=-1)           # (wo, 12*C_in)
            y = jnp.dot(patch, wf, preferred_element_type=jnp.float32)
            y = y + bias
            y = jnp.maximum(y, LEAKY_SLOPE * y)      # LeakyReLU(0.2); Dropout2d=id (eval)
            if apply_bn:
                y = y * scale + shift                # folded eval-mode BatchNorm
            emit(oh, y)

    def packer(dst, wo):
        """Write one conv-output row into the next block's padded parity-packed
        layout: output col w' -> padded col w'+1 -> group (w'+1)//2, half (w'+1)%2."""
        c_out = dst.shape[2] // 2
        half = wo // 2
        if wo > 2:                                   # 0/1 selection matrices (hoisted)
            ri = jax.lax.broadcasted_iota(jnp.int32, (half, wo), 0)
            ci = jax.lax.broadcasted_iota(jnp.int32, (half, wo), 1)
            sel_e = (ci == 2 * ri).astype(jnp.bfloat16)
            sel_o = (ci == 2 * ri + 1).astype(jnp.bfloat16)

        def emit(oh, y):
            yb = y.astype(jnp.bfloat16)
            if wo == 2:                              # trivial even/odd split
                ye, yo = yb[0:1, :], yb[1:2, :]
            else:                                    # exact 0/1 selection on MXU
                ye = jnp.dot(sel_e, yb,
                             preferred_element_type=jnp.float32).astype(jnp.bfloat16)
                yo = jnp.dot(sel_o, yb,
                             preferred_element_type=jnp.float32).astype(jnp.bfloat16)
            dst[oh + 1, 0:half, c_out:2 * c_out] = ye          # even output cols
            dst[oh + 1, 1:half + 1, 0:c_out] = yo              # odd output cols
        return emit

    h1 = (x_ref.shape[1] - 2) // 2                   # img // 2
    run_block(lambda r, g, n: x_ref[0, r, g:g + n, :], w1, c1, False,
              h1, h1, packer(a1, h1))
    h2 = h1 // 2
    run_block(lambda r, g, n: a1[r, g:g + n, :], w2, c2, True,
              h2, h2, packer(a2, h2))
    h3 = h2 // 2
    run_block(lambda r, g, n: a2[r, g:g + n, :], w3, c3, True,
              h3, h3, packer(a3, h3))

    # Last conv block fused with the NCHW flatten + Linear.
    acc = [jnp.zeros((1, 1), jnp.float32)]

    def emit_last(oh, y):
        if ds == 1:
            acc[0] = acc[0] + jnp.dot(y, wlin_ref[...],
                                      preferred_element_type=jnp.float32)
        else:
            # TODO(synk): ds > 1 keeps a per-row XLU reduction for the Linear.
            wr = wlin_ref[oh * ds:(oh + 1) * ds, :]
            p = jnp.sum(y * wr, axis=1, keepdims=True)
            acc[0] = acc[0] + jnp.sum(p, axis=0, keepdims=True)

    run_block(lambda r, g, n: a3[r, g:g + n, :], w4, c4, True,
              ds, ds, emit_last)
    o_ref[0] = acc[0]


# ----------------------------------------------------------------------------
# One-time host-side parameter folding (hoisted out of the jitted forward)
# ----------------------------------------------------------------------------
def fold_conv_weight(w, dtype=jnp.bfloat16):
    """(C_out, C_in, 3, 3) torch layout -> (12*C_in, C_out) im2col weight.

    Row layout per kh: [kw=0 (C_in), kw=1 (C_in), kw=2 (C_in), zeros (C_in)],
    matching the concat of [A_kh, B_kh] slices of the parity-packed activation
    (the zero rows absorb B's odd-parity lanes -> no masked lane extracts).
    """
    co, ci = w.shape[0], w.shape[1]
    parts = []
    for kh in range(3):
        parts += [w[:, :, kh, 0].T, w[:, :, kh, 1].T,
                  w[:, :, kh, 2].T, jnp.zeros((ci, co), w.dtype)]
    return jnp.concatenate(parts, axis=0).astype(dtype)


def fold_bias_bn(blk, apply_bn):
    """-> (3, C_out) f32 tile: [conv bias, BN scale, BN shift]."""
    bias = blk["b"]
    if apply_bn:
        scale = blk["gamma"] * jax.lax.rsqrt(blk["var"] + BN_EPS)
        shift = blk["beta"] - blk["mean"] * scale
    else:
        scale = jnp.ones_like(bias)
        shift = jnp.zeros_like(bias)
    return jnp.stack([bias, scale, shift]).astype(jnp.float32)


def prepare_params(params, img_size):
    ds = img_size // 2 ** 4
    blocks = params["blocks"]
    wf = tuple(fold_conv_weight(b["w"]) for b in blocks)
    coef = tuple(fold_bias_bn(b, apply_bn=(i > 0)) for i, b in enumerate(blocks))
    c_last = blocks[-1]["w"].shape[0]
    if ds == 1:
        wlin = params["lin_w"].reshape(c_last, 1).astype(jnp.float32)
    else:
        # Fold the PyTorch NCHW flatten into the Linear weight.
        wlin = (params["lin_w"].reshape(c_last, ds, ds)
                .transpose(1, 2, 0).reshape(ds * ds, c_last).astype(jnp.float32))
    return {"wf": wf, "coef": coef, "wlin": wlin,
            "lin_b": params["lin_b"].astype(jnp.float32)}


# ----------------------------------------------------------------------------
# Forward passes
# ----------------------------------------------------------------------------
@jax.jit
def discriminator_forward(img_nchw, prepped):
    n, c, h, w = img_nchw.shape
    assert h == w and h % 16 == 0, "img_size must be a square multiple of 16"
    ds = h // 2 ** 4
    # NHWC bf16, zero-pad H/W by 1, fold width parity into lanes (free reshape).
    x = jnp.transpose(img_nchw, (0, 2, 3, 1)).astype(jnp.bfloat16)
    xp = jnp.pad(x, ((0, 0), (1, 1), (1, 1), (0, 0)))
    xr = xp.reshape(n, h + 2, (w + 2) // 2, 2 * c)

    wf, coef, wlin = prepped["wf"], prepped["coef"], prepped["wlin"]
    c_outs = [wi.shape[1] for wi in wf]
    h1 = h // 2
    act_shape = lambda ho, co: (ho + 2, ho // 2 + 1, 2 * co)
    full = lambda arr: pl.BlockSpec(arr.shape, lambda b: (0,) * arr.ndim)

    in_specs = [pl.BlockSpec((1, h + 2, (w + 2) // 2, 2 * c),
                             lambda b: (b, 0, 0, 0))]
    for i in range(4):
        in_specs += [full(wf[i]), full(coef[i])]
    in_specs.append(full(wlin))

    v = pl.pallas_call(
        functools.partial(_fused_kernel, ds=ds),
        out_shape=jax.ShapeDtypeStruct((n, 1, 1), jnp.float32),
        grid=(n,),
        in_specs=in_specs,
        out_specs=pl.BlockSpec((1, 1, 1), lambda b: (b, 0, 0)),
        scratch_shapes=[
            pltpu.VMEM(act_shape(h1, c_outs[0]), jnp.bfloat16),
            pltpu.VMEM(act_shape(h1 // 2, c_outs[1]), jnp.bfloat16),
            pltpu.VMEM(act_shape(h1 // 4, c_outs[2]), jnp.bfloat16),
        ],
        compiler_params=pltpu.CompilerParams(
            dimension_semantics=("parallel",)),
    )(xr, wf[0], coef[0], wf[1], coef[1], wf[2], coef[2], wf[3], coef[3], wlin)
    return v.reshape(n, 1) + prepped["lin_b"]


def discriminator_reference(img_nchw, params):
    """Pure-XLA reference with the same bf16-in / f32-accumulate policy."""
    x = img_nchw
    for i, blk in enumerate(params["blocks"]):
        x = jax.lax.conv_general_dilated(
            x.astype(jnp.bfloat16), blk["w"].astype(jnp.bfloat16),
            (2, 2), ((1, 1), (1, 1)),
            dimension_numbers=("NCHW", "OIHW", "NCHW"),
            preferred_element_type=jnp.float32)
        x = x + blk["b"][None, :, None, None]
        x = jnp.maximum(x, LEAKY_SLOPE * x)
        if i > 0:
            scale = blk["gamma"] / jnp.sqrt(blk["var"] + BN_EPS)
            x = ((x - blk["mean"][None, :, None, None])
                 * scale[None, :, None, None]
                 + blk["beta"][None, :, None, None])
    flat = x.reshape(x.shape[0], -1)
    return flat @ params["lin_w"].T + params["lin_b"]


# ----------------------------------------------------------------------------
# Deterministic synthetic parameters
# ----------------------------------------------------------------------------
def init_params(key, channels, img_size):
    filt = [channels, *FILTERS]
    blocks = []
    for i in range(4):
        key, k1, k2, k3, k4, k5, k6 = jax.random.split(key, 7)
        cin, cout = filt[i], filt[i + 1]
        blocks.append({
            "w": jax.random.normal(k1, (cout, cin, 3, 3), jnp.float32) * 0.1,
            "b": jax.random.normal(k2, (cout,), jnp.float32) * 0.1,
            "gamma": 1.0 + 0.1 * jax.random.normal(k3, (cout,), jnp.float32),
            "beta": 0.1 * jax.random.normal(k4, (cout,), jnp.float32),
            "mean": 0.1 * jax.random.normal(k5, (cout,), jnp.float32),
            "var": 1.0 + 0.1 * jax.random.uniform(k6, (cout,), jnp.float32),
        })
    ds = img_size // 2 ** 4
    key, k1, k2 = jax.random.split(key, 3)
    lin_w = jax.random.normal(k1, (1, 128 * ds * ds), jnp.float32) * 0.05
    lin_b = jax.random.normal(k2, (1,), jnp.float32) * 0.05
    return {"blocks": blocks, "lin_w": lin_w, "lin_b": lin_b}


# ----------------------------------------------------------------------------
if __name__ == "__main__":
    batch, channels, img_size = 2, 4, 16

    key = jax.random.PRNGKey(0)
    k_img, k_par = jax.random.split(key)
    img = jax.random.normal(k_img, (batch, channels, img_size, img_size),
                            jnp.float32)
    params = init_params(k_par, channels, img_size)
    prepped = prepare_params(params, img_size)       # one-time weight folding

    validity = jax.block_until_ready(discriminator_forward(img, prepped))
    ref = jax.block_until_ready(discriminator_reference(img, params))

    assert validity.shape == (batch, 1), validity.shape
    assert jnp.allclose(validity, ref, atol=1e-2, rtol=1e-2), (validity, ref)
    print("KERNEL_OK")
</pallas_src>

<mosaic_0001>
module attributes {stable_mosaic.version = 11 : i64} {
  func.func @_fused_kernel(%arg0: i32, %arg1: memref<1x18x9x8xbf16, #tpu.memory_space<vmem>>, %arg2: memref<48x16xbf16, #tpu.memory_space<vmem>>, %arg3: memref<3x16xf32, #tpu.memory_space<vmem>>, %arg4: memref<192x32xbf16, #tpu.memory_space<vmem>>, %arg5: memref<3x32xf32, #tpu.memory_space<vmem>>, %arg6: memref<384x64xbf16, #tpu.memory_space<vmem>>, %arg7: memref<3x64xf32, #tpu.memory_space<vmem>>, %arg8: memref<768x128xbf16, #tpu.memory_space<vmem>>, %arg9: memref<3x128xf32, #tpu.memory_space<vmem>>, %arg10: memref<128x1xf32, #tpu.memory_space<vmem>>, %arg11: memref<1x1x1xf32, #tpu.memory_space<vmem>>, %arg12: memref<10x5x32xbf16, #tpu.memory_space<vmem>>, %arg13: memref<6x3x64xbf16, #tpu.memory_space<vmem>>, %arg14: memref<4x2x128xbf16, #tpu.memory_space<vmem>>) attributes {dimension_semantics = [#tpu.dimension_semantics<parallel>], iteration_bounds = array<i64: 2>, scalar_prefetch = 0 : i64, scratch_operands = 3 : i64, tpu.core_type = #tpu.core_type<tc>, window_params = [{transform_indices = @transform_0, window_bounds = array<i64: 1, 18, 9, 8>}, {pipeline_mode = #tpu.pipeline_mode<synchronous>, transform_indices = @transform_1, window_bounds = array<i64: 48, 16>}, {pipeline_mode = #tpu.pipeline_mode<synchronous>, transform_indices = @transform_2, window_bounds = array<i64: 3, 16>}, {pipeline_mode = #tpu.pipeline_mode<synchronous>, transform_indices = @transform_3, window_bounds = array<i64: 192, 32>}, {pipeline_mode = #tpu.pipeline_mode<synchronous>, transform_indices = @transform_4, window_bounds = array<i64: 3, 32>}, {pipeline_mode = #tpu.pipeline_mode<synchronous>, transform_indices = @transform_5, window_bounds = array<i64: 384, 64>}, {pipeline_mode = #tpu.pipeline_mode<synchronous>, transform_indices = @transform_6, window_bounds = array<i64: 3, 64>}, {pipeline_mode = #tpu.pipeline_mode<synchronous>, transform_indices = @transform_7, window_bounds = array<i64: 768, 128>}, {pipeline_mode = #tpu.pipeline_mode<synchronous>, transform_indices = @transform_8, window_bounds = array<i64: 3, 128>}, {pipeline_mode = #tpu.pipeline_mode<synchronous>, transform_indices = @transform_9, window_bounds = array<i64: 128, 1>}, {transform_indices = @transform_10, window_bounds = array<i64: 1, 1, 1>}]} {
    %cst = arith.constant 0.000000e+00 : bf16
    %0 = vector.broadcast %cst : bf16 to vector<10x5x32xbf16>
    %c0 = arith.constant 0 : index
    %c0_0 = arith.constant 0 : index
    %c0_1 = arith.constant 0 : index
    %1 = vector.load %arg12[%c0, %c0_0, %c0_1] : memref<10x5x32xbf16, #tpu.memory_space<vmem>>, vector<10x5x32xbf16>
    tpu.vector_store %arg12[%c0, %c0_0, %c0_1], %0 {strides = array<i32>} : memref<10x5x32xbf16, #tpu.memory_space<vmem>>, vector<10x5x32xbf16>,
    %cst_2 = arith.constant 0.000000e+00 : bf16
    %2 = vector.broadcast %cst_2 : bf16 to vector<6x3x64xbf16>
    %c0_3 = arith.constant 0 : index
    %c0_4 = arith.constant 0 : index
    %c0_5 = arith.constant 0 : index
    %3 = vector.load %arg13[%c0_3, %c0_4, %c0_5] : memref<6x3x64xbf16, #tpu.memory_space<vmem>>, vector<6x3x64xbf16>
    tpu.vector_store %arg13[%c0_3, %c0_4, %c0_5], %2 {strides = array<i32>} : memref<6x3x64xbf16, #tpu.memory_space<vmem>>, vector<6x3x64xbf16>,
    %cst_6 = arith.constant 0.000000e+00 : bf16
    %4 = vector.broadcast %cst_6 : bf16 to vector<4x2x128xbf16>
    %c0_7 = arith.constant 0 : index
    %c0_8 = arith.constant 0 : index
    %c0_9 = arith.constant 0 : index
    %5 = vector.load %arg14[%c0_7, %c0_8, %c0_9] : memref<4x2x128xbf16, #tpu.memory_space<vmem>>, vector<4x2x128xbf16>
    tpu.vector_store %arg14[%c0_7, %c0_8, %c0_9], %4 {strides = array<i32>} : memref<4x2x128xbf16, #tpu.memory_space<vmem>>, vector<4x2x128xbf16>,
    %6 = tpu.iota {dimensions = array<i32: 0>} : vector<4x8xi32>
    %7 = tpu.iota {dimensions = array<i32: 1>} : vector<4x8xi32>
    %c2_i32 = arith.constant 2 : i32
    %8 = vector.broadcast %c2_i32 : i32 to vector<4x8xi32>
    %9 = arith.muli %8, %6 : vector<4x8xi32>
    %10 = arith.cmpi eq, %7, %9 : vector<4x8xi32>
    %11 = arith.extui %10 : vector<4x8xi1> to vector<4x8xi32>
    %12 = arith.sitofp %11 : vector<4x8xi32> to vector<4x8xf32>
    %13 = arith.truncf %12 : vector<4x8xf32> to vector<4x8xbf16>
    %c2_i32_10 = arith.constant 2 : i32
    %14 = vector.broadcast %c2_i32_10 : i32 to vector<4x8xi32>
    %15 = arith.muli %14, %6 : vector<4x8xi32>
    %c1_i32 = arith.constant 1 : i32
    %16 = vector.broadcast %c1_i32 : i32 to vector<4x8xi32>
    %17 = arith.addi %15, %16 : vector<4x8xi32>
    %18 = arith.cmpi eq, %7, %17 : vector<4x8xi32>
    %19 = arith.extui %18 : vector<4x8xi1> to vector<4x8xi32>
    %20 = arith.sitofp %19 : vector<4x8xi32> to vector<4x8xf32>
    %21 = arith.truncf %20 : vector<4x8xf32> to vector<4x8xbf16>
    %c0_11 = arith.constant 0 : index
    %c0_12 = arith.constant 0 : index
    %22 = vector.load %arg2[%c0_11, %c0_12] : memref<48x16xbf16, #tpu.memory_space<vmem>>, vector<48x16xbf16>
    %c0_13 = arith.constant 0 : index
    %c0_14 = arith.constant 0 : index
    %23 = vector.load %arg3[%c0_13, %c0_14] : memref<3x16xf32, #tpu.memory_space<vmem>>, vector<1x16xf32>
    %c0_15 = arith.constant 0 : index
    %c0_16 = arith.constant 0 : index
    %c0_17 = arith.constant 0 : index
    %c0_18 = arith.constant 0 : index
    %24 = vector.load %arg1[%c0_15, %c0_16, %c0_17, %c0_18] : memref<1x18x9x8xbf16, #tpu.memory_space<vmem>>, vector<1x1x8x8xbf16>
    %25 = vector.shape_cast %24 : vector<1x1x8x8xbf16> to vector<8x8xbf16>
    %c0_19 = arith.constant 0 : index
    %c0_20 = arith.constant 0 : index
    %c1 = arith.constant 1 : index
    %c0_21 = arith.constant 0 : index
    %26 = vector.load %arg1[%c0_19, %c0_20, %c1, %c0_21] : memref<1x18x9x8xbf16, #tpu.memory_space<vmem>>, vector<1x1x8x8xbf16>
    %27 = vector.shape_cast %26 : vector<1x1x8x8xbf16> to vector<8x8xbf16>
    %c0_22 = arith.constant 0 : index
    %c1_23 = arith.constant 1 : index
    %c0_24 = arith.constant 0 : index
    %c0_25 = arith.constant 0 : index
    %28 = vector.load %arg1[%c0_22, %c1_23, %c0_24, %c0_25] : memref<1x18x9x8xbf16, #tpu.memory_space<vmem>>, vector<1x1x8x8xbf16>
    %29 = vector.shape_cast %28 : vector<1x1x8x8xbf16> to vector<8x8xbf16>
    %c0_26 = arith.constant 0 : index
    %c1_27 = arith.constant 1 : index
    %c1_28 = arith.constant 1 : index
    %c0_29 = arith.constant 0 : index
    %30 = vector.load %arg1[%c0_26, %c1_27, %c1_28, %c0_29] : memref<1x18x9x8xbf16, #tpu.memory_space<vmem>>, vector<1x1x8x8xbf16>
    %31 = vector.shape_cast %30 : vector<1x1x8x8xbf16> to vector<8x8xbf16>
    %c0_30 = arith.constant 0 : index
    %c2 = arith.constant 2 : index
    %c0_31 = arith.constant 0 : index
    %c0_32 = arith.constant 0 : index
    %32 = vector.load %arg1[%c0_30, %c2, %c0_31, %c0_32] : memref<1x18x9x8xbf16, #tpu.memory_space<vmem>>, vector<1x1x8x8xbf16>
    %33 = vector.shape_cast %32 : vector<1x1x8x8xbf16> to vector<8x8xbf16>
    %c0_33 = arith.constant 0 : index
    %c2_34 = arith.constant 2 : index
    %c1_35 = arith.constant 1 : index
    %c0_36 = arith.constant 0 : index
    %34 = vector.load %arg1[%c0_33, %c2_34, %c1_35, %c0_36] : memref<1x18x9x8xbf16, #tpu.memory_space<vmem>>, vector<1x1x8x8xbf16>
    %35 = vector.shape_cast %34 : vector<1x1x8x8xbf16> to vector<8x8xbf16>
    %36 = tpu.concatenate %25, %27, %29, %31, %33, %35 in 1 : vector<8x8xbf16>, vector<8x8xbf16>, vector<8x8xbf16>, vector<8x8xbf16>, vector<8x8xbf16>, vector<8x8xbf16> -> vector<8x48xbf16>
    %cst_37 = arith.constant dense<0.000000e+00> : vector<8x16xf32>
    %37 = tpu.matmul %36, %22, %cst_37 {dimension_numbers = #tpu.dot_dimension_numbers<[1], [0], [0], [1], [0, 0, 1, 1], [], []>} : vector<8x48xbf16>, vector<48x16xbf16>, vector<8x16xf32> -> vector<8x16xf32>
    %38 = vector.broadcast %23 : vector<1x16xf32> to vector<8x16xf32>
    %39 = arith.addf %37, %38 : vector<8x16xf32>
    %cst_38 = arith.constant 2.000000e-01 : f32
    %40 = vector.broadcast %cst_38 : f32 to vector<8x16xf32>
    %41 = arith.mulf %40, %39 : vector<8x16xf32>
    %42 = arith.maximumf %39, %41 : vector<8x16xf32>
    %43 = arith.truncf %42 : vector<8x16xf32> to vector<8x16xbf16>
    %cst_39 = arith.constant dense<0.000000e+00> : vector<4x16xf32>
    %44 = tpu.matmul %13, %43, %cst_39 {dimension_numbers = #tpu.dot_dimension_numbers<[1], [0], [0], [1], [0, 0, 1, 1], [], []>} : vector<4x8xbf16>, vector<8x16xbf16>, vector<4x16xf32> -> vector<4x16xf32>
    %45 = arith.truncf %44 : vector<4x16xf32> to vector<4x16xbf16>
    %cst_40 = arith.constant dense<0.000000e+00> : vector<4x16xf32>
    %46 = tpu.matmul %21, %43, %cst_40 {dimension_numbers = #tpu.dot_dimension_numbers<[1], [0], [0], [1], [0, 0, 1, 1], [], []>} : vector<4x8xbf16>, vector<8x16xbf16>, vector<4x16xf32> -> vector<4x16xf32>
    %47 = arith.truncf %46 : vector<4x16xf32> to vector<4x16xbf16>
    %c1_41 = arith.constant 1 : index
    %c0_42 = arith.constant 0 : index
    %c16 = arith.constant 16 : index
    %48 = vector.load %arg12[%c1_41, %c0_42, %c16] : memref<10x5x32xbf16, #tpu.memory_space<vmem>>, vector<1x4x16xbf16>
    %49 = vector.shape_cast %48 : vector<1x4x16xbf16> to vector<4x16xbf16>
    %50 = vector.shape_cast %45 : vector<4x16xbf16> to vector<1x4x16xbf16>
    tpu.vector_store %arg12[%c1_41, %c0_42, %c16], %50 {strides = array<i32>} : memref<10x5x32xbf16, #tpu.memory_space<vmem>>, vector<1x4x16xbf16>,
    %c1_43 = arith.constant 1 : index
    %c1_44 = arith.constant 1 : index
    %c0_45 = arith.constant 0 : index
    %51 = vector.load %arg12[%c1_43, %c1_44, %c0_45] : memref<10x5x32xbf16, #tpu.memory_space<vmem>>, vector<1x4x16xbf16>
    %52 = vector.shape_cast %51 : vector<1x4x16xbf16> to vector<4x16xbf16>
    %53 = vector.shape_cast %47 : vector<4x16xbf16> to vector<1x4x16xbf16>
    tpu.vector_store %arg12[%c1_43, %c1_44, %c0_45], %53 {strides = array<i32>} : memref<10x5x32xbf16, #tpu.memory_space<vmem>>, vector<1x4x16xbf16>,
    %c0_46 = arith.constant 0 : index
    %c2_47 = arith.constant 2 : index
    %c0_48 = arith.constant 0 : index
    %c0_49 = arith.constant 0 : index
    %54 = vector.load %arg1[%c0_46, %c2_47, %c0_48, %c0_49] : memref<1x18x9x8xbf16, #tpu.memory_space<vmem>>, vector<1x1x8x8xbf16>
    %55 = vector.shape_cast %54 : vector<1x1x8x8xbf16> to vector<8x8xbf16>
    %c0_50 = arith.constant 0 : index
    %c2_51 = arith.constant 2 : index
    %c1_52 = arith.constant 1 : index
    %c0_53 = arith.constant 0 : index
    %56 = vector.load %arg1[%c0_50, %c2_51, %c1_52, %c0_53] : memref<1x18x9x8xbf16, #tpu.memory_space<vmem>>, vector<1x1x8x8xbf16>
    %57 = vector.shape_cast %56 : vector<1x1x8x8xbf16> to vector<8x8xbf16>
    %c0_54 = arith.constant 0 : index
    %c3 = arith.constant 3 : index
    %c0_55 = arith.constant 0 : index
    %c0_56 = arith.constant 0 : index
    %58 = vector.load %arg1[%c0_54, %c3, %c0_55, %c0_56] : memref<1x18x9x8xbf16, #tpu.memory_space<vmem>>, vector<1x1x8x8xbf16>
    %59 = vector.shape_cast %58 : vector<1x1x8x8xbf16> to vector<8x8xbf16>
    %c0_57 = arith.constant 0 : index
    %c3_58 = arith.constant 3 : index
    %c1_59 = arith.constant 1 : index
    %c0_60 = arith.constant 0 : index
    %60 = vector.load %arg1[%c0_57, %c3_58, %c1_59, %c0_60] : memref<1x18x9x8xbf16, #tpu.memory_space<vmem>>, vector<1x1x8x8xbf16>
    %61 = vector.shape_cast %60 : vector<1x1x8x8xbf16> to vector<8x8xbf16>
    %c0_61 = arith.constant 0 : index
    %c4 = arith.constant 4 : index
    %c0_62 = arith.constant 0 : index
    %c0_63 = arith.constant 0 : index
    %62 = vector.load %arg1[%c0_61, %c4, %c0_62, %c0_63] : memref<1x18x9x8xbf16, #tpu.memory_space<vmem>>, vector<1x1x8x8xbf16>
    %63 = vector.shape_cast %62 : vector<1x1x8x8xbf16> to vector<8x8xbf16>
    %c0_64 = arith.constant 0 : index
    %c4_65 = arith.constant 4 : index
    %c1_66 = arith.constant 1 : index
    %c0_67 = arith.constant 0 : index
    %64 = vector.load %arg1[%c0_64, %c4_65, %c1_66, %c0_67] : memref<1x18x9x8xbf16, #tpu.memory_space<vmem>>, vector<1x1x8x8xbf16>
    %65 = vector.shape_cast %64 : vector<1x1x8x8xbf16> to vector<8x8xbf16>
    %66 = tpu.concatenate %55, %57, %59, %61, %63, %65 in 1 : vector<8x8xbf16>, vector<8x8xbf16>, vector<8x8xbf16>, vector<8x8xbf16>, vector<8x8xbf16>, vector<8x8xbf16> -> vector<8x48xbf16>
    %cst_68 = arith.constant dense<0.000000e+00> : vector<8x16xf32>
    %67 = tpu.matmul %66, %22, %cst_68 {dimension_numbers = #tpu.dot_dimension_numbers<[1], [0], [0], [1], [0, 0, 1, 1], [], []>} : vector<8x48xbf16>, vector<48x16xbf16>, vector<8x16xf32> -> vector<8x16xf32>
    %68 = vector.broadcast %23 : vector<1x16xf32> to vector<8x16xf32>
    %69 = arith.addf %67, %68 : vector<8x16xf32>
    %cst_69 = arith.constant 2.000000e-01 : f32
    %70 = vector.broadcast %cst_69 : f32 to vector<8x16xf32>
    %71 = arith.mulf %70, %69 : vector<8x16xf32>
    %72 = arith.maximumf %69, %71 : vector<8x16xf32>
    %73 = arith.truncf %72 : vector<8x16xf32> to vector<8x16xbf16>
    %cst_70 = arith.constant dense<0.000000e+00> : vector<4x16xf32>
    %74 = tpu.matmul %13, %73, %cst_70 {dimension_numbers = #tpu.dot_dimension_numbers<[1], [0], [0], [1], [0, 0, 1, 1], [], []>} : vector<4x8xbf16>, vector<8x16xbf16>, vector<4x16xf32> -> vector<4x16xf32>
    %75 = arith.truncf %74 : vector<4x16xf32> to vector<4x16xbf16>
    %cst_71 = arith.constant dense<0.000000e+00> : vector<4x16xf32>
    %76 = tpu.matmul %21, %73, %cst_71 {dimension_numbers = #tpu.dot_dimension_numbers<[1], [0], [0], [1], [0, 0, 1, 1], [], []>} : vector<4x8xbf16>, vector<8x16xbf16>, vector<4x16xf32> -> vector<4x16xf32>
    %77 = arith.truncf %76 : vector<4x16xf32> to vector<4x16xbf16>
    %c2_72 = arith.constant 2 : index
    %c0_73 = arith.constant 0 : index
    %c16_74 = arith.constant 16 : index
    %78 = vector.load %arg12[%c2_72, %c0_73, %c16_74] : memref<10x5x32xbf16, #tpu.memory_space<vmem>>, vector<1x4x16xbf16>
    %79 = vector.shape_cast %78 : vector<1x4x16xbf16> to vector<4x16xbf16>
    %80 = vector.shape_cast %75 : vector<4x16xbf16> to vector<1x4x16xbf16>
    tpu.vector_store %arg12[%c2_72, %c0_73, %c16_74], %80 {strides = array<i32>} : memref<10x5x32xbf16, #tpu.memory_space<vmem>>, vector<1x4x16xbf16>,
    %c2_75 = arith.constant 2 : index
    %c1_76 = arith.constant 1 : index
    %c0_77 = arith.constant 0 : index
    %81 = vector.load %arg12[%c2_75, %c1_76, %c0_77] : memref<10x5x32xbf16, #tpu.memory_space<vmem>>, vector<1x4x16xbf16>
    %82 = vector.shape_cast %81 : vector<1x4x16xbf16> to vector<4x16xbf16>
    %83 = vector.shape_cast %77 : vector<4x16xbf16> to vector<1x4x16xbf16>
    tpu.vector_store %arg12[%c2_75, %c1_76, %c0_77], %83 {strides = array<i32>} : memref<10x5x32xbf16, #tpu.memory_space<vmem>>, vector<1x4x16xbf16>,
    %c0_78 = arith.constant 0 : index
    %c4_79 = arith.constant 4 : index
    %c0_80 = arith.constant 0 : index
    %c0_81 = arith.constant 0 : index
    %84 = vector.load %arg1[%c0_78, %c4_79, %c0_80, %c0_81] : memref<1x18x9x8xbf16, #tpu.memory_space<vmem>>, vector<1x1x8x8xbf16>
    %85 = vector.shape_cast %84 : vector<1x1x8x8xbf16> to vector<8x8xbf16>
    %c0_82 = arith.constant 0 : index
    %c4_83 = arith.constant 4 : index
    %c1_84 = arith.constant 1 : index
    %c0_85 = arith.constant 0 : index
    %86 = vector.load %arg1[%c0_82, %c4_83, %c1_84, %c0_85] : memref<1x18x9x8xbf16, #tpu.memory_space<vmem>>, vector<1x1x8x8xbf16>
    %87 = vector.shape_cast %86 : vector<1x1x8x8xbf16> to vector<8x8xbf16>
    %c0_86 = arith.constant 0 : index
    %c5 = arith.constant 5 : index
    %c0_87 = arith.constant 0 : index
    %c0_88 = arith.constant 0 : index
    %88 = vector.load %arg1[%c0_86, %c5, %c0_87, %c0_88] : memref<1x18x9x8xbf16, #tpu.memory_space<vmem>>, vector<1x1x8x8xbf16>
    %89 = vector.shape_cast %88 : vector<1x1x8x8xbf16> to vector<8x8xbf16>
    %c0_89 = arith.constant 0 : index
    %c5_90 = arith.constant 5 : index
    %c1_91 = arith.constant 1 : index
    %c0_92 = arith.constant 0 : index
    %90 = vector.load %arg1[%c0_89, %c5_90, %c1_91, %c0_92] : memref<1x18x9x8xbf16, #tpu.memory_space<vmem>>, vector<1x1x8x8xbf16>
    %91 = vector.shape_cast %90 : vector<1x1x8x8xbf16> to vector<8x8xbf16>
    %c0_93 = arith.constant 0 : index
    %c6 = arith.constant 6 : index
    %c0_94 = arith.constant 0 : index
    %c0_95 = arith.constant 0 : index
    %92 = vector.load %arg1[%c0_93, %c6, %c0_94, %c0_95] : memref<1x18x9x8xbf16, #tpu.memory_space<vmem>>, vector<1x1x8x8xbf16>
    %93 = vector.shape_cast %92 : vector<1x1x8x8xbf16> to vector<8x8xbf16>
    %c0_96 = arith.constant 0 : index
    %c6_97 = arith.constant 6 : index
    %c1_98 = arith.constant 1 : index
    %c0_99 = arith.constant 0 : index
    %94 = vector.load %arg1[%c0_96, %c6_97, %c1_98, %c0_99] : memref<1x18x9x8xbf16, #tpu.memory_space<vmem>>, vector<1x1x8x8xbf16>
    %95 = vector.shape_cast %94 : vector<1x1x8x8xbf16> to vector<8x8xbf16>
    %96 = tpu.concatenate %85, %87, %89, %91, %93, %95 in 1 : vector<8x8xbf16>, vector<8x8xbf16>, vector<8x8xbf16>, vector<8x8xbf16>, vector<8x8xbf16>, vector<8x8xbf16> -> vector<8x48xbf16>
    %cst_100 = arith.constant dense<0.000000e+00> : vector<8x16xf32>
    %97 = tpu.matmul %96, %22, %cst_100 {dimension_numbers = #tpu.dot_dimension_numbers<[1], [0], [0], [1], [0, 0, 1, 1], [], []>} : vector<8x48xbf16>, vector<48x16xbf16>, vector<8x16xf32> -> vector<8x16xf32>
    %98 = vector.broadcast %23 : vector<1x16xf32> to vector<8x16xf32>
    %99 = arith.addf %97, %98 : vector<8x16xf32>
    %cst_101 = arith.constant 2.000000e-01 : f32
    %100 = vector.broadcast %cst_101 : f32 to vector<8x16xf32>
    %101 = arith.mulf %100, %99 : vector<8x16xf32>
    %102 = arith.maximumf %99, %101 : vector<8x16xf32>
    %103 = arith.truncf %102 : vector<8x16xf32> to vector<8x16xbf16>
    %cst_102 = arith.constant dense<0.000000e+00> : vector<4x16xf32>
    %104 = tpu.matmul %13, %103, %cst_102 {dimension_numbers = #tpu.dot_dimension_numbers<[1], [0], [0], [1], [0, 0, 1, 1], [], []>} : vector<4x8xbf16>, vector<8x16xbf16>, vector<4x16xf32> -> vector<4x16xf32>
    %105 = arith.truncf %104 : vector<4x16xf32> to vector<4x16xbf16>
    %cst_103 = arith.constant dense<0.000000e+00> : vector<4x16xf32>
    %106 = tpu.matmul %21, %103, %cst_103 {dimension_numbers = #tpu.dot_dimension_numbers<[1], [0], [0], [1], [0, 0, 1, 1], [], []>} : vector<4x8xbf16>, vector<8x16xbf16>, vector<4x16xf32> -> vector<4x16xf32>
    %107 = arith.truncf %106 : vector<4x16xf32> to vector<4x16xbf16>
    %c3_104 = arith.constant 3 : index
    %c0_105 = arith.constant 0 : index
    %c16_106 = arith.constant 16 : index
    %108 = vector.load %arg12[%c3_104, %c0_105, %c16_106] : memref<10x5x32xbf16, #tpu.memory_space<vmem>>, vector<1x4x16xbf16>
    %109 = vector.shape_cast %108 : vector<1x4x16xbf16> to vector<4x16xbf16>
    %110 = vector.shape_cast %105 : vector<4x16xbf16> to vector<1x4x16xbf16>
    tpu.vector_store %arg12[%c3_104, %c0_105, %c16_106], %110 {strides = array<i32>} : memref<10x5x32xbf16, #tpu.memory_space<vmem>>, vector<1x4x16xbf16>,
    %c3_107 = arith.constant 3 : index
    %c1_108 = arith.constant 1 : index
    %c0_109 = arith.constant 0 : index
    %111 = vector.load %arg12[%c3_107, %c1_108, %c0_109] : memref<10x5x32xbf16, #tpu.memory_space<vmem>>, vector<1x4x16xbf16>
    %112 = vector.shape_cast %111 : vector<1x4x16xbf16> to vector<4x16xbf16>
    %113 = vector.shape_cast %107 : vector<4x16xbf16> to vector<1x4x16xbf16>
    tpu.vector_store %arg12[%c3_107, %c1_108, %c0_109], %113 {strides = array<i32>} : memref<10x5x32xbf16, #tpu.memory_space<vmem>>, vector<1x4x16xbf16>,
    %c0_110 = arith.constant 0 : index
    %c6_111 = arith.constant 6 : index
    %c0_112 = arith.constant 0 : index
    %c0_113 = arith.constant 0 : index
    %114 = vector.load %arg1[%c0_110, %c6_111, %c0_112, %c0_113] : memref<1x18x9x8xbf16, #tpu.memory_space<vmem>>, vector<1x1x8x8xbf16>
    %115 = vector.shape_cast %114 : vector<1x1x8x8xbf16> to vector<8x8xbf16>
    %c0_114 = arith.constant 0 : index
    %c6_115 = arith.constant 6 : index
    %c1_116 = arith.constant 1 : index
    %c0_117 = arith.constant 0 : index
    %116 = vector.load %arg1[%c0_114, %c6_115, %c1_116, %c0_117] : memref<1x18x9x8xbf16, #tpu.memory_space<vmem>>, vector<1x1x8x8xbf16>
    %117 = vector.shape_cast %116 : vector<1x1x8x8xbf16> to vector<8x8xbf16>
    %c0_118 = arith.constant 0 : index
    %c7 = arith.constant 7 : index
    %c0_119 = arith.constant 0 : index
    %c0_120 = arith.constant 0 : index
    %118 = vector.load %arg1[%c0_118, %c7, %c0_119, %c0_120] : memref<1x18x9x8xbf16, #tpu.memory_space<vmem>>, vector<1x1x8x8xbf16>
    %119 = vector.shape_cast %118 : vector<1x1x8x8xbf16> to vector<8x8xbf16>
    %c0_121 = arith.constant 0 : index
    %c7_122 = arith.constant 7 : index
    %c1_123 = arith.constant 1 : index
    %c0_124 = arith.constant 0 : index
    %120 = vector.load %arg1[%c0_121, %c7_122, %c1_123, %c0_124] : memref<1x18x9x8xbf16, #tpu.memory_space<vmem>>, vector<1x1x8x8xbf16>
    %121 = vector.shape_cast %120 : vector<1x1x8x8xbf16> to vector<8x8xbf16>
    %c0_125 = arith.constant 0 : index
    %c8 = arith.constant 8 : index
    %c0_126 = arith.constant 0 : index
    %c0_127 = arith.constant 0 : index
    %122 = vector.load %arg1[%c0_125, %c8, %c0_126, %c0_127] : memref<1x18x9x8xbf16, #tpu.memory_space<vmem>>, vector<1x1x8x8xbf16>
    %123 = vector.shape_cast %122 : vector<1x1x8x8xbf16> to vector<8x8xbf16>
    %c0_128 = arith.constant 0 : index
    %c8_129 = arith.constant 8 : index
    %c1_130 = arith.constant 1 : index
    %c0_131 = arith.constant 0 : index
    %124 = vector.load %arg1[%c0_128, %c8_129, %c1_130, %c0_131] : memref<1x18x9x8xbf16, #tpu.memory_space<vmem>>, vector<1x1x8x8xbf16>
    %125 = vector.shape_cast %124 : vector<1x1x8x8xbf16> to vector<8x8xbf16>
    %126 = tpu.concatenate %115, %117, %119, %121, %123, %125 in 1 : vector<8x8xbf16>, vector<8x8xbf16>, vector<8x8xbf16>, vector<8x8xbf16>, vector<8x8xbf16>, vector<8x8xbf16> -> vector<8x48xbf16>
    %cst_132 = arith.constant dense<0.000000e+00> : vector<8x16xf32>
    %127 = tpu.matmul %126, %22, %cst_132 {dimension_numbers = #tpu.dot_dimension_numbers<[1], [0], [0], [1], [0, 0, 1, 1], [], []>} : vector<8x48xbf16>, vector<48x16xbf16>, vector<8x16xf32> -> vector<8x16xf32>
    %128 = vector.broadcast %23 : vector<1x16xf32> to vector<8x16xf32>
    %129 = arith.addf %127, %128 : vector<8x16xf32>
    %cst_133 = arith.constant 2.000000e-01 : f32
    %130 = vector.broadcast %cst_133 : f32 to vector<8x16xf32>
    %131 = arith.mulf %130, %129 : vector<8x16xf32>
    %132 = arith.maximumf %129, %131 : vector<8x16xf32>
    %133 = arith.truncf %132 : vector<8x16xf32> to vector<8x16xbf16>
    %cst_134 = arith.constant dense<0.000000e+00> : vector<4x16xf32>
    %134 = tpu.matmul %13, %133, %cst_134 {dimension_numbers = #tpu.dot_dimension_numbers<[1], [0], [0], [1], [0, 0, 1, 1], [], []>} : vector<4x8xbf16>, vector<8x16xbf16>, vector<4x16xf32> -> vector<4x16xf32>
    %135 = arith.truncf %134 : vector<4x16xf32> to vector<4x16xbf16>
    %cst_135 = arith.constant dense<0.000000e+00> : vector<4x16xf32>
    %136 = tpu.matmul %21, %133, %cst_135 {dimension_numbers = #tpu.dot_dimension_numbers<[1], [0], [0], [1], [0, 0, 1, 1], [], []>} : vector<4x8xbf16>, vector<8x16xbf16>, vector<4x16xf32> -> vector<4x16xf32>
    %137 = arith.truncf %136 : vector<4x16xf32> to vector<4x16xbf16>
    %c4_136 = arith.constant 4 : index
    %c0_137 = arith.constant 0 : index
    %c16_138 = arith.constant 16 : index
    %138 = vector.load %arg12[%c4_136, %c0_137, %c16_138] : memref<10x5x32xbf16, #tpu.memory_space<vmem>>, vector<1x4x16xbf16>
    %139 = vector.shape_cast %138 : vector<1x4x16xbf16> to vector<4x16xbf16>
    %140 = vector.shape_cast %135 : vector<4x16xbf16> to vector<1x4x16xbf16>
    tpu.vector_store %arg12[%c4_136, %c0_137, %c16_138], %140 {strides = array<i32>} : memref<10x5x32xbf16, #tpu.memory_space<vmem>>, vector<1x4x16xbf16>,
    %c4_139 = arith.constant 4 : index
    %c1_140 = arith.constant 1 : index
    %c0_141 = arith.constant 0 : index
    %141 = vector.load %arg12[%c4_139, %c1_140, %c0_141] : memref<10x5x32xbf16, #tpu.memory_space<vmem>>, vector<1x4x16xbf16>
    %142 = vector.shape_cast %141 : vector<1x4x16xbf16> to vector<4x16xbf16>
    %143 = vector.shape_cast %137 : vector<4x16xbf16> to vector<1x4x16xbf16>
    tpu.vector_store %arg12[%c4_139, %c1_140, %c0_141], %143 {strides = array<i32>} : memref<10x5x32xbf16, #tpu.memory_space<vmem>>, vector<1x4x16xbf16>,
    %c0_142 = arith.constant 0 : index
    %c8_143 = arith.constant 8 : index
    %c0_144 = arith.constant 0 : index
    %c0_145 = arith.constant 0 : index
    %144 = vector.load %arg1[%c0_142, %c8_143, %c0_144, %c0_145] : memref<1x18x9x8xbf16, #tpu.memory_space<vmem>>, vector<1x1x8x8xbf16>
    %145 = vector.shape_cast %144 : vector<1x1x8x8xbf16> to vector<8x8xbf16>
    %c0_146 = arith.constant 0 : index
    %c8_147 = arith.constant 8 : index
    %c1_148 = arith.constant 1 : index
    %c0_149 = arith.constant 0 : index
    %146 = vector.load %arg1[%c0_146, %c8_147, %c1_148, %c0_149] : memref<1x18x9x8xbf16, #tpu.memory_space<vmem>>, vector<1x1x8x8xbf16>
    %147 = vector.shape_cast %146 : vector<1x1x8x8xbf16> to vector<8x8xbf16>
    %c0_150 = arith.constant 0 : index
    %c9 = arith.constant 9 : index
    %c0_151 = arith.constant 0 : index
    %c0_152 = arith.constant 0 : index
    %148 = vector.load %arg1[%c0_150, %c9, %c0_151, %c0_152] : memref<1x18x9x8xbf16, #tpu.memory_space<vmem>>, vector<1x1x8x8xbf16>
    %149 = vector.shape_cast %148 : vector<1x1x8x8xbf16> to vector<8x8xbf16>
    %c0_153 = arith.constant 0 : index
    %c9_154 = arith.constant 9 : index
    %c1_155 = arith.constant 1 : index
    %c0_156 = arith.constant 0 : index
    %150 = vector.load %arg1[%c0_153, %c9_154, %c1_155, %c0_156] : memref<1x18x9x8xbf16, #tpu.memory_space<vmem>>, vector<1x1x8x8xbf16>
    %151 = vector.shape_cast %150 : vector<1x1x8x8xbf16> to vector<8x8xbf16>
    %c0_157 = arith.constant 0 : index
    %c10 = arith.constant 10 : index
    %c0_158 = arith.constant 0 : index
    %c0_159 = arith.constant 0 : index
    %152 = vector.load %arg1[%c0_157, %c10, %c0_158, %c0_159] : memref<1x18x9x8xbf16, #tpu.memory_space<vmem>>, vector<1x1x8x8xbf16>
    %153 = vector.shape_cast %152 : vector<1x1x8x8xbf16> to vector<8x8xbf16>
    %c0_160 = arith.constant 0 : index
    %c10_161 = arith.constant 10 : index
    %c1_162 = arith.constant 1 : index
    %c0_163 = arith.constant 0 : index
    %154 = vector.load %arg1[%c0_160, %c10_161, %c1_162, %c0_163] : memref<1x18x9x8xbf16, #tpu.memory_space<vmem>>, vector<1x1x8x8xbf16>
    %155 = vector.shape_cast %154 : vector<1x1x8x8xbf16> to vector<8x8xbf16>
    %156 = tpu.concatenate %145, %147, %149, %151, %153, %155 in 1 : vector<8x8xbf16>, vector<8x8xbf16>, vector<8x8xbf16>, vector<8x8xbf16>, vector<8x8xbf16>, vector<8x8xbf16> -> vector<8x48xbf16>
    %cst_164 = arith.constant dense<0.000000e+00> : vector<8x16xf32>
    %157 = tpu.matmul %156, %22, %cst_164 {dimension_numbers = #tpu.dot_dimension_numbers<[1], [0], [0], [1], [0, 0, 1, 1], [], []>} : vector<8x48xbf16>, vector<48x16xbf16>, vector<8x16xf32> -> vector<8x16xf32>
    %158 = vector.broadcast %23 : vector<1x16xf32> to vector<8x16xf32>
    %159 = arith.addf %157, %158 : vector<8x16xf32>
    %cst_165 = arith.constant 2.000000e-01 : f32
    %160 = vector.broadcast %cst_165 : f32 to vector<8x16xf32>
    %161 = arith.mulf %160, %159 : vector<8x16xf32>
    %162 = arith.maximumf %159, %161 : vector<8x16xf32>
    %163 = arith.truncf %162 : vector<8x16xf32> to vector<8x16xbf16>
    %cst_166 = arith.constant dense<0.000000e+00> : vector<4x16xf32>
    %164 = tpu.matmul %13, %163, %cst_166 {dimension_numbers = #tpu.dot_dimension_numbers<[1], [0], [0], [1], [0, 0, 1, 1], [], []>} : vector<4x8xbf16>, vector<8x16xbf16>, vector<4x16xf32> -> vector<4x16xf32>
    %165 = arith.truncf %164 : vector<4x16xf32> to vector<4x16xbf16>
    %cst_167 = arith.constant dense<0.000000e+00> : vector<4x16xf32>
    %166 = tpu.matmul %21, %163, %cst_167 {dimension_numbers = #tpu.dot_dimension_numbers<[1], [0], [0], [1], [0, 0, 1, 1], [], []>} : vector<4x8xbf16>, vector<8x16xbf16>, vector<4x16xf32> -> vector<4x16xf32>
    %167 = arith.truncf %166 : vector<4x16xf32> to vector<4x16xbf16>
    %c5_168 = arith.constant 5 : index
    %c0_169 = arith.constant 0 : index
    %c16_170 = arith.constant 16 : index
    %168 = vector.load %arg12[%c5_168, %c0_169, %c16_170] : memref<10x5x32xbf16, #tpu.memory_space<vmem>>, vector<1x4x16xbf16>
    %169 = vector.shape_cast %168 : vector<1x4x16xbf16> to vector<4x16xbf16>
    %170 = vector.shape_cast %165 : vector<4x16xbf16> to vector<1x4x16xbf16>
    tpu.vector_store %arg12[%c5_168, %c0_169, %c16_170], %170 {strides = array<i32>} : memref<10x5x32xbf16, #tpu.memory_space<vmem>>, vector<1x4x16xbf16>,
    %c5_171 = arith.constant 5 : index
    %c1_172 = arith.constant 1 : index
    %c0_173 = arith.constant 0 : index
    %171 = vector.load %arg12[%c5_171, %c1_172, %c0_173] : memref<10x5x32xbf16, #tpu.memory_space<vmem>>, vector<1x4x16xbf16>
    %172 = vector.shape_cast %171 : vector<1x4x16xbf16> to vector<4x16xbf16>
    %173 = vector.shape_cast %167 : vector<4x16xbf16> to vector<1x4x16xbf16>
    tpu.vector_store %arg12[%c5_171, %c1_172, %c0_173], %173 {strides = array<i32>} : memref<10x5x32xbf16, #tpu.memory_space<vmem>>, vector<1x4x16xbf16>,
    %c0_174 = arith.constant 0 : index
    %c10_175 = arith.constant 10 : index
    %c0_176 = arith.constant 0 : index
    %c0_177 = arith.constant 0 : index
    %174 = vector.load %arg1[%c0_174, %c10_175, %c0_176, %c0_177] : memref<1x18x9x8xbf16, #tpu.memory_space<vmem>>, vector<1x1x8x8xbf16>
    %175 = vector.shape_cast %174 : vector<1x1x8x8xbf16> to vector<8x8xbf16>
    %c0_178 = arith.constant 0 : index
    %c10_179 = arith.constant 10 : index
    %c1_180 = arith.constant 1 : index
    %c0_181 = arith.constant 0 : index
    %176 = vector.load %arg1[%c0_178, %c10_179, %c1_180, %c0_181] : memref<1x18x9x8xbf16, #tpu.memory_space<vmem>>, vector<1x1x8x8xbf16>
    %177 = vector.shape_cast %176 : vector<1x1x8x8xbf16> to vector<8x8xbf16>
    %c0_182 = arith.constant 0 : index
    %c11 = arith.constant 11 : index
    %c0_183 = arith.constant 0 : index
    %c0_184 = arith.constant 0 : index
    %178 = vector.load %arg1[%c0_182, %c11, %c0_183, %c0_184] : memref<1x18x9x8xbf16, #tpu.memory_space<vmem>>, vector<1x1x8x8xbf16>
    %179 = vector.shape_cast %178 : vector<1x1x8x8xbf16> to vector<8x8xbf16>
    %c0_185 = arith.constant 0 : index
    %c11_186 = arith.constant 11 : index
    %c1_187 = arith.constant 1 : index
    %c0_188 = arith.constant 0 : index
    %180 = vector.load %arg1[%c0_185, %c11_186, %c1_187, %c0_188] : memref<1x18x9x8xbf16, #tpu.memory_space<vmem>>, vector<1x1x8x8xbf16>
    %181 = vector.shape_cast %180 : vector<1x1x8x8xbf16> to vector<8x8xbf16>
    %c0_189 = arith.constant 0 : index
    %c12 = arith.constant 12 : index
    %c0_190 = arith.constant 0 : index
    %c0_191 = arith.constant 0 : index
    %182 = vector.load %arg1[%c0_189, %c12, %c0_190, %c0_191] : memref<1x18x9x8xbf16, #tpu.memory_space<vmem>>, vector<1x1x8x8xbf16>
    %183 = vector.shape_cast %182 : vector<1x1x8x8xbf16> to vector<8x8xbf16>
    %c0_192 = arith.constant 0 : index
    %c12_193 = arith.constant 12 : index
    %c1_194 = arith.constant 1 : index
    %c0_195 = arith.constant 0 : index
    %184 = vector.load %arg1[%c0_192, %c12_193, %c1_194, %c0_195] : memref<1x18x9x8xbf16, #tpu.memory_space<vmem>>, vector<1x1x8x8xbf16>
    %185 = vector.shape_cast %184 : vector<1x1x8x8xbf16> to vector<8x8xbf16>
    %186 = tpu.concatenate %175, %177, %179, %181, %183, %185 in 1 : vector<8x8xbf16>, vector<8x8xbf16>, vector<8x8xbf16>, vector<8x8xbf16>, vector<8x8xbf16>, vector<8x8xbf16> -> vector<8x48xbf16>
    %cst_196 = arith.constant dense<0.000000e+00> : vector<8x16xf32>
    %187 = tpu.matmul %186, %22, %cst_196 {dimension_numbers = #tpu.dot_dimension_numbers<[1], [0], [0], [1], [0, 0, 1, 1], [], []>} : vector<8x48xbf16>, vector<48x16xbf16>, vector<8x16xf32> -> vector<8x16xf32>
    %188 = vector.broadcast %23 : vector<1x16xf32> to vector<8x16xf32>
    %189 = arith.addf %187, %188 : vector<8x16xf32>
    %cst_197 = arith.constant 2.000000e-01 : f32
    %190 = vector.broadcast %cst_197 : f32 to vector<8x16xf32>
    %191 = arith.mulf %190, %189 : vector<8x16xf32>
    %192 = arith.maximumf %189, %191 : vector<8x16xf32>
    %193 = arith.truncf %192 : vector<8x16xf32> to vector<8x16xbf16>
    %cst_198 = arith.constant dense<0.000000e+00> : vector<4x16xf32>
    %194 = tpu.matmul %13, %193, %cst_198 {dimension_numbers = #tpu.dot_dimension_numbers<[1], [0], [0], [1], [0, 0, 1, 1], [], []>} : vector<4x8xbf16>, vector<8x16xbf16>, vector<4x16xf32> -> vector<4x16xf32>
    %195 = arith.truncf %194 : vector<4x16xf32> to vector<4x16xbf16>
    %cst_199 = arith.constant dense<0.000000e+00> : vector<4x16xf32>
    %196 = tpu.matmul %21, %193, %cst_199 {dimension_numbers = #tpu.dot_dimension_numbers<[1], [0], [0], [1], [0, 0, 1, 1], [], []>} : vector<4x8xbf16>, vector<8x16xbf16>, vector<4x16xf32> -> vector<4x16xf32>
    %197 = arith.truncf %196 : vector<4x16xf32> to vector<4x16xbf16>
    %c6_200 = arith.constant 6 : index
    %c0_201 = arith.constant 0 : index
    %c16_202 = arith.constant 16 : index
    %198 = vector.load %arg12[%c6_200, %c0_201, %c16_202] : memref<10x5x32xbf16, #tpu.memory_space<vmem>>, vector<1x4x16xbf16>
    %199 = vector.shape_cast %198 : vector<1x4x16xbf16> to vector<4x16xbf16>
    %200 = vector.shape_cast %195 : vector<4x16xbf16> to vector<1x4x16xbf16>
    tpu.vector_store %arg12[%c6_200, %c0_201, %c16_202], %200 {strides = array<i32>} : memref<10x5x32xbf16, #tpu.memory_space<vmem>>, vector<1x4x16xbf16>,
    %c6_203 = arith.constant 6 : index
    %c1_204 = arith.constant 1 : index
    %c0_205 = arith.constant 0 : index
    %201 = vector.load %arg12[%c6_203, %c1_204, %c0_205] : memref<10x5x32xbf16, #tpu.memory_space<vmem>>, vector<1x4x16xbf16>
    %202 = vector.shape_cast %201 : vector<1x4x16xbf16> to vector<4x16xbf16>
    %203 = vector.shape_cast %197 : vector<4x16xbf16> to vector<1x4x16xbf16>
    tpu.vector_store %arg12[%c6_203, %c1_204, %c0_205], %203 {strides = array<i32>} : memref<10x5x32xbf16, #tpu.memory_space<vmem>>, vector<1x4x16xbf16>,
    %c0_206 = arith.constant 0 : index
    %c12_207 = arith.constant 12 : index
    %c0_208 = arith.constant 0 : index
    %c0_209 = arith.constant 0 : index
    %204 = vector.load %arg1[%c0_206, %c12_207, %c0_208, %c0_209] : memref<1x18x9x8xbf16, #tpu.memory_space<vmem>>, vector<1x1x8x8xbf16>
    %205 = vector.shape_cast %204 : vector<1x1x8x8xbf16> to vector<8x8xbf16>
    %c0_210 = arith.constant 0 : index
    %c12_211 = arith.constant 12 : index
    %c1_212 = arith.constant 1 : index
    %c0_213 = arith.constant 0 : index
    %206 = vector.load %arg1[%c0_210, %c12_211, %c1_212, %c0_213] : memref<1x18x9x8xbf16, #tpu.memory_space<vmem>>, vector<1x1x8x8xbf16>
    %207 = vector.shape_cast %206 : vector<1x1x8x8xbf16> to vector<8x8xbf16>
    %c0_214 = arith.constant 0 : index
    %c13 = arith.constant 13 : index
    %c0_215 = arith.constant 0 : index
    %c0_216 = arith.constant 0 : index
    %208 = vector.load %arg1[%c0_214, %c13, %c0_215, %c0_216] : memref<1x18x9x8xbf16, #tpu.memory_space<vmem>>, vector<1x1x8x8xbf16>
    %209 = vector.shape_cast %208 : vector<1x1x8x8xbf16> to vector<8x8xbf16>
    %c0_217 = arith.constant 0 : index
    %c13_218 = arith.constant 13 : index
    %c1_219 = arith.constant 1 : index
    %c0_220 = arith.constant 0 : index
    %210 = vector.load %arg1[%c0_217, %c13_218, %c1_219, %c0_220] : memref<1x18x9x8xbf16, #tpu.memory_space<vmem>>, vector<1x1x8x8xbf16>
    %211 = vector.shape_cast %210 : vector<1x1x8x8xbf16> to vector<8x8xbf16>
    %c0_221 = arith.constant 0 : index
    %c14 = arith.constant 14 : index
    %c0_222 = arith.constant 0 : index
    %c0_223 = arith.constant 0 : index
    %212 = vector.load %arg1[%c0_221, %c14, %c0_222, %c0_223] : memref<1x18x9x8xbf16, #tpu.memory_space<vmem>>, vector<1x1x8x8xbf16>
    %213 = vector.shape_cast %212 : vector<1x1x8x8xbf16> to vector<8x8xbf16>
    %c0_224 = arith.constant 0 : index
    %c14_225 = arith.constant 14 : index
    %c1_226 = arith.constant 1 : index
    %c0_227 = arith.constant 0 : index
    %214 = vector.load %arg1[%c0_224, %c14_225, %c1_226, %c0_227] : memref<1x18x9x8xbf16, #tpu.memory_space<vmem>>, vector<1x1x8x8xbf16>
    %215 = vector.shape_cast %214 : vector<1x1x8x8xbf16> to vector<8x8xbf16>
    %216 = tpu.concatenate %205, %207, %209, %211, %213, %215 in 1 : vector<8x8xbf16>, vector<8x8xbf16>, vector<8x8xbf16>, vector<8x8xbf16>, vector<8x8xbf16>, vector<8x8xbf16> -> vector<8x48xbf16>
    %cst_228 = arith.constant dense<0.000000e+00> : vector<8x16xf32>
    %217 = tpu.matmul %216, %22, %cst_228 {dimension_numbers = #tpu.dot_dimension_numbers<[1], [0], [0], [1], [0, 0, 1, 1], [], []>} : vector<8x48xbf16>, vector<48x16xbf16>, vector<8x16xf32> -> vector<8x16xf32>
    %218 = vector.broadcast %23 : vector<1x16xf32> to vector<8x16xf32>
    %219 = arith.addf %217, %218 : vector<8x16xf32>
    %cst_229 = arith.constant 2.000000e-01 : f32
    %220 = vector.broadcast %cst_229 : f32 to vector<8x16xf32>
    %221 = arith.mulf %220, %219 : vector<8x16xf32>
    %222 = arith.maximumf %219, %221 : vector<8x16xf32>
    %223 = arith.truncf %222 : vector<8x16xf32> to vector<8x16xbf16>
    %cst_230 = arith.constant dense<0.000000e+00> : vector<4x16xf32>
    %224 = tpu.matmul %13, %223, %cst_230 {dimension_numbers = #tpu.dot_dimension_numbers<[1], [0], [0], [1], [0, 0, 1, 1], [], []>} : vector<4x8xbf16>, vector<8x16xbf16>, vector<4x16xf32> -> vector<4x16xf32>
    %225 = arith.truncf %224 : vector<4x16xf32> to vector<4x16xbf16>
    %cst_231 = arith.constant dense<0.000000e+00> : vector<4x16xf32>
    %226 = tpu.matmul %21, %223, %cst_231 {dimension_numbers = #tpu.dot_dimension_numbers<[1], [0], [0], [1], [0, 0, 1, 1], [], []>} : vector<4x8xbf16>, vector<8x16xbf16>, vector<4x16xf32> -> vector<4x16xf32>
    %227 = arith.truncf %226 : vector<4x16xf32> to vector<4x16xbf16>
    %c7_232 = arith.constant 7 : index
    %c0_233 = arith.constant 0 : index
    %c16_234 = arith.constant 16 : index
    %228 = vector.load %arg12[%c7_232, %c0_233, %c16_234] : memref<10x5x32xbf16, #tpu.memory_space<vmem>>, vector<1x4x16xbf16>
    %229 = vector.shape_cast %228 : vector<1x4x16xbf16> to vector<4x16xbf16>
    %230 = vector.shape_cast %225 : vector<4x16xbf16> to vector<1x4x16xbf16>
    tpu.vector_store %arg12[%c7_232, %c0_233, %c16_234], %230 {strides = array<i32>} : memref<10x5x32xbf16, #tpu.memory_space<vmem>>, vector<1x4x16xbf16>,
    %c7_235 = arith.constant 7 : index
    %c1_236 = arith.constant 1 : index
    %c0_237 = arith.constant 0 : index
    %231 = vector.load %arg12[%c7_235, %c1_236, %c0_237] : memref<10x5x32xbf16, #tpu.memory_space<vmem>>, vector<1x4x16xbf16>
    %232 = vector.shape_cast %231 : vector<1x4x16xbf16> to vector<4x16xbf16>
    %233 = vector.shape_cast %227 : vector<4x16xbf16> to vector<1x4x16xbf16>
    tpu.vector_store %arg12[%c7_235, %c1_236, %c0_237], %233 {strides = array<i32>} : memref<10x5x32xbf16, #tpu.memory_space<vmem>>, vector<1x4x16xbf16>,
    %c0_238 = arith.constant 0 : index
    %c14_239 = arith.constant 14 : index
    %c0_240 = arith.constant 0 : index
    %c0_241 = arith.constant 0 : index
    %234 = vector.load %arg1[%c0_238, %c14_239, %c0_240, %c0_241] : memref<1x18x9x8xbf16, #tpu.memory_space<vmem>>, vector<1x1x8x8xbf16>
    %235 = vector.shape_cast %234 : vector<1x1x8x8xbf16> to vector<8x8xbf16>
    %c0_242 = arith.constant 0 : index
    %c14_243 = arith.constant 14 : index
    %c1_244 = arith.constant 1 : index
    %c0_245 = arith.constant 0 : index
    %236 = vector.load %arg1[%c0_242, %c14_243, %c1_244, %c0_245] : memref<1x18x9x8xbf16, #tpu.memory_space<vmem>>, vector<1x1x8x8xbf16>
    %237 = vector.shape_cast %236 : vector<1x1x8x8xbf16> to vector<8x8xbf16>
    %c0_246 = arith.constant 0 : index
    %c15 = arith.constant 15 : index
    %c0_247 = arith.constant 0 : index
    %c0_248 = arith.constant 0 : index
    %238 = vector.load %arg1[%c0_246, %c15, %c0_247, %c0_248] : memref<1x18x9x8xbf16, #tpu.memory_space<vmem>>, vector<1x1x8x8xbf16>
    %239 = vector.shape_cast %238 : vector<1x1x8x8xbf16> to vector<8x8xbf16>
    %c0_249 = arith.constant 0 : index
    %c15_250 = arith.constant 15 : index
    %c1_251 = arith.constant 1 : index
    %c0_252 = arith.constant 0 : index
    %240 = vector.load %arg1[%c0_249, %c15_250, %c1_251, %c0_252] : memref<1x18x9x8xbf16, #tpu.memory_space<vmem>>, vector<1x1x8x8xbf16>
    %241 = vector.shape_cast %240 : vector<1x1x8x8xbf16> to vector<8x8xbf16>
    %c0_253 = arith.constant 0 : index
    %c16_254 = arith.constant 16 : index
    %c0_255 = arith.constant 0 : index
    %c0_256 = arith.constant 0 : index
    %242 = vector.load %arg1[%c0_253, %c16_254, %c0_255, %c0_256] : memref<1x18x9x8xbf16, #tpu.memory_space<vmem>>, vector<1x1x8x8xbf16>
    %243 = vector.shape_cast %242 : vector<1x1x8x8xbf16> to vector<8x8xbf16>
    %c0_257 = arith.constant 0 : index
    %c16_258 = arith.constant 16 : index
    %c1_259 = arith.constant 1 : index
    %c0_260 = arith.constant 0 : index
    %244 = vector.load %arg1[%c0_257, %c16_258, %c1_259, %c0_260] : memref<1x18x9x8xbf16, #tpu.memory_space<vmem>>, vector<1x1x8x8xbf16>
    %245 = vector.shape_cast %244 : vector<1x1x8x8xbf16> to vector<8x8xbf16>
    %246 = tpu.concatenate %235, %237, %239, %241, %243, %245 in 1 : vector<8x8xbf16>, vector<8x8xbf16>, vector<8x8xbf16>, vector<8x8xbf16>, vector<8x8xbf16>, vector<8x8xbf16> -> vector<8x48xbf16>
    %cst_261 = arith.constant dense<0.000000e+00> : vector<8x16xf32>
    %247 = tpu.matmul %246, %22, %cst_261 {dimension_numbers = #tpu.dot_dimension_numbers<[1], [0], [0], [1], [0, 0, 1, 1], [], []>} : vector<8x48xbf16>, vector<48x16xbf16>, vector<8x16xf32> -> vector<8x16xf32>
    %248 = vector.broadcast %23 : vector<1x16xf32> to vector<8x16xf32>
    %249 = arith.addf %247, %248 : vector<8x16xf32>
    %cst_262 = arith.constant 2.000000e-01 : f32
    %250 = vector.broadcast %cst_262 : f32 to vector<8x16xf32>
    %251 = arith.mulf %250, %249 : vector<8x16xf32>
    %252 = arith.maximumf %249, %251 : vector<8x16xf32>
    %253 = arith.truncf %252 : vector<8x16xf32> to vector<8x16xbf16>
    %cst_263 = arith.constant dense<0.000000e+00> : vector<4x16xf32>
    %254 = tpu.matmul %13, %253, %cst_263 {dimension_numbers = #tpu.dot_dimension_numbers<[1], [0], [0], [1], [0, 0, 1, 1], [], []>} : vector<4x8xbf16>, vector<8x16xbf16>, vector<4x16xf32> -> vector<4x16xf32>
    %255 = arith.truncf %254 : vector<4x16xf32> to vector<4x16xbf16>
    %cst_264 = arith.constant dense<0.000000e+00> : vector<4x16xf32>
    %256 = tpu.matmul %21, %253, %cst_264 {dimension_numbers = #tpu.dot_dimension_numbers<[1], [0], [0], [1], [0, 0, 1, 1], [], []>} : vector<4x8xbf16>, vector<8x16xbf16>, vector<4x16xf32> -> vector<4x16xf32>
    %257 = arith.truncf %256 : vector<4x16xf32> to vector<4x16xbf16>
    %c8_265 = arith.constant 8 : index
    %c0_266 = arith.constant 0 : index
    %c16_267 = arith.constant 16 : index
    %258 = vector.load %arg12[%c8_265, %c0_266, %c16_267] : memref<10x5x32xbf16, #tpu.memory_space<vmem>>, vector<1x4x16xbf16>
    %259 = vector.shape_cast %258 : vector<1x4x16xbf16> to vector<4x16xbf16>
    %260 = vector.shape_cast %255 : vector<4x16xbf16> to vector<1x4x16xbf16>
    tpu.vector_store %arg12[%c8_265, %c0_266, %c16_267], %260 {strides = array<i32>} : memref<10x5x32xbf16, #tpu.memory_space<vmem>>, vector<1x4x16xbf16>,
    %c8_268 = arith.constant 8 : index
    %c1_269 = arith.constant 1 : index
    %c0_270 = arith.constant 0 : index
    %261 = vector.load %arg12[%c8_268, %c1_269, %c0_270] : memref<10x5x32xbf16, #tpu.memory_space<vmem>>, vector<1x4x16xbf16>
    %262 = vector.shape_cast %261 : vector<1x4x16xbf16> to vector<4x16xbf16>
    %263 = vector.shape_cast %257 : vector<4x16xbf16> to vector<1x4x16xbf16>
    tpu.vector_store %arg12[%c8_268, %c1_269, %c0_270], %263 {strides = array<i32>} : memref<10x5x32xbf16, #tpu.memory_space<vmem>>, vector<1x4x16xbf16>,
    %264 = tpu.iota {dimensions = array<i32: 0>} : vector<2x4xi32>
    %265 = tpu.iota {dimensions = array<i32: 1>} : vector<2x4xi32>
    %c2_i32_271 = arith.constant 2 : i32
    %266 = vector.broadcast %c2_i32_271 : i32 to vector<2x4xi32>
    %267 = arith.muli %266, %264 : vector<2x4xi32>
    %268 = arith.cmpi eq, %265, %267 : vector<2x4xi32>
    %269 = arith.extui %268 : vector<2x4xi1> to vector<2x4xi32>
    %270 = arith.sitofp %269 : vector<2x4xi32> to vector<2x4xf32>
    %271 = arith.truncf %270 : vector<2x4xf32> to vector<2x4xbf16>
    %c2_i32_272 = arith.constant 2 : i32
    %272 = vector.broadcast %c2_i32_272 : i32 to vector<2x4xi32>
    %273 = arith.muli %272, %264 : vector<2x4xi32>
    %c1_i32_273 = arith.constant 1 : i32
    %274 = vector.broadcast %c1_i32_273 : i32 to vector<2x4xi32>
    %275 = arith.addi %273, %274 : vector<2x4xi32>
    %276 = arith.cmpi eq, %265, %275 : vector<2x4xi32>
    %277 = arith.extui %276 : vector<2x4xi1> to vector<2x4xi32>
    %278 = arith.sitofp %277 : vector<2x4xi32> to vector<2x4xf32>
    %279 = arith.truncf %278 : vector<2x4xf32> to vector<2x4xbf16>
    %c0_274 = arith.constant 0 : index
    %c0_275 = arith.constant 0 : index
    %280 = vector.load %arg4[%c0_274, %c0_275] : memref<192x32xbf16, #tpu.memory_space<vmem>>, vector<192x32xbf16>
    %c0_276 = arith.constant 0 : index
    %c0_277 = arith.constant 0 : index
    %281 = vector.load %arg5[%c0_276, %c0_277] : memref<3x32xf32, #tpu.memory_space<vmem>>, vector<1x32xf32>
    %c1_278 = arith.constant 1 : index
    %c0_279 = arith.constant 0 : index
    %282 = vector.load %arg5[%c1_278, %c0_279] : memref<3x32xf32, #tpu.memory_space<vmem>>, vector<1x32xf32>
    %c2_280 = arith.constant 2 : index
    %c0_281 = arith.constant 0 : index
    %283 = vector.load %arg5[%c2_280, %c0_281] : memref<3x32xf32, #tpu.memory_space<vmem>>, vector<1x32xf32>
    %c0_282 = arith.constant 0 : index
    %c0_283 = arith.constant 0 : index
    %c0_284 = arith.constant 0 : index
    %284 = vector.load %arg12[%c0_282, %c0_283, %c0_284] : memref<10x5x32xbf16, #tpu.memory_space<vmem>>, vector<1x4x32xbf16>
    %285 = vector.shape_cast %284 : vector<1x4x32xbf16> to vector<4x32xbf16>
    %c0_285 = arith.constant 0 : index
    %c1_286 = arith.constant 1 : index
    %c0_287 = arith.constant 0 : index
    %286 = vector.load %arg12[%c0_285, %c1_286, %c0_287] : memref<10x5x32xbf16, #tpu.memory_space<vmem>>, vector<1x4x32xbf16>
    %287 = vector.shape_cast %286 : vector<1x4x32xbf16> to vector<4x32xbf16>
    %c1_288 = arith.constant 1 : index
    %c0_289 = arith.constant 0 : index
    %c0_290 = arith.constant 0 : index
    %288 = vector.load %arg12[%c1_288, %c0_289, %c0_290] : memref<10x5x32xbf16, #tpu.memory_space<vmem>>, vector<1x4x32xbf16>
    %289 = vector.shape_cast %288 : vector<1x4x32xbf16> to vector<4x32xbf16>
    %c1_291 = arith.constant 1 : index
    %c1_292 = arith.constant 1 : index
    %c0_293 = arith.constant 0 : index
    %290 = vector.load %arg12[%c1_291, %c1_292, %c0_293] : memref<10x5x32xbf16, #tpu.memory_space<vmem>>, vector<1x4x32xbf16>
    %291 = vector.shape_cast %290 : vector<1x4x32xbf16> to vector<4x32xbf16>
    %c2_294 = arith.constant 2 : index
    %c0_295 = arith.constant 0 : index
    %c0_296 = arith.constant 0 : index
    %292 = vector.load %arg12[%c2_294, %c0_295, %c0_296] : memref<10x5x32xbf16, #tpu.memory_space<vmem>>, vector<1x4x32xbf16>
    %293 = vector.shape_cast %292 : vector<1x4x32xbf16> to vector<4x32xbf16>
    %c2_297 = arith.constant 2 : index
    %c1_298 = arith.constant 1 : index
    %c0_299 = arith.constant 0 : index
    %294 = vector.load %arg12[%c2_297, %c1_298, %c0_299] : memref<10x5x32xbf16, #tpu.memory_space<vmem>>, vector<1x4x32xbf16>
    %295 = vector.shape_cast %294 : vector<1x4x32xbf16> to vector<4x32xbf16>
    %296 = tpu.concatenate %285, %287, %289, %291, %293, %295 in 1 : vector<4x32xbf16>, vector<4x32xbf16>, vector<4x32xbf16>, vector<4x32xbf16>, vector<4x32xbf16>, vector<4x32xbf16> -> vector<4x192xbf16>
    %cst_300 = arith.constant dense<0.000000e+00> : vector<4x32xf32>
    %297 = tpu.matmul %296, %280, %cst_300 {dimension_numbers = #tpu.dot_dimension_numbers<[1], [0], [0], [1], [0, 0, 1, 1], [], []>} : vector<4x192xbf16>, vector<192x32xbf16>, vector<4x32xf32> -> vector<4x32xf32>
    %298 = vector.broadcast %281 : vector<1x32xf32> to vector<4x32xf32>
    %299 = arith.addf %297, %298 : vector<4x32xf32>
    %cst_301 = arith.constant 2.000000e-01 : f32
    %300 = vector.broadcast %cst_301 : f32 to vector<4x32xf32>
    %301 = arith.mulf %300, %299 : vector<4x32xf32>
    %302 = arith.maximumf %299, %301 : vector<4x32xf32>
    %303 = vector.broadcast %282 : vector<1x32xf32> to vector<4x32xf32>
    %304 = arith.mulf %302, %303 : vector<4x32xf32>
    %305 = vector.broadcast %283 : vector<1x32xf32> to vector<4x32xf32>
    %306 = arith.addf %304, %305 : vector<4x32xf32>
    %307 = arith.truncf %306 : vector<4x32xf32> to vector<4x32xbf16>
    %cst_302 = arith.constant dense<0.000000e+00> : vector<2x32xf32>
    %308 = tpu.matmul %271, %307, %cst_302 {dimension_numbers = #tpu.dot_dimension_numbers<[1], [0], [0], [1], [0, 0, 1, 1], [], []>} : vector<2x4xbf16>, vector<4x32xbf16>, vector<2x32xf32> -> vector<2x32xf32>
    %309 = arith.truncf %308 : vector<2x32xf32> to vector<2x32xbf16>
    %cst_303 = arith.constant dense<0.000000e+00> : vector<2x32xf32>
    %310 = tpu.matmul %279, %307, %cst_303 {dimension_numbers = #tpu.dot_dimension_numbers<[1], [0], [0], [1], [0, 0, 1, 1], [], []>} : vector<2x4xbf16>, vector<4x32xbf16>, vector<2x32xf32> -> vector<2x32xf32>
    %311 = arith.truncf %310 : vector<2x32xf32> to vector<2x32xbf16>
    %c1_304 = arith.constant 1 : index
    %c0_305 = arith.constant 0 : index
    %c32 = arith.constant 32 : index
    %312 = vector.load %arg13[%c1_304, %c0_305, %c32] : memref<6x3x64xbf16, #tpu.memory_space<vmem>>, vector<1x2x32xbf16>
    %313 = vector.shape_cast %312 : vector<1x2x32xbf16> to vector<2x32xbf16>
    %314 = vector.shape_cast %309 : vector<2x32xbf16> to vector<1x2x32xbf16>
    tpu.vector_store %arg13[%c1_304, %c0_305, %c32], %314 {strides = array<i32>} : memref<6x3x64xbf16, #tpu.memory_space<vmem>>, vector<1x2x32xbf16>,
    %c1_306 = arith.constant 1 : index
    %c1_307 = arith.constant 1 : index
    %c0_308 = arith.constant 0 : index
    %315 = vector.load %arg13[%c1_306, %c1_307, %c0_308] : memref<6x3x64xbf16, #tpu.memory_space<vmem>>, vector<1x2x32xbf16>
    %316 = vector.shape_cast %315 : vector<1x2x32xbf16> to vector<2x32xbf16>
    %317 = vector.shape_cast %311 : vector<2x32xbf16> to vector<1x2x32xbf16>
    tpu.vector_store %arg13[%c1_306, %c1_307, %c0_308], %317 {strides = array<i32>} : memref<6x3x64xbf16, #tpu.memory_space<vmem>>, vector<1x2x32xbf16>,
    %c2_309 = arith.constant 2 : index
    %c0_310 = arith.constant 0 : index
    %c0_311 = arith.constant 0 : index
    %318 = vector.load %arg12[%c2_309, %c0_310, %c0_311] : memref<10x5x32xbf16, #tpu.memory_space<vmem>>, vector<1x4x32xbf16>
    %319 = vector.shape_cast %318 : vector<1x4x32xbf16> to vector<4x32xbf16>
    %c2_312 = arith.constant 2 : index
    %c1_313 = arith.constant 1 : index
    %c0_314 = arith.constant 0 : index
    %320 = vector.load %arg12[%c2_312, %c1_313, %c0_314] : memref<10x5x32xbf16, #tpu.memory_space<vmem>>, vector<1x4x32xbf16>
    %321 = vector.shape_cast %320 : vector<1x4x32xbf16> to vector<4x32xbf16>
    %c3_315 = arith.constant 3 : index
    %c0_316 = arith.constant 0 : index
    %c0_317 = arith.constant 0 : index
    %322 = vector.load %arg12[%c3_315, %c0_316, %c0_317] : memref<10x5x32xbf16, #tpu.memory_space<vmem>>, vector<1x4x32xbf16>
    %323 = vector.shape_cast %322 : vector<1x4x32xbf16> to vector<4x32xbf16>
    %c3_318 = arith.constant 3 : index
    %c1_319 = arith.constant 1 : index
    %c0_320 = arith.constant 0 : index
    %324 = vector.load %arg12[%c3_318, %c1_319, %c0_320] : memref<10x5x32xbf16, #tpu.memory_space<vmem>>, vector<1x4x32xbf16>
    %325 = vector.shape_cast %324 : vector<1x4x32xbf16> to vector<4x32xbf16>
    %c4_321 = arith.constant 4 : index
    %c0_322 = arith.constant 0 : index
    %c0_323 = arith.constant 0 : index
    %326 = vector.load %arg12[%c4_321, %c0_322, %c0_323] : memref<10x5x32xbf16, #tpu.memory_space<vmem>>, vector<1x4x32xbf16>
    %327 = vector.shape_cast %326 : vector<1x4x32xbf16> to vector<4x32xbf16>
    %c4_324 = arith.constant 4 : index
    %c1_325 = arith.constant 1 : index
    %c0_326 = arith.constant 0 : index
    %328 = vector.load %arg12[%c4_324, %c1_325, %c0_326] : memref<10x5x32xbf16, #tpu.memory_space<vmem>>, vector<1x4x32xbf16>
    %329 = vector.shape_cast %328 : vector<1x4x32xbf16> to vector<4x32xbf16>
    %330 = tpu.concatenate %319, %321, %323, %325, %327, %329 in 1 : vector<4x32xbf16>, vector<4x32xbf16>, vector<4x32xbf16>, vector<4x32xbf16>, vector<4x32xbf16>, vector<4x32xbf16> -> vector<4x192xbf16>
    %cst_327 = arith.constant dense<0.000000e+00> : vector<4x32xf32>
    %331 = tpu.matmul %330, %280, %cst_327 {dimension_numbers = #tpu.dot_dimension_numbers<[1], [0], [0], [1], [0, 0, 1, 1], [], []>} : vector<4x192xbf16>, vector<192x32xbf16>, vector<4x32xf32> -> vector<4x32xf32>
    %332 = vector.broadcast %281 : vector<1x32xf32> to vector<4x32xf32>
    %333 = arith.addf %331, %332 : vector<4x32xf32>
    %cst_328 = arith.constant 2.000000e-01 : f32
    %334 = vector.broadcast %cst_328 : f32 to vector<4x32xf32>
    %335 = arith.mulf %334, %333 : vector<4x32xf32>
    %336 = arith.maximumf %333, %335 : vector<4x32xf32>
    %337 = vector.broadcast %282 : vector<1x32xf32> to vector<4x32xf32>
    %338 = arith.mulf %336, %337 : vector<4x32xf32>
    %339 = vector.broadcast %283 : vector<1x32xf32> to vector<4x32xf32>
    %340 = arith.addf %338, %339 : vector<4x32xf32>
    %341 = arith.truncf %340 : vector<4x32xf32> to vector<4x32xbf16>
    %cst_329 = arith.constant dense<0.000000e+00> : vector<2x32xf32>
    %342 = tpu.matmul %271, %341, %cst_329 {dimension_numbers = #tpu.dot_dimension_numbers<[1], [0], [0], [1], [0, 0, 1, 1], [], []>} : vector<2x4xbf16>, vector<4x32xbf16>, vector<2x32xf32> -> vector<2x32xf32>
    %343 = arith.truncf %342 : vector<2x32xf32> to vector<2x32xbf16>
    %cst_330 = arith.constant dense<0.000000e+00> : vector<2x32xf32>
    %344 = tpu.matmul %279, %341, %cst_330 {dimension_numbers = #tpu.dot_dimension_numbers<[1], [0], [0], [1], [0, 0, 1, 1], [], []>} : vector<2x4xbf16>, vector<4x32xbf16>, vector<2x32xf32> -> vector<2x32xf32>
    %345 = arith.truncf %344 : vector<2x32xf32> to vector<2x32xbf16>
    %c2_331 = arith.constant 2 : index
    %c0_332 = arith.constant 0 : index
    %c32_333 = arith.constant 32 : index
    %346 = vector.load %arg13[%c2_331, %c0_332, %c32_333] : memref<6x3x64xbf16, #tpu.memory_space<vmem>>, vector<1x2x32xbf16>
    %347 = vector.shape_cast %346 : vector<1x2x32xbf16> to vector<2x32xbf16>
    %348 = vector.shape_cast %343 : vector<2x32xbf16> to vector<1x2x32xbf16>
    tpu.vector_store %arg13[%c2_331, %c0_332, %c32_333], %348 {strides = array<i32>} : memref<6x3x64xbf16, #tpu.memory_space<vmem>>, vector<1x2x32xbf16>,
    %c2_334 = arith.constant 2 : index
    %c1_335 = arith.constant 1 : index
    %c0_336 = arith.constant 0 : index
    %349 = vector.load %arg13[%c2_334, %c1_335, %c0_336] : memref<6x3x64xbf16, #tpu.memory_space<vmem>>, vector<1x2x32xbf16>
    %350 = vector.shape_cast %349 : vector<1x2x32xbf16> to vector<2x32xbf16>
    %351 = vector.shape_cast %345 : vector<2x32xbf16> to vector<1x2x32xbf16>
    tpu.vector_store %arg13[%c2_334, %c1_335, %c0_336], %351 {strides = array<i32>} : memref<6x3x64xbf16, #tpu.memory_space<vmem>>, vector<1x2x32xbf16>,
    %c4_337 = arith.constant 4 : index
    %c0_338 = arith.constant 0 : index
    %c0_339 = arith.constant 0 : index
    %352 = vector.load %arg12[%c4_337, %c0_338, %c0_339] : memref<10x5x32xbf16, #tpu.memory_space<vmem>>, vector<1x4x32xbf16>
    %353 = vector.shape_cast %352 : vector<1x4x32xbf16> to vector<4x32xbf16>
    %c4_340 = arith.constant 4 : index
    %c1_341 = arith.constant 1 : index
    %c0_342 = arith.constant 0 : index
    %354 = vector.load %arg12[%c4_340, %c1_341, %c0_342] : memref<10x5x32xbf16, #tpu.memory_space<vmem>>, vector<1x4x32xbf16>
    %355 = vector.shape_cast %354 : vector<1x4x32xbf16> to vector<4x32xbf16>
    %c5_343 = arith.constant 5 : index
    %c0_344 = arith.constant 0 : index
    %c0_345 = arith.constant 0 : index
    %356 = vector.load %arg12[%c5_343, %c0_344, %c0_345] : memref<10x5x32xbf16, #tpu.memory_space<vmem>>, vector<1x4x32xbf16>
    %357 = vector.shape_cast %356 : vector<1x4x32xbf16> to vector<4x32xbf16>
    %c5_346 = arith.constant 5 : index
    %c1_347 = arith.constant 1 : index
    %c0_348 = arith.constant 0 : index
    %358 = vector.load %arg12[%c5_346, %c1_347, %c0_348] : memref<10x5x32xbf16, #tpu.memory_space<vmem>>, vector<1x4x32xbf16>
    %359 = vector.shape_cast %358 : vector<1x4x32xbf16> to vector<4x32xbf16>
    %c6_349 = arith.constant 6 : index
    %c0_350 = arith.constant 0 : index
    %c0_351 = arith.constant 0 : index
    %360 = vector.load %arg12[%c6_349, %c0_350, %c0_351] : memref<10x5x32xbf16, #tpu.memory_space<vmem>>, vector<1x4x32xbf16>
    %361 = vector.shape_cast %360 : vector<1x4x32xbf16> to vector<4x32xbf16>
    %c6_352 = arith.constant 6 : index
    %c1_353 = arith.constant 1 : index
    %c0_354 = arith.constant 0 : index
    %362 = vector.load %arg12[%c6_352, %c1_353, %c0_354] : memref<10x5x32xbf16, #tpu.memory_space<vmem>>, vector<1x4x32xbf16>
    %363 = vector.shape_cast %362 : vector<1x4x32xbf16> to vector<4x32xbf16>
    %364 = tpu.concatenate %353, %355, %357, %359, %361, %363 in 1 : vector<4x32xbf16>, vector<4x32xbf16>, vector<4x32xbf16>, vector<4x32xbf16>, vector<4x32xbf16>, vector<4x32xbf16> -> vector<4x192xbf16>
    %cst_355 = arith.constant dense<0.000000e+00> : vector<4x32xf32>
    %365 = tpu.matmul %364, %280, %cst_355 {dimension_numbers = #tpu.dot_dimension_numbers<[1], [0], [0], [1], [0, 0, 1, 1], [], []>} : vector<4x192xbf16>, vector<192x32xbf16>, vector<4x32xf32> -> vector<4x32xf32>
    %366 = vector.broadcast %281 : vector<1x32xf32> to vector<4x32xf32>
    %367 = arith.addf %365, %366 : vector<4x32xf32>
    %cst_356 = arith.constant 2.000000e-01 : f32
    %368 = vector.broadcast %cst_356 : f32 to vector<4x32xf32>
    %369 = arith.mulf %368, %367 : vector<4x32xf32>
    %370 = arith.maximumf %367, %369 : vector<4x32xf32>
    %371 = vector.broadcast %282 : vector<1x32xf32> to vector<4x32xf32>
    %372 = arith.mulf %370, %371 : vector<4x32xf32>
    %373 = vector.broadcast %283 : vector<1x32xf32> to vector<4x32xf32>
    %374 = arith.addf %372, %373 : vector<4x32xf32>
    %375 = arith.truncf %374 : vector<4x32xf32> to vector<4x32xbf16>
    %cst_357 = arith.constant dense<0.000000e+00> : vector<2x32xf32>
    %376 = tpu.matmul %271, %375, %cst_357 {dimension_numbers = #tpu.dot_dimension_numbers<[1], [0], [0], [1], [0, 0, 1, 1], [], []>} : vector<2x4xbf16>, vector<4x32xbf16>, vector<2x32xf32> -> vector<2x32xf32>
    %377 = arith.truncf %376 : vector<2x32xf32> to vector<2x32xbf16>
    %cst_358 = arith.constant dense<0.000000e+00> : vector<2x32xf32>
    %378 = tpu.matmul %279, %375, %cst_358 {dimension_numbers = #tpu.dot_dimension_numbers<[1], [0], [0], [1], [0, 0, 1, 1], [], []>} : vector<2x4xbf16>, vector<4x32xbf16>, vector<2x32xf32> -> vector<2x32xf32>
    %379 = arith.truncf %378 : vector<2x32xf32> to vector<2x32xbf16>
    %c3_359 = arith.constant 3 : index
    %c0_360 = arith.constant 0 : index
    %c32_361 = arith.constant 32 : index
    %380 = vector.load %arg13[%c3_359, %c0_360, %c32_361] : memref<6x3x64xbf16, #tpu.memory_space<vmem>>, vector<1x2x32xbf16>
    %381 = vector.shape_cast %380 : vector<1x2x32xbf16> to vector<2x32xbf16>
    %382 = vector.shape_cast %377 : vector<2x32xbf16> to vector<1x2x32xbf16>
    tpu.vector_store %arg13[%c3_359, %c0_360, %c32_361], %382 {strides = array<i32>} : memref<6x3x64xbf16, #tpu.memory_space<vmem>>, vector<1x2x32xbf16>,
    %c3_362 = arith.constant 3 : index
    %c1_363 = arith.constant 1 : index
    %c0_364 = arith.constant 0 : index
    %383 = vector.load %arg13[%c3_362, %c1_363, %c0_364] : memref<6x3x64xbf16, #tpu.memory_space<vmem>>, vector<1x2x32xbf16>
    %384 = vector.shape_cast %383 : vector<1x2x32xbf16> to vector<2x32xbf16>
    %385 = vector.shape_cast %379 : vector<2x32xbf16> to vector<1x2x32xbf16>
    tpu.vector_store %arg13[%c3_362, %c1_363, %c0_364], %385 {strides = array<i32>} : memref<6x3x64xbf16, #tpu.memory_space<vmem>>, vector<1x2x32xbf16>,
    %c6_365 = arith.constant 6 : index
    %c0_366 = arith.constant 0 : index
    %c0_367 = arith.constant 0 : index
    %386 = vector.load %arg12[%c6_365, %c0_366, %c0_367] : memref<10x5x32xbf16, #tpu.memory_space<vmem>>, vector<1x4x32xbf16>
    %387 = vector.shape_cast %386 : vector<1x4x32xbf16> to vector<4x32xbf16>
    %c6_368 = arith.constant 6 : index
    %c1_369 = arith.constant 1 : index
    %c0_370 = arith.constant 0 : index
    %388 = vector.load %arg12[%c6_368, %c1_369, %c0_370] : memref<10x5x32xbf16, #tpu.memory_space<vmem>>, vector<1x4x32xbf16>
    %389 = vector.shape_cast %388 : vector<1x4x32xbf16> to vector<4x32xbf16>
    %c7_371 = arith.constant 7 : index
    %c0_372 = arith.constant 0 : index
    %c0_373 = arith.constant 0 : index
    %390 = vector.load %arg12[%c7_371, %c0_372, %c0_373] : memref<10x5x32xbf16, #tpu.memory_space<vmem>>, vector<1x4x32xbf16>
    %391 = vector.shape_cast %390 : vector<1x4x32xbf16> to vector<4x32xbf16>
    %c7_374 = arith.constant 7 : index
    %c1_375 = arith.constant 1 : index
    %c0_376 = arith.constant 0 : index
    %392 = vector.load %arg12[%c7_374, %c1_375, %c0_376] : memref<10x5x32xbf16, #tpu.memory_space<vmem>>, vector<1x4x32xbf16>
    %393 = vector.shape_cast %392 : vector<1x4x32xbf16> to vector<4x32xbf16>
    %c8_377 = arith.constant 8 : index
    %c0_378 = arith.constant 0 : index
    %c0_379 = arith.constant 0 : index
    %394 = vector.load %arg12[%c8_377, %c0_378, %c0_379] : memref<10x5x32xbf16, #tpu.memory_space<vmem>>, vector<1x4x32xbf16>
    %395 = vector.shape_cast %394 : vector<1x4x32xbf16> to vector<4x32xbf16>
    %c8_380 = arith.constant 8 : index
    %c1_381 = arith.constant 1 : index
    %c0_382 = arith.constant 0 : index
    %396 = vector.load %arg12[%c8_380, %c1_381, %c0_382] : memref<10x5x32xbf16, #tpu.memory_space<vmem>>, vector<1x4x32xbf16>
    %397 = vector.shape_cast %396 : vector<1x4x32xbf16> to vector<4x32xbf16>
    %398 = tpu.concatenate %387, %389, %391, %393, %395, %397 in 1 : vector<4x32xbf16>, vector<4x32xbf16>, vector<4x32xbf16>, vector<4x32xbf16>, vector<4x32xbf16>, vector<4x32xbf16> -> vector<4x192xbf16>
    %cst_383 = arith.constant dense<0.000000e+00> : vector<4x32xf32>
    %399 = tpu.matmul %398, %280, %cst_383 {dimension_numbers = #tpu.dot_dimension_numbers<[1], [0], [0], [1], [0, 0, 1, 1], [], []>} : vector<4x192xbf16>, vector<192x32xbf16>, vector<4x32xf32> -> vector<4x32xf32>
    %400 = vector.broadcast %281 : vector<1x32xf32> to vector<4x32xf32>
    %401 = arith.addf %399, %400 : vector<4x32xf32>
    %cst_384 = arith.constant 2.000000e-01 : f32
    %402 = vector.broadcast %cst_384 : f32 to vector<4x32xf32>
    %403 = arith.mulf %402, %401 : vector<4x32xf32>
    %404 = arith.maximumf %401, %403 : vector<4x32xf32>
    %405 = vector.broadcast %282 : vector<1x32xf32> to vector<4x32xf32>
    %406 = arith.mulf %404, %405 : vector<4x32xf32>
    %407 = vector.broadcast %283 : vector<1x32xf32> to vector<4x32xf32>
    %408 = arith.addf %406, %407 : vector<4x32xf32>
    %409 = arith.truncf %408 : vector<4x32xf32> to vector<4x32xbf16>
    %cst_385 = arith.constant dense<0.000000e+00> : vector<2x32xf32>
    %410 = tpu.matmul %271, %409, %cst_385 {dimension_numbers = #tpu.dot_dimension_numbers<[1], [0], [0], [1], [0, 0, 1, 1], [], []>} : vector<2x4xbf16>, vector<4x32xbf16>, vector<2x32xf32> -> vector<2x32xf32>
    %411 = arith.truncf %410 : vector<2x32xf32> to vector<2x32xbf16>
    %cst_386 = arith.constant dense<0.000000e+00> : vector<2x32xf32>
    %412 = tpu.matmul %279, %409, %cst_386 {dimension_numbers = #tpu.dot_dimension_numbers<[1], [0], [0], [1], [0, 0, 1, 1], [], []>} : vector<2x4xbf16>, vector<4x32xbf16>, vector<2x32xf32> -> vector<2x32xf32>
    %413 = arith.truncf %412 : vector<2x32xf32> to vector<2x32xbf16>
    %c4_387 = arith.constant 4 : index
    %c0_388 = arith.constant 0 : index
    %c32_389 = arith.constant 32 : index
    %414 = vector.load %arg13[%c4_387, %c0_388, %c32_389] : memref<6x3x64xbf16, #tpu.memory_space<vmem>>, vector<1x2x32xbf16>
    %415 = vector.shape_cast %414 : vector<1x2x32xbf16> to vector<2x32xbf16>
    %416 = vector.shape_cast %411 : vector<2x32xbf16> to vector<1x2x32xbf16>
    tpu.vector_store %arg13[%c4_387, %c0_388, %c32_389], %416 {strides = array<i32>} : memref<6x3x64xbf16, #tpu.memory_space<vmem>>, vector<1x2x32xbf16>,
    %c4_390 = arith.constant 4 : index
    %c1_391 = arith.constant 1 : index
    %c0_392 = arith.constant 0 : index
    %417 = vector.load %arg13[%c4_390, %c1_391, %c0_392] : memref<6x3x64xbf16, #tpu.memory_space<vmem>>, vector<1x2x32xbf16>
    %418 = vector.shape_cast %417 : vector<1x2x32xbf16> to vector<2x32xbf16>
    %419 = vector.shape_cast %413 : vector<2x32xbf16> to vector<1x2x32xbf16>
    tpu.vector_store %arg13[%c4_390, %c1_391, %c0_392], %419 {strides = array<i32>} : memref<6x3x64xbf16, #tpu.memory_space<vmem>>, vector<1x2x32xbf16>,
    %c0_393 = arith.constant 0 : index
    %c0_394 = arith.constant 0 : index
    %420 = vector.load %arg6[%c0_393, %c0_394] : memref<384x64xbf16, #tpu.memory_space<vmem>>, vector<384x64xbf16>
    %c0_395 = arith.constant 0 : index
    %c0_396 = arith.constant 0 : index
    %421 = vector.load %arg7[%c0_395, %c0_396] : memref<3x64xf32, #tpu.memory_space<vmem>>, vector<1x64xf32>
    %c1_397 = arith.constant 1 : index
    %c0_398 = arith.constant 0 : index
    %422 = vector.load %arg7[%c1_397, %c0_398] : memref<3x64xf32, #tpu.memory_space<vmem>>, vector<1x64xf32>
    %c2_399 = arith.constant 2 : index
    %c0_400 = arith.constant 0 : index
    %423 = vector.load %arg7[%c2_399, %c0_400] : memref<3x64xf32, #tpu.memory_space<vmem>>, vector<1x64xf32>
    %c0_401 = arith.constant 0 : index
    %c0_402 = arith.constant 0 : index
    %c0_403 = arith.constant 0 : index
    %424 = vector.load %arg13[%c0_401, %c0_402, %c0_403] : memref<6x3x64xbf16, #tpu.memory_space<vmem>>, vector<1x2x64xbf16>
    %425 = vector.shape_cast %424 : vector<1x2x64xbf16> to vector<2x64xbf16>
    %c0_404 = arith.constant 0 : index
    %c1_405 = arith.constant 1 : index
    %c0_406 = arith.constant 0 : index
    %426 = vector.load %arg13[%c0_404, %c1_405, %c0_406] : memref<6x3x64xbf16, #tpu.memory_space<vmem>>, vector<1x2x64xbf16>
    %427 = vector.shape_cast %426 : vector<1x2x64xbf16> to vector<2x64xbf16>
    %c1_407 = arith.constant 1 : index
    %c0_408 = arith.constant 0 : index
    %c0_409 = arith.constant 0 : index
    %428 = vector.load %arg13[%c1_407, %c0_408, %c0_409] : memref<6x3x64xbf16, #tpu.memory_space<vmem>>, vector<1x2x64xbf16>
    %429 = vector.shape_cast %428 : vector<1x2x64xbf16> to vector<2x64xbf16>
    %c1_410 = arith.constant 1 : index
    %c1_411 = arith.constant 1 : index
    %c0_412 = arith.constant 0 : index
    %430 = vector.load %arg13[%c1_410, %c1_411, %c0_412] : memref<6x3x64xbf16, #tpu.memory_space<vmem>>, vector<1x2x64xbf16>
    %431 = vector.shape_cast %430 : vector<1x2x64xbf16> to vector<2x64xbf16>
    %c2_413 = arith.constant 2 : index
    %c0_414 = arith.constant 0 : index
    %c0_415 = arith.constant 0 : index
    %432 = vector.load %arg13[%c2_413, %c0_414, %c0_415] : memref<6x3x64xbf16, #tpu.memory_space<vmem>>, vector<1x2x64xbf16>
    %433 = vector.shape_cast %432 : vector<1x2x64xbf16> to vector<2x64xbf16>
    %c2_416 = arith.constant 2 : index
    %c1_417 = arith.constant 1 : index
    %c0_418 = arith.constant 0 : index
    %434 = vector.load %arg13[%c2_416, %c1_417, %c0_418] : memref<6x3x64xbf16, #tpu.memory_space<vmem>>, vector<1x2x64xbf16>
    %435 = vector.shape_cast %434 : vector<1x2x64xbf16> to vector<2x64xbf16>
    %436 = tpu.concatenate %425, %427, %429, %431, %433, %435 in 1 : vector<2x64xbf16>, vector<2x64xbf16>, vector<2x64xbf16>, vector<2x64xbf16>, vector<2x64xbf16>, vector<2x64xbf16> -> vector<2x384xbf16>
    %cst_419 = arith.constant dense<0.000000e+00> : vector<2x64xf32>
    %437 = tpu.matmul %436, %420, %cst_419 {dimension_numbers = #tpu.dot_dimension_numbers<[1], [0], [0], [1], [0, 0, 1, 1], [], []>} : vector<2x384xbf16>, vector<384x64xbf16>, vector<2x64xf32> -> vector<2x64xf32>
    %438 = vector.broadcast %421 : vector<1x64xf32> to vector<2x64xf32>
    %439 = arith.addf %437, %438 : vector<2x64xf32>
    %cst_420 = arith.constant 2.000000e-01 : f32
    %440 = vector.broadcast %cst_420 : f32 to vector<2x64xf32>
    %441 = arith.mulf %440, %439 : vector<2x64xf32>
    %442 = arith.maximumf %439, %441 : vector<2x64xf32>
    %443 = vector.broadcast %422 : vector<1x64xf32> to vector<2x64xf32>
    %444 = arith.mulf %442, %443 : vector<2x64xf32>
    %445 = vector.broadcast %423 : vector<1x64xf32> to vector<2x64xf32>
    %446 = arith.addf %444, %445 : vector<2x64xf32>
    %447 = arith.truncf %446 : vector<2x64xf32> to vector<2x64xbf16>
    %448 = vector.extract_strided_slice %447 {offsets = [0, 0], sizes = [1, 64], strides = [1, 1]} : vector<2x64xbf16> to vector<1x64xbf16>
    %449 = vector.extract_strided_slice %447 {offsets = [1, 0], sizes = [1, 64], strides = [1, 1]} : vector<2x64xbf16> to vector<1x64xbf16>
    %c1_421 = arith.constant 1 : index
    %c0_422 = arith.constant 0 : index
    %c64 = arith.constant 64 : index
    %450 = vector.load %arg14[%c1_421, %c0_422, %c64] : memref<4x2x128xbf16, #tpu.memory_space<vmem>>, vector<1x1x64xbf16>
    %451 = vector.shape_cast %450 : vector<1x1x64xbf16> to vector<1x64xbf16>
    %452 = vector.shape_cast %448 : vector<1x64xbf16> to vector<1x1x64xbf16>
    tpu.vector_store %arg14[%c1_421, %c0_422, %c64], %452 {strides = array<i32>} : memref<4x2x128xbf16, #tpu.memory_space<vmem>>, vector<1x1x64xbf16>,
    %c1_423 = arith.constant 1 : index
    %c1_424 = arith.constant 1 : index
    %c0_425 = arith.constant 0 : index
    %453 = vector.load %arg14[%c1_423, %c1_424, %c0_425] : memref<4x2x128xbf16, #tpu.memory_space<vmem>>, vector<1x1x64xbf16>
    %454 = vector.shape_cast %453 : vector<1x1x64xbf16> to vector<1x64xbf16>
    %455 = vector.shape_cast %449 : vector<1x64xbf16> to vector<1x1x64xbf16>
    tpu.vector_store %arg14[%c1_423, %c1_424, %c0_425], %455 {strides = array<i32>} : memref<4x2x128xbf16, #tpu.memory_space<vmem>>, vector<1x1x64xbf16>,
    %c2_426 = arith.constant 2 : index
    %c0_427 = arith.constant 0 : index
    %c0_428 = arith.constant 0 : index
    %456 = vector.load %arg13[%c2_426, %c0_427, %c0_428] : memref<6x3x64xbf16, #tpu.memory_space<vmem>>, vector<1x2x64xbf16>
    %457 = vector.shape_cast %456 : vector<1x2x64xbf16> to vector<2x64xbf16>
    %c2_429 = arith.constant 2 : index
    %c1_430 = arith.constant 1 : index
    %c0_431 = arith.constant 0 : index
    %458 = vector.load %arg13[%c2_429, %c1_430, %c0_431] : memref<6x3x64xbf16, #tpu.memory_space<vmem>>, vector<1x2x64xbf16>
    %459 = vector.shape_cast %458 : vector<1x2x64xbf16> to vector<2x64xbf16>
    %c3_432 = arith.constant 3 : index
    %c0_433 = arith.constant 0 : index
    %c0_434 = arith.constant 0 : index
    %460 = vector.load %arg13[%c3_432, %c0_433, %c0_434] : memref<6x3x64xbf16, #tpu.memory_space<vmem>>, vector<1x2x64xbf16>
    %461 = vector.shape_cast %460 : vector<1x2x64xbf16> to vector<2x64xbf16>
    %c3_435 = arith.constant 3 : index
    %c1_436 = arith.constant 1 : index
    %c0_437 = arith.constant 0 : index
    %462 = vector.load %arg13[%c3_435, %c1_436, %c0_437] : memref<6x3x64xbf16, #tpu.memory_space<vmem>>, vector<1x2x64xbf16>
    %463 = vector.shape_cast %462 : vector<1x2x64xbf16> to vector<2x64xbf16>
    %c4_438 = arith.constant 4 : index
    %c0_439 = arith.constant 0 : index
    %c0_440 = arith.constant 0 : index
    %464 = vector.load %arg13[%c4_438, %c0_439, %c0_440] : memref<6x3x64xbf16, #tpu.memory_space<vmem>>, vector<1x2x64xbf16>
    %465 = vector.shape_cast %464 : vector<1x2x64xbf16> to vector<2x64xbf16>
    %c4_441 = arith.constant 4 : index
    %c1_442 = arith.constant 1 : index
    %c0_443 = arith.constant 0 : index
    %466 = vector.load %arg13[%c4_441, %c1_442, %c0_443] : memref<6x3x64xbf16, #tpu.memory_space<vmem>>, vector<1x2x64xbf16>
    %467 = vector.shape_cast %466 : vector<1x2x64xbf16> to vector<2x64xbf16>
    %468 = tpu.concatenate %457, %459, %461, %463, %465, %467 in 1 : vector<2x64xbf16>, vector<2x64xbf16>, vector<2x64xbf16>, vector<2x64xbf16>, vector<2x64xbf16>, vector<2x64xbf16> -> vector<2x384xbf16>
    %cst_444 = arith.constant dense<0.000000e+00> : vector<2x64xf32>
    %469 = tpu.matmul %468, %420, %cst_444 {dimension_numbers = #tpu.dot_dimension_numbers<[1], [0], [0], [1], [0, 0, 1, 1], [], []>} : vector<2x384xbf16>, vector<384x64xbf16>, vector<2x64xf32> -> vector<2x64xf32>
    %470 = vector.broadcast %421 : vector<1x64xf32> to vector<2x64xf32>
    %471 = arith.addf %469, %470 : vector<2x64xf32>
    %cst_445 = arith.constant 2.000000e-01 : f32
    %472 = vector.broadcast %cst_445 : f32 to vector<2x64xf32>
    %473 = arith.mulf %472, %471 : vector<2x64xf32>
    %474 = arith.maximumf %471, %473 : vector<2x64xf32>
    %475 = vector.broadcast %422 : vector<1x64xf32> to vector<2x64xf32>
    %476 = arith.mulf %474, %475 : vector<2x64xf32>
    %477 = vector.broadcast %423 : vector<1x64xf32> to vector<2x64xf32>
    %478 = arith.addf %476, %477 : vector<2x64xf32>
    %479 = arith.truncf %478 : vector<2x64xf32> to vector<2x64xbf16>
    %480 = vector.extract_strided_slice %479 {offsets = [0, 0], sizes = [1, 64], strides = [1, 1]} : vector<2x64xbf16> to vector<1x64xbf16>
    %481 = vector.extract_strided_slice %479 {offsets = [1, 0], sizes = [1, 64], strides = [1, 1]} : vector<2x64xbf16> to vector<1x64xbf16>
    %c2_446 = arith.constant 2 : index
    %c0_447 = arith.constant 0 : index
    %c64_448 = arith.constant 64 : index
    %482 = vector.load %arg14[%c2_446, %c0_447, %c64_448] : memref<4x2x128xbf16, #tpu.memory_space<vmem>>, vector<1x1x64xbf16>
    %483 = vector.shape_cast %482 : vector<1x1x64xbf16> to vector<1x64xbf16>
    %484 = vector.shape_cast %480 : vector<1x64xbf16> to vector<1x1x64xbf16>
    tpu.vector_store %arg14[%c2_446, %c0_447, %c64_448], %484 {strides = array<i32>} : memref<4x2x128xbf16, #tpu.memory_space<vmem>>, vector<1x1x64xbf16>,
    %c2_449 = arith.constant 2 : index
    %c1_450 = arith.constant 1 : index
    %c0_451 = arith.constant 0 : index
    %485 = vector.load %arg14[%c2_449, %c1_450, %c0_451] : memref<4x2x128xbf16, #tpu.memory_space<vmem>>, vector<1x1x64xbf16>
    %486 = vector.shape_cast %485 : vector<1x1x64xbf16> to vector<1x64xbf16>
    %487 = vector.shape_cast %481 : vector<1x64xbf16> to vector<1x1x64xbf16>
    tpu.vector_store %arg14[%c2_449, %c1_450, %c0_451], %487 {strides = array<i32>} : memref<4x2x128xbf16, #tpu.memory_space<vmem>>, vector<1x1x64xbf16>,
    %cst_452 = arith.constant 0.000000e+00 : f32
    %488 = vector.broadcast %cst_452 : f32 to vector<1x1xf32>
    %c0_453 = arith.constant 0 : index
    %c0_454 = arith.constant 0 : index
    %489 = vector.load %arg8[%c0_453, %c0_454] : memref<768x128xbf16, #tpu.memory_space<vmem>>, vector<768x128xbf16>
    %c0_455 = arith.constant 0 : index
    %c0_456 = arith.constant 0 : index
    %490 = vector.load %arg9[%c0_455, %c0_456] : memref<3x128xf32, #tpu.memory_space<vmem>>, vector<1x128xf32>
    %c1_457 = arith.constant 1 : index
    %c0_458 = arith.constant 0 : index
    %491 = vector.load %arg9[%c1_457, %c0_458] : memref<3x128xf32, #tpu.memory_space<vmem>>, vector<1x128xf32>
    %c2_459 = arith.constant 2 : index
    %c0_460 = arith.constant 0 : index
    %492 = vector.load %arg9[%c2_459, %c0_460] : memref<3x128xf32, #tpu.memory_space<vmem>>, vector<1x128xf32>
    %c0_461 = arith.constant 0 : index
    %c0_462 = arith.constant 0 : index
    %c0_463 = arith.constant 0 : index
    %493 = vector.load %arg14[%c0_461, %c0_462, %c0_463] : memref<4x2x128xbf16, #tpu.memory_space<vmem>>, vector<1x1x128xbf16>
    %494 = vector.shape_cast %493 : vector<1x1x128xbf16> to vector<1x128xbf16>
    %c0_464 = arith.constant 0 : index
    %c1_465 = arith.constant 1 : index
    %c0_466 = arith.constant 0 : index
    %495 = vector.load %arg14[%c0_464, %c1_465, %c0_466] : memref<4x2x128xbf16, #tpu.memory_space<vmem>>, vector<1x1x128xbf16>
    %496 = vector.shape_cast %495 : vector<1x1x128xbf16> to vector<1x128xbf16>
    %c1_467 = arith.constant 1 : index
    %c0_468 = arith.constant 0 : index
    %c0_469 = arith.constant 0 : index
    %497 = vector.load %arg14[%c1_467, %c0_468, %c0_469] : memref<4x2x128xbf16, #tpu.memory_space<vmem>>, vector<1x1x128xbf16>
    %498 = vector.shape_cast %497 : vector<1x1x128xbf16> to vector<1x128xbf16>
    %c1_470 = arith.constant 1 : index
    %c1_471 = arith.constant 1 : index
    %c0_472 = arith.constant 0 : index
    %499 = vector.load %arg14[%c1_470, %c1_471, %c0_472] : memref<4x2x128xbf16, #tpu.memory_space<vmem>>, vector<1x1x128xbf16>
    %500 = vector.shape_cast %499 : vector<1x1x128xbf16> to vector<1x128xbf16>
    %c2_473 = arith.constant 2 : index
    %c0_474 = arith.constant 0 : index
    %c0_475 = arith.constant 0 : index
    %501 = vector.load %arg14[%c2_473, %c0_474, %c0_475] : memref<4x2x128xbf16, #tpu.memory_space<vmem>>, vector<1x1x128xbf16>
    %502 = vector.shape_cast %501 : vector<1x1x128xbf16> to vector<1x128xbf16>
    %c2_476 = arith.constant 2 : index
    %c1_477 = arith.constant 1 : index
    %c0_478 = arith.constant 0 : index
    %503 = vector.load %arg14[%c2_476, %c1_477, %c0_478] : memref<4x2x128xbf16, #tpu.memory_space<vmem>>, vector<1x1x128xbf16>
    %504 = vector.shape_cast %503 : vector<1x1x128xbf16> to vector<1x128xbf16>
    %505 = tpu.concatenate %494, %496, %498, %500, %502, %504 in 1 : vector<1x128xbf16>, vector<1x128xbf16>, vector<1x128xbf16>, vector<1x128xbf16>, vector<1x128xbf16>, vector<1x128xbf16> -> vector<1x768xbf16>
    %cst_479 = arith.constant dense<0.000000e+00> : vector<1x128xf32>
    %506 = tpu.matmul %505, %489, %cst_479 {dimension_numbers = #tpu.dot_dimension_numbers<[1], [0], [0], [1], [0, 0, 1, 1], [], []>} : vector<1x768xbf16>, vector<768x128xbf16>, vector<1x128xf32> -> vector<1x128xf32>
    %507 = arith.addf %506, %490 : vector<1x128xf32>
    %cst_480 = arith.constant 2.000000e-01 : f32
    %508 = vector.broadcast %cst_480 : f32 to vector<1x128xf32>
    %509 = arith.mulf %508, %507 : vector<1x128xf32>
    %510 = arith.maximumf %507, %509 : vector<1x128xf32>
    %511 = arith.mulf %510, %491 : vector<1x128xf32>
    %512 = arith.addf %511, %492 : vector<1x128xf32>
    %c0_481 = arith.constant 0 : index
    %c0_482 = arith.constant 0 : index
    %513 = vector.load %arg10[%c0_481, %c0_482] : memref<128x1xf32, #tpu.memory_space<vmem>>, vector<128x1xf32>
    %cst_483 = arith.constant dense<0.000000e+00> : vector<1x1xf32>
    %514 = tpu.matmul %512, %513, %cst_483 {dimension_numbers = #tpu.dot_dimension_numbers<[1], [0], [0], [1], [0, 0, 1, 1], [], []>} : vector<1x128xf32>, vector<128x1xf32>, vector<1x1xf32> -> vector<1x1xf32>
    %515 = arith.addf %488, %514 : vector<1x1xf32>
    %c0_484 = arith.constant 0 : index
    %c0_485 = arith.constant 0 : index
    %c0_486 = arith.constant 0 : index
    %516 = vector.load %arg11[%c0_484, %c0_485, %c0_486] : memref<1x1x1xf32, #tpu.memory_space<vmem>>, vector<1x1x1xf32>
    %517 = vector.shape_cast %516 : vector<1x1x1xf32> to vector<1x1xf32>
    %518 = vector.shape_cast %515 : vector<1x1xf32> to vector<1x1x1xf32>
    tpu.vector_store %arg11[%c0_484, %c0_485, %c0_486], %518 {strides = array<i32>} : memref<1x1x1xf32, #tpu.memory_space<vmem>>, vector<1x1x1xf32>,
    return
  }
  func.func @transform_0(%arg0: i32) -> (i32, i32, i32, i32) {
    %c0_i32 = arith.constant 0 : i32
    %c0_i32_0 = arith.constant 0 : i32
    %c0_i32_1 = arith.constant 0 : i32
    %c0_i32_2 = arith.constant 0 : i32
    return %arg0, %c0_i32, %c0_i32_0, %c0_i32_1 : i32, i32, i32, i32
  }
  func.func @transform_1(%arg0: i32) -> (i32, i32) {
    %c0_i32 = arith.constant 0 : i32
    %c0_i32_0 = arith.constant 0 : i32
    %c0_i32_1 = arith.constant 0 : i32
    return %c0_i32, %c0_i32_0 : i32, i32
  }
  func.func @transform_2(%arg0: i32) -> (i32, i32) {
    %c0_i32 = arith.constant 0 : i32
    %c0_i32_0 = arith.constant 0 : i32
    %c0_i32_1 = arith.constant 0 : i32
    return %c0_i32, %c0_i32_0 : i32, i32
  }
  func.func @transform_3(%arg0: i32) -> (i32, i32) {
    %c0_i32 = arith.constant 0 : i32
    %c0_i32_0 = arith.constant 0 : i32
    %c0_i32_1 = arith.constant 0 : i32
    return %c0_i32, %c0_i32_0 : i32, i32
  }
  func.func @transform_4(%arg0: i32) -> (i32, i32) {
    %c0_i32 = arith.constant 0 : i32
    %c0_i32_0 = arith.constant 0 : i32
    %c0_i32_1 = arith.constant 0 : i32
    return %c0_i32, %c0_i32_0 : i32, i32
  }
  func.func @transform_5(%arg0: i32) -> (i32, i32) {
    %c0_i32 = arith.constant 0 : i32
    %c0_i32_0 = arith.constant 0 : i32
    %c0_i32_1 = arith.constant 0 : i32
    return %c0_i32, %c0_i32_0 : i32, i32
  }
  func.func @transform_6(%arg0: i32) -> (i32, i32) {
    %c0_i32 = arith.constant 0 : i32
    %c0_i32_0 = arith.constant 0 : i32
    %c0_i32_1 = arith.constant 0 : i32
    return %c0_i32, %c0_i32_0 : i32, i32
  }
  func.func @transform_7(%arg0: i32) -> (i32, i32) {
    %c0_i32 = arith.constant 0 : i32
    %c0_i32_0 = arith.constant 0 : i32
    %c0_i32_1 = arith.constant 0 : i32
    return %c0_i32, %c0_i32_0 : i32, i32
  }
  func.func @transform_8(%arg0: i32) -> (i32, i32) {
    %c0_i32 = arith.constant 0 : i32
    %c0_i32_0 = arith.constant 0 : i32
    %c0_i32_1 = arith.constant 0 : i32
    return %c0_i32, %c0_i32_0 : i32, i32
  }
  func.func @transform_9(%arg0: i32) -> (i32, i32) {
    %c0_i32 = arith.constant 0 : i32
    %c0_i32_0 = arith.constant 0 : i32
    %c0_i32_1 = arith.constant 0 : i32
    return %c0_i32, %c0_i32_0 : i32, i32
  }
  func.func @transform_10(%arg0: i32) -> (i32, i32, i32) {
    %c0_i32 = arith.constant 0 : i32
    %c0_i32_0 = arith.constant 0 : i32
    %c0_i32_1 = arith.constant 0 : i32
    return %arg0, %c0_i32, %c0_i32_0 : i32, i32, i32
  }
}

</mosaic_0001>

<llo_original>
// kernel: discriminator_forward.1
$region0: #{discriminator_forward.1}
  #allocation0 [shape = 'u32[]', space=smem, size = 0x4, offset = 0x4, fixed_abs, tag = 'smem constant byte address 0x4 - core index']
  #allocation1 [shape = 'u32[72,128]{1,0:T(1,128)}', space=vmem, size = 0x9000, scoped, tag = 'internal scratch']
  #allocation2 [shape = 'bf16[10,5,32]{2,1,0:T(8,128)(2,1)}', space=vmem, size = 0x5000, scoped, tag = 'scratch operand']
  #allocation3 [shape = 'bf16[6,3,64]{2,1,0:T(4,128)(2,1)}', space=vmem, size = 0x1800, scoped, tag = 'scratch operand']
  #allocation4 [shape = 'bf16[4,2,128]{2,1,0:T(2,128)(2,1)}', space=vmem, size = 0x800, scoped, tag = 'scratch operand']
  %s0 = inlined_call_operand.vmem [shape: bf16[2,18,9,8], index: 0, kind: input, shape index: {}]
  %s1 = inlined_call_operand.vmem [shape: bf16[48,16], index: 1, kind: input, shape index: {}]
  %s2 = inlined_call_operand.vmem [shape: f32[3,16], index: 2, kind: input, shape index: {}]
  %s3 = inlined_call_operand.vmem [shape: bf16[192,32], index: 3, kind: input, shape index: {}]
  %s4 = inlined_call_operand.vmem [shape: f32[3,32], index: 4, kind: input, shape index: {}]
  %s5 = inlined_call_operand.vmem [shape: bf16[384,64], index: 5, kind: input, shape index: {}]
  %s6 = inlined_call_operand.vmem [shape: f32[3,64], index: 6, kind: input, shape index: {}]
  %s7 = inlined_call_operand.vmem [shape: bf16[768,128], index: 7, kind: input, shape index: {}]
  %s8 = inlined_call_operand.vmem [shape: f32[3,128], index: 8, kind: input, shape index: {}]
  %s9 = inlined_call_operand.vmem [shape: f32[128,1], index: 9, kind: input, shape index: {}]
  %s10 = inlined_call_operand.vmem [shape: f32[2,1,1], index: 10, kind: output, shape index: {}]
  %s11 = sld [smem:[#allocation0]]
  $region73: #{discriminator_forward.1} parent=0
    _
  %s13 = ssub.s32 1, %s11
  %s14 = scalar_select 0, %s13, %s11
  loop: start=0, step=1, limit=4
  $region2: #{discriminator_forward.1} parent=0 // loop_pre_header
    _
  $region3: #{discriminator_forward.1} parent=0 // loop_header
    %s16 = sphi 0, %s20
    %p17 = scmp.ge.s32.totalorder %s16, 4
    %s26 = sphi 0, %s28
    %s29 = sphi 0, %s26
    %s30 = sphi 0, %s29
    %s46 = sphi 0, %s30
    %s50 = sphi 0, %s50
    %s52 = sphi 0, %s50
    %s53 = sphi 0, %s52
    %s67 = sphi 0, %s53
    %s71 = sphi 0, %s71
    %s73 = sphi 0, %s71
    %s74 = sphi 0, %s73
    %s88 = sphi 0, %s74
    %s92 = sphi 0, %s92
    %s94 = sphi 0, %s92
    %s95 = sphi 0, %s94
    %s109 = sphi 0, %s95
    %s113 = sphi 0, %s113
    %s115 = sphi 0, %s113
    %s116 = sphi 0, %s115
    %s130 = sphi 0, %s116
    %s134 = sphi 0, %s134
    %s136 = sphi 0, %s134
    %s137 = sphi 0, %s136
    %s151 = sphi 0, %s137
    %s155 = sphi 0, %s155
    %s157 = sphi 0, %s155
    %s158 = sphi 0, %s157
    %s172 = sphi 0, %s158
    %s176 = sphi 0, %s176
    %s178 = sphi 0, %s176
    %s179 = sphi 0, %s178
    %s193 = sphi 0, %s179
    %s197 = sphi 0, %s197
    %s199 = sphi 0, %s197
    %s200 = sphi 0, %s199
    %s214 = sphi 0, %s200
    %s218 = sphi 0, %s218
    %s220 = sphi 0, %s218
    %s221 = sphi 0, %s220
    %s235 = sphi 0, %s221
    %s241 = sphi 0, %s243
    %s244 = sphi 0, %s241
    %s245 = sphi 0, %s244
    %s261 = sphi 0, %s245
  $region4: #{discriminator_forward.1} parent=0 // loop_header_branch
    %19 = sbr.rel (%p17) target = $region8
  $region5: #{discriminator_forward.1} parent=0 // loop_body
    %s21 = ssub.s32 %s16, 1
    %s22 = ssub.s32 %s16, 2
    %s23 = sadd.s32 %s16, 1
    %s24 = ssub.s32 %s16, %s23
    %p25 = scmp.eq.s32.totalorder %s24, 0
    %s27 = sadd.s32 %s26, 1
    %s28 = scalar_select %p25, %s26, %s27
    %p31 = pneg %p25
    %p32 = scmp.eq.s32.totalorder %s16, 1
    %p33 = por %p31, %p32
    %p34 = scmp.ne.s32.totalorder %s26, %s29
    %p35 = scmp.eq.s32.totalorder %s16, 0
    %p36 = por %p34, %p35
    %p37 = scmp.ne.s32.totalorder %s26, %s29
    %p38 = scmp.eq.s32.totalorder %s21, 1
    %p39 = por %p37, %p38
    %p40 = scmp.ne.s32.totalorder %s29, %s30
    %p41 = scmp.eq.s32.totalorder %s21, 0
    %p42 = por %p40, %p41
    %p43 = scmp.ne.s32.totalorder %s29, %s30
    %p44 = scmp.eq.s32.totalorder %s22, 1
    %p45 = por %p43, %p44
    %p47 = scmp.ne.s32.totalorder %s30, %s46
    %p48 = scmp.eq.s32.totalorder %s22, 0
    %p49 = por %p47, %p48
    %s51 = sadd.s32 %s50, 1
    %p54 = scmp.eq.s32.totalorder %s16, 1
    %p55 = scmp.ne.s32.totalorder %s50, %s52
    %p56 = scmp.eq.s32.totalorder %s16, 0
    %p57 = por %p55, %p56
    %p58 = scmp.ne.s32.totalorder %s50, %s52
    %p59 = scmp.eq.s32.totalorder %s21, 1
    %p60 = por %p58, %p59
    %p61 = scmp.ne.s32.totalorder %s52, %s53
    %p62 = scmp.eq.s32.totalorder %s21, 0
    %p63 = por %p61, %p62
    %p64 = scmp.ne.s32.totalorder %s52, %s53
    %p65 = scmp.eq.s32.totalorder %s22, 1
    %p66 = por %p64, %p65
    %p68 = scmp.ne.s32.totalorder %s53, %s67
    %p69 = scmp.eq.s32.totalorder %s22, 0
    %p70 = por %p68, %p69
    %s72 = sadd.s32 %s71, 1
    %p75 = scmp.eq.s32.totalorder %s16, 1
    %p76 = scmp.ne.s32.totalorder %s71, %s73
    %p77 = scmp.eq.s32.totalorder %s16, 0
    %p78 = por %p76, %p77
    %p79 = scmp.ne.s32.totalorder %s71, %s73
    %p80 = scmp.eq.s32.totalorder %s21, 1
    %p81 = por %p79, %p80
    %p82 = scmp.ne.s32.totalorder %s73, %s74
    %p83 = scmp.eq.s32.totalorder %s21, 0
    %p84 = por %p82, %p83
    %p85 = scmp.ne.s32.totalorder %s73, %s74
    %p86 = scmp.eq.s32.totalorder %s22, 1
    %p87 = por %p85, %p86
    %p89 = scmp.ne.s32.totalorder %s74, %s88
    %p90 = scmp.eq.s32.totalorder %s22, 0
    %p91 = por %p89, %p90
    %s93 = sadd.s32 %s92, 1
    %p96 = scmp.eq.s32.totalorder %s16, 1
    %p97 = scmp.ne.s32.totalorder %s92, %s94
    %p98 = scmp.eq.s32.totalorder %s16, 0
    %p99 = por %p97, %p98
    %p100 = scmp.ne.s32.totalorder %s92, %s94
    %p101 = scmp.eq.s32.totalorder %s21, 1
    %p102 = por %p100, %p101
    %p103 = scmp.ne.s32.totalorder %s94, %s95
    %p104 = scmp.eq.s32.totalorder %s21, 0
    %p105 = por %p103, %p104
    %p106 = scmp.ne.s32.totalorder %s94, %s95
    %p107 = scmp.eq.s32.totalorder %s22, 1
    %p108 = por %p106, %p107
    %p110 = scmp.ne.s32.totalorder %s95, %s109
    %p111 = scmp.eq.s32.totalorder %s22, 0
    %p112 = por %p110, %p111
    %s114 = sadd.s32 %s113, 1
    %p117 = scmp.eq.s32.totalorder %s16, 1
    %p118 = scmp.ne.s32.totalorder %s113, %s115
    %p119 = scmp.eq.s32.totalorder %s16, 0
    %p120 = por %p118, %p119
    %p121 = scmp.ne.s32.totalorder %s113, %s115
    %p122 = scmp.eq.s32.totalorder %s21, 1
    %p123 = por %p121, %p122
    %p124 = scmp.ne.s32.totalorder %s115, %s116
    %p125 = scmp.eq.s32.totalorder %s21, 0
    %p126 = por %p124, %p125
    %p127 = scmp.ne.s32.totalorder %s115, %s116
    %p128 = scmp.eq.s32.totalorder %s22, 1
    %p129 = por %p127, %p128
    %p131 = scmp.ne.s32.totalorder %s116, %s130
    %p132 = scmp.eq.s32.totalorder %s22, 0
    %p133 = por %p131, %p132
    %s135 = sadd.s32 %s134, 1
    %p138 = scmp.eq.s32.totalorder %s16, 1
    %p139 = scmp.ne.s32.totalorder %s134, %s136
    %p140 = scmp.eq.s32.totalorder %s16, 0
    %p141 = por %p139, %p140
    %p142 = scmp.ne.s32.totalorder %s134, %s136
    %p143 = scmp.eq.s32.totalorder %s21, 1
    %p144 = por %p142, %p143
    %p145 = scmp.ne.s32.totalorder %s136, %s137
    %p146 = scmp.eq.s32.totalorder %s21, 0
    %p147 = por %p145, %p146
    %p148 = scmp.ne.s32.totalorder %s136, %s137
    %p149 = scmp.eq.s32.totalorder %s22, 1
    %p150 = por %p148, %p149
    %p152 = scmp.ne.s32.totalorder %s137, %s151
    %p153 = scmp.eq.s32.totalorder %s22, 0
    %p154 = por %p152, %p153
    %s156 = sadd.s32 %s155, 1
    %p159 = scmp.eq.s32.totalorder %s16, 1
    %p160 = scmp.ne.s32.totalorder %s155, %s157
    %p161 = scmp.eq.s32.totalorder %s16, 0
    %p162 = por %p160, %p161
    %p163 = scmp.ne.s32.totalorder %s155, %s157
    %p164 = scmp.eq.s32.totalorder %s21, 1
    %p165 = por %p163, %p164
    %p166 = scmp.ne.s32.totalorder %s157, %s158
    %p167 = scmp.eq.s32.totalorder %s21, 0
    %p168 = por %p166, %p167
    %p169 = scmp.ne.s32.totalorder %s157, %s158
    %p170 = scmp.eq.s32.totalorder %s22, 1
    %p171 = por %p169, %p170
    %p173 = scmp.ne.s32.totalorder %s158, %s172
    %p174 = scmp.eq.s32.totalorder %s22, 0
    %p175 = por %p173, %p174
    %s177 = sadd.s32 %s176, 1
    %p180 = scmp.eq.s32.totalorder %s16, 1
    %p181 = scmp.ne.s32.totalorder %s176, %s178
    %p182 = scmp.eq.s32.totalorder %s16, 0
    %p183 = por %p181, %p182
    %p184 = scmp.ne.s32.totalorder %s176, %s178
    %p185 = scmp.eq.s32.totalorder %s21, 1
    %p186 = por %p184, %p185
    %p187 = scmp.ne.s32.totalorder %s178, %s179
    %p188 = scmp.eq.s32.totalorder %s21, 0
    %p189 = por %p187, %p188
    %p190 = scmp.ne.s32.totalorder %s178, %s179
    %p191 = scmp.eq.s32.totalorder %s22, 1
    %p192 = por %p190, %p191
    %p194 = scmp.ne.s32.totalorder %s179, %s193
    %p195 = scmp.eq.s32.totalorder %s22, 0
    %p196 = por %p194, %p195
    %s198 = sadd.s32 %s197, 1
    %p201 = scmp.eq.s32.totalorder %s16, 1
    %p202 = scmp.ne.s32.totalorder %s197, %s199
    %p203 = scmp.eq.s32.totalorder %s16, 0
    %p204 = por %p202, %p203
    %p205 = scmp.ne.s32.totalorder %s197, %s199
    %p206 = scmp.eq.s32.totalorder %s21, 1
    %p207 = por %p205, %p206
    %p208 = scmp.ne.s32.totalorder %s199, %s200
    %p209 = scmp.eq.s32.totalorder %s21, 0
    %p210 = por %p208, %p209
    %p211 = scmp.ne.s32.totalorder %s199, %s200
    %p212 = scmp.eq.s32.totalorder %s22, 1
    %p213 = por %p211, %p212
    %p215 = scmp.ne.s32.totalorder %s200, %s214
    %p216 = scmp.eq.s32.totalorder %s22, 0
    %p217 = por %p215, %p216
    %s219 = sadd.s32 %s218, 1
    %p222 = scmp.eq.s32.totalorder %s16, 1
    %p223 = scmp.ne.s32.totalorder %s218, %s220
    %p224 = scmp.eq.s32.totalorder %s16, 0
    %p225 = por %p223, %p224
    %p226 = scmp.ne.s32.totalorder %s218, %s220
    %p227 = scmp.eq.s32.totalorder %s21, 1
    %p228 = por %p226, %p227
    %p229 = scmp.ne.s32.totalorder %s220, %s221
    %p230 = scmp.eq.s32.totalorder %s21, 0
    %p231 = por %p229, %p230
    %p232 = scmp.ne.s32.totalorder %s220, %s221
    %p233 = scmp.eq.s32.totalorder %s22, 1
    %p234 = por %p232, %p233
    %p236 = scmp.ne.s32.totalorder %s221, %s235
    %p237 = scmp.eq.s32.totalorder %s22, 0
    %p238 = por %p236, %p237
    %s239 = ssub.s32 %s16, %s23
    %p240 = scmp.eq.s32.totalorder %s239, 0
    %s242 = sadd.s32 %s241, 1
    %s243 = scalar_select %p240, %s241, %s242
    %p246 = pneg %p240
    %p247 = scmp.eq.s32.totalorder %s16, 1
    %p248 = por %p246, %p247
    %p249 = scmp.ne.s32.totalorder %s241, %s244
    %p250 = scmp.eq.s32.totalorder %s16, 0
    %p251 = por %p249, %p250
    %p252 = scmp.ne.s32.totalorder %s241, %s244
    %p253 = scmp.eq.s32.totalorder %s21, 1
    %p254 = por %p252, %p253
    %p255 = scmp.ne.s32.totalorder %s244, %s245
    %p256 = scmp.eq.s32.totalorder %s21, 0
    %p257 = por %p255, %p256
    %p258 = scmp.ne.s32.totalorder %s244, %s245
    %p259 = scmp.eq.s32.totalorder %s22, 1
    %p260 = por %p258, %p259
    %p262 = scmp.ne.s32.totalorder %s245, %s261
    %p263 = scmp.eq.s32.totalorder %s22, 0
    %p264 = por %p262, %p263
    %p265 = scmp.le.s32.totalorder 1, %s16
    %p266 = scmp.lt.s32.totalorder %s16, 3
    %p267 = pnand %p265, %p266
    %p268 = pneg %p267
    // Predicated region
    $region9: #{discriminator_forward.1} parent=5 // pred_check
      _
    $region10: #{discriminator_forward.1} parent=5 // pred_check_branch
      %270 = sbr.rel (%p267) target = $region12
    $region11: #{discriminator_forward.1} parent=5 // pred_region
      %s271 = ssub.s32 %s16, 1
      // Predicated region
      $region13: #{discriminator_forward.1} parent=11 // pred_check
        %p272 = pneg %p63
      $region14: #{discriminator_forward.1} parent=11 // pred_check_branch
        %274 = sbr.rel (%p272) target = $region16
      $region15: #{discriminator_forward.1} parent=11 // pred_region
        _
      $region16: #{discriminator_forward.1} parent=11 // pred_fallthru
        _
      // Predicated region
      $region17: #{discriminator_forward.1} parent=11 // pred_check
        %p275 = pneg %p84
      $region18: #{discriminator_forward.1} parent=11 // pred_check_branch
        %277 = sbr.rel (%p275) target = $region20
      $region19: #{discriminator_forward.1} parent=11 // pred_region
        _
      $region20: #{discriminator_forward.1} parent=11 // pred_fallthru
        _
      // Predicated region
      $region21: #{discriminator_forward.1} parent=11 // pred_check
        %p278 = pneg %p105
      $region22: #{discriminator_forward.1} parent=11 // pred_check_branch
        %280 = sbr.rel (%p278) target = $region24
      $region23: #{discriminator_forward.1} parent=11 // pred_region
        _
      $region24: #{discriminator_forward.1} parent=11 // pred_fallthru
        _
      // Predicated region
      $region25: #{discriminator_forward.1} parent=11 // pred_check
        %p281 = pneg %p126
      $region26: #{discriminator_forward.1} parent=11 // pred_check_branch
        %283 = sbr.rel (%p281) target = $region28
      $region27: #{discriminator_forward.1} parent=11 // pred_region
        _
      $region28: #{discriminator_forward.1} parent=11 // pred_fallthru
        _
      // Predicated region
      $region29: #{discriminator_forward.1} parent=11 // pred_check
        %p284 = pneg %p147
      $region30: #{discriminator_forward.1} parent=11 // pred_check_branch
        %286 = sbr.rel (%p284) target = $region32
      $region31: #{discriminator_forward.1} parent=11 // pred_region
        _
      $region32: #{discriminator_forward.1} parent=11 // pred_fallthru
        _
      // Predicated region
      $region33: #{discriminator_forward.1} parent=11 // pred_check
        %p287 = pneg %p168
      $region34: #{discriminator_forward.1} parent=11 // pred_check_branch
        %289 = sbr.rel (%p287) target = $region36
      $region35: #{discriminator_forward.1} parent=11 // pred_region
        _
      $region36: #{discriminator_forward.1} parent=11 // pred_fallthru
        _
      // Predicated region
      $region37: #{discriminator_forward.1} parent=11 // pred_check
        %p290 = pneg %p189
      $region38: #{discriminator_forward.1} parent=11 // pred_check_branch
        %292 = sbr.rel (%p290) target = $region40
      $region39: #{discriminator_forward.1} parent=11 // pred_region
        _
      $region40: #{discriminator_forward.1} parent=11 // pred_fallthru
        _
      // Predicated region
      $region41: #{discriminator_forward.1} parent=11 // pred_check
        %p293 = pneg %p210
      $region42: #{discriminator_forward.1} parent=11 // pred_check_branch
        %295 = sbr.rel (%p293) target = $region44
      $region43: #{discriminator_forward.1} parent=11 // pred_region
        _
      $region44: #{discriminator_forward.1} parent=11 // pred_fallthru
        _
      // Predicated region
      $region45: #{discriminator_forward.1} parent=11 // pred_check
        %p296 = pneg %p231
      $region46: #{discriminator_forward.1} parent=11 // pred_check_branch
        %298 = sbr.rel (%p296) target = $region48
      $region47: #{discriminator_forward.1} parent=11 // pred_region
        _
      $region48: #{discriminator_forward.1} parent=11 // pred_fallthru
        _
    $region12: #{discriminator_forward.1} parent=5 // pred_fallthru
      _
    %p299 = scmp.lt.s32.totalorder %s16, 2
    // Predicated region
    $region49: #{discriminator_forward.1} parent=5 // pred_check
      %p300 = pneg %p299
    $region50: #{discriminator_forward.1} parent=5 // pred_check_branch
      %302 = sbr.rel (%p300) target = $region52
    $region51: #{discriminator_forward.1} parent=5 // pred_region
      // Predicated region
      $region53: #{discriminator_forward.1} parent=51 // pred_check
        %p303 = pneg %p36
      $region54: #{discriminator_forward.1} parent=51 // pred_check_branch
        %305 = sbr.rel (%p303) target = $region56
      $region55: #{discriminator_forward.1} parent=51 // pred_region
        %p306 = scmp.lt.s32.totalorder %s16, 1
        %s307 = scalar_select %p306, %s16, 1
        %s308 = smul.addr %s307, 36
        %s309 = smul.addr %s308, 4
        %s310 = scalar_lea.vmem %s0, %s309
      $region56: #{discriminator_forward.1} parent=51 // pred_fallthru
        _
    $region52: #{discriminator_forward.1} parent=5 // pred_fallthru
      _
    %p311 = scmp.le.s32.totalorder 1, %s16
    %p312 = scmp.lt.s32.totalorder %s16, 3
    %p313 = pnand %p311, %p312
    %p314 = pneg %p313
    // Predicated region
    $region57: #{discriminator_forward.1} parent=5 // pred_check
      _
    $region58: #{discriminator_forward.1} parent=5 // pred_check_branch
      %316 = sbr.rel (%p313) target = $region60
    $region59: #{discriminator_forward.1} parent=5 // pred_region
      %s317 = ssub.s32 %s16, 1
      %p318 = scmp.lt.s32.totalorder %s21, 1
      %s319 = scalar_select %p318, %s21, 1
      %s320 = smul.addr %s319, 36
      %s321 = smul.addr %s320, 4
      %s322 = scalar_lea.vmem %s0, %s321
      %p323 = pneg %p42
      %p324 = pneg %p39
      %p325 = pneg %p63
      %p326 = pneg %p60
      %p327 = pneg %p84
      %p328 = pneg %p81
      %p329 = pneg %p105
      %p330 = pneg %p102
      %p331 = pneg %p126
      %p332 = pneg %p123
      %p333 = pneg %p147
      %p334 = pneg %p144
      %p335 = pneg %p168
      %p336 = pneg %p165
      %p337 = pneg %p189
      %p338 = pneg %p186
      %p339 = pneg %p210
      %p340 = pneg %p207
      %p341 = pneg %p231
      %p342 = pneg %p228
      %p343 = pneg %p257
      %p344 = pneg %p254
      %p345 = scmp.lt.s32.totalorder %s21, 1
      %s346 = scalar_select %p345, %s21, 1
      %s347 = scalar_lea.vmem %s10, %s346
      %p348 = scmp.lt.s32.totalorder %s21, 1
      %s349 = scalar_select %p348, %s21, 1
      %s350 = smul.addr %s349, 36
      %s351 = smul.addr %s350, 4
      %s352 = scalar_lea.vmem %s0, %s351
      %p353 = scmp.lt.s32.totalorder %s21, 1
      %s354 = scalar_select %p353, %s21, 1
      %s355 = scalar_lea.vmem %s10, %s354
      %vm357 = vcmask 256000
      %vm358 = vsmask.f32 2304
      %vm359 = vmand %vm357, %vm358
      %v360 = vld [vmem:[#allocation2] sm:$0x7]
      %v361 = vsel %vm359, 0, %v360
      %362 = vst [vmem:[#allocation2] sm:$0x7] %v361
      %v363 = vld [vmem:[#allocation2 + $0x4] sm:$0x7]
      %v364 = vsel %vm359, 0, %v363
      %365 = vst [vmem:[#allocation2 + $0x4] sm:$0x7] %v364
      %v366 = vld [vmem:[#allocation2 + $0x8] sm:$0x7]
      %v367 = vsel %vm359, 0, %v366
      %368 = vst [vmem:[#allocation2 + $0x8] sm:$0x7] %v367
      %v369 = vld [vmem:[#allocation2 + $0xc] sm:$0x7]
      %v370 = vsel %vm359, 0, %v369
      %371 = vst [vmem:[#allocation2 + $0xc] sm:$0x7] %v370
      %v372 = vld [vmem:[#allocation2 + $0x10] sm:$0x7]
      %v373 = vsel %vm359, 0, %v372
      %374 = vst [vmem:[#allocation2 + $0x10] sm:$0x7] %v373
      %v375 = vld [vmem:[#allocation2 + $0x14] sm:$0x7]
      %v376 = vsel %vm359, 0, %v375
      %377 = vst [vmem:[#allocation2 + $0x14] sm:$0x7] %v376
      %v378 = vld [vmem:[#allocation2 + $0x18] sm:$0x7]
      %v379 = vsel %vm359, 0, %v378
      %380 = vst [vmem:[#allocation2 + $0x18] sm:$0x7] %v379
      %v381 = vld [vmem:[#allocation2 + $0x1c] sm:$0x7]
      %v382 = vsel %vm359, 0, %v381
      %383 = vst [vmem:[#allocation2 + $0x1c] sm:$0x7] %v382
      %v384 = vld [vmem:[#allocation2 + $0x20] sm:$0x7]
      %v385 = vsel %vm359, 0, %v384
      %386 = vst [vmem:[#allocation2 + $0x20] sm:$0x7] %v385
      %v387 = vld [vmem:[#allocation2 + $0x24] sm:$0x7]
      %v388 = vsel %vm359, 0, %v387
      %389 = vst [vmem:[#allocation2 + $0x24] sm:$0x7] %v388
      %vm390 = vcmask 517120
      %vm391 = vsmask.f32 1280
      %vm392 = vmand %vm390, %vm391
      %v393 = vld [vmem:[#allocation3] sm:$0x3]
      %v394 = vsel %vm392, 0, %v393
      %395 = vst [vmem:[#allocation3] sm:$0x3] %v394
      %v396 = vld [vmem:[#allocation3 + $0x2] sm:$0x3]
      %v397 = vsel %vm392, 0, %v396
      %398 = vst [vmem:[#allocation3 + $0x2] sm:$0x3] %v397
      %v399 = vld [vmem:[#allocation3 + $0x4] sm:$0x3]
      %v400 = vsel %vm392, 0, %v399
      %401 = vst [vmem:[#allocation3 + $0x4] sm:$0x3] %v400
      %v402 = vld [vmem:[#allocation3 + $0x6] sm:$0x3]
      %v403 = vsel %vm392, 0, %v402
      %404 = vst [vmem:[#allocation3 + $0x6] sm:$0x3] %v403
      %v405 = vld [vmem:[#allocation3 + $0x8] sm:$0x3]
      %v406 = vsel %vm392, 0, %v405
      %407 = vst [vmem:[#allocation3 + $0x8] sm:$0x3] %v406
      %v408 = vld [vmem:[#allocation3 + $0xa] sm:$0x3]
      %v409 = vsel %vm392, 0, %v408
      %410 = vst [vmem:[#allocation3 + $0xa] sm:$0x3] %v409
      %411 = vst [vmem:[#allocation4] sm:$0x1] 0
      %412 = vst [vmem:[#allocation4 + $0x1] sm:$0x1] 0
      %413 = vst [vmem:[#allocation4 + $0x2] sm:$0x1] 0
      %414 = vst [vmem:[#allocation4 + $0x3] sm:$0x1] 0
      %v415 = vlaneseq
      %v416 = vshrl.u32 %v415, 7
      %v417 = vlaneseq
      %v418 = vand.u32 %v417, 127
      %v419 = vmul.u32 %v416, 2
      %vm420 = vcmp.eq.s32.totalorder %v418, %v419
      %v421 = vsel %vm420, 1, 0
      %v422 = vcvt.s32.f32 %v421
      %v423 = vpack.c.bf16 %v422, %v422
      %v424 = vadd.s32 %v419, 1
      %vm425 = vcmp.eq.s32.totalorder %v418, %v424
      %v426 = vsel %vm425, 1, 0
      %v427 = vcvt.s32.f32 %v426
      %v428 = vpack.c.bf16 %v427, %v427
      %v429 = vld [vmem:[%s1] sm:$0xf]
      %v430 = vld [vmem:[%s1 + $0x4] sm:$0xf]
      %v431 = vld [vmem:[%s1 + $0x8] sm:$0xf]
      %v432 = vld [vmem:[%s1 + $0xc] sm:$0xf]
      %v433 = vld [vmem:[%s1 + $0x10] sm:$0xf]
      %v434 = vld [vmem:[%s1 + $0x14] sm:$0xf]
      %v435 = vld [vmem:[%s2] sm:$0x1]
      %v436 = vld [vmem:[%s352] sm:$0xf]
      %v437 = vld [vmem:[%s352 + $0x4] sm:$0x1]
      %s438 = scalar_lea.vmem %s352, 8
      %v439 = vld [vmem:[%s438] sm:$0xf]
      %v440 = vld [vmem:[%s438 + $0x4] sm:$0x1]
      %s441 = scalar_lea.vmem %s352, 16
      %v442 = vld [vmem:[%s441] sm:$0xf]
      %v443 = vld [vmem:[%s441 + $0x4] sm:$0x1]
      %v446 = vunpack.c.l.b16 %v436
      %v447 = vunpack.c.l.b16 %v437
      %v448 = vpack.c.b16 %v447, %v446
      %v450 = vshrl.u32 %v448, 16
      %v452 = vshll.u32 %v448, 16
      %v454 = vrot.slane %v452, 1
      %v455 = vor.u32 %v450, %v454
      %456 = vrot.lane.b32.xlu0 %v455, 8
      %v457 = vpop.permute.xlu0 %456
      %v459 = vunpack.c.l.b16 %v439
      %v460 = vpack.c.b16 %v459, %v459
      %461 = vrot.lane.b32.xlu0 %v460, 16
      %v462 = vpop.permute.xlu0 %461
      %v464 = vunpack.c.l.b16 %v440
      %v465 = vpack.c.b16 %v464, %v459
      %v467 = vshrl.u32 %v465, 16
      %v469 = vshll.u32 %v465, 16
      %v471 = vrot.slane %v469, 1
      %v472 = vor.u32 %v467, %v471
      %473 = vrot.lane.b32.xlu0 %v472, 24
      %v474 = vpop.permute.xlu0 %473
      %v476 = vunpack.c.l.b16 %v442
      %v477 = vpack.c.b16 %v476, %v476
      %478 = vrot.lane.b32.xlu0 %v477, 32
      %v479 = vpop.permute.xlu0 %478
      %v481 = vunpack.c.l.b16 %v443
      %v482 = vpack.c.b16 %v481, %v476
      %v484 = vshrl.u32 %v482, 16
      %v486 = vshll.u32 %v482, 16
      %v488 = vrot.slane %v486, 1
      %v489 = vor.u32 %v484, %v488
      %490 = vrot.lane.b32.xlu0 %v489, 40
      %v491 = vpop.permute.xlu0 %490
      %vm492 = vcmask 64512
      %v495 = vsel %vm492, %v436, %v457
      %vm496 = vcmask 130048
      %v498 = vsel %vm496, %v495, %v462
      %vm499 = vcmask 195584
      %v501 = vsel %vm499, %v498, %v474
      %vm502 = vcmask 261120
      %v504 = vsel %vm502, %v501, %v479
      %vm505 = vcmask 326656
      %v507 = vsel %vm505, %v504, %v491
      %v508 = vperm.slane %v435, 0
      %v515 = vunpack.c.l.b16 %v429
      %v516 = vunpack.c.l.b16 %v430
      %v517 = vunpack.c.l.b16 %v431
      %v518 = vunpack.c.l.b16 %v432
      %v519 = vunpack.c.l.b16 %v433
      %v520 = vunpack.c.l.b16 %v434
      %v521 = vpack.c.b16 %v516, %v515
      %v522 = vpack.c.b16 %v518, %v517
      %v523 = vpack.c.b16 %v520, %v519
      %vm527 = vcmask 392192
      %v528 = vsel %vm527, %v507, 0
      %530 = vmatpush.bf16.msra.mxu0 0
      %531 = vmatpush.bf16.msra.mxu0 0
      %532 = vmatpush.bf16.msra.mxu0 0
      %533 = vmatpush.bf16.msra.mxu0 0
      %534 = vmatpush.bf16.msra.mxu0 0
      %535 = vmatpush.bf16.msra.mxu0 %v523
      %536 = vmatpush.bf16.msra.mxu0 %v522
      %537 = vmatpush.bf16.msra.mxu0 %v521
      %538 = vmatmul.bf16.gmra.mxu0 %v528
      %v539 = vpop.f32.mrf.mxu0
      %v540 = vadd.f32 %v508, %v539
      %v541 = vpop.f32.mrf.mxu0
      %542 = vdwg.mxu0
      %v543 = vmul.f32 %v540, 0.2
      %v544 = vmax.f32 %v540, %v543
      %v545 = vpack.c.bf16 %v544, %v544
      %v547 = vsel %vm492, %v423, 0
      %vm549 = vcmask 1043456
      %v551 = vsel %vm549, %v545, 0
      %553 = vmatpush.bf16.msra.mxu0 0
      %554 = vmatpush.bf16.msra.mxu0 0
      %555 = vmatpush.bf16.msra.mxu0 0
      %556 = vmatpush.bf16.msra.mxu0 0
      %557 = vmatpush.bf16.msra.mxu0 0
      %558 = vmatpush.bf16.msra.mxu0 0
      %559 = vmatpush.bf16.msra.mxu0 0
      %560 = vmatpush.bf16.msra.mxu0 %v551
      %561 = vmatmul.bf16.gmra.mxu0 %v547
      %v562 = vpop.f32.mrf.mxu0
      %v563 = vadd.f32 0.0, %v562
      %v564 = vpop.f32.mrf.mxu0
      %565 = vdwg.mxu0
      %v566 = vpack.c.bf16 %v563, %v563
      %v568 = vsel %vm492, %v428, 0
      %570 = vmatpush.bf16.msra.mxu0 0
      %571 = vmatpush.bf16.msra.mxu0 0
      %572 = vmatpush.bf16.msra.mxu0 0
      %573 = vmatpush.bf16.msra.mxu0 0
      %574 = vmatpush.bf16.msra.mxu0 0
      %575 = vmatpush.bf16.msra.mxu0 0
      %576 = vmatpush.bf16.msra.mxu0 0
      %577 = vmatpush.bf16.msra.mxu0 %v551
      %578 = vmatmul.bf16.gmra.mxu0 %v568
      %v579 = vpop.f32.mrf.mxu0
      %v580 = vadd.f32 0.0, %v579
      %v581 = vpop.f32.mrf.mxu0
      %582 = vdwg.mxu0
      %v583 = vpack.c.bf16 %v580, %v580
      %585 = vrot.lane.b32.xlu0 %v566, 16
      %v586 = vpop.permute.xlu0 %585
      %s588 = scalar_lea.vmem [#allocation2], 4
      %vm589 = vcmask 255104
      %590 = vst.msk [vmem:[%s588] sm:$0x3] %vm589, %v586
      %v592 = vshrl.u32 %v583, 16
      %v594 = vrot.slane %v592, 7
      %v595 = vshll.u32 %v583, 16
      %v597 = vor.u32 %v594, %v595
      %vm599 = vcmask 124928
      %vm600 = vsmask.f32 2306
      %vm601 = vmand %vm599, %vm600
      %v602 = vld [vmem:[%s588] sm:$0x7]
      %v603 = vsel %vm601, %v597, %v602
      %604 = vst [vmem:[%s588] sm:$0x7] %v603
      %v605 = vld [vmem:[%s441] sm:$0xf]
      %v606 = vld [vmem:[%s441 + $0x4] sm:$0x1]
      %s607 = scalar_lea.vmem %s352, 24
      %v608 = vld [vmem:[%s607] sm:$0xf]
      %v609 = vld [vmem:[%s607 + $0x4] sm:$0x1]
      %s610 = scalar_lea.vmem %s352, 32
      %v611 = vld [vmem:[%s610] sm:$0xf]
      %v612 = vld [vmem:[%s610 + $0x4] sm:$0x1]
      %v615 = vunpack.c.l.b16 %v605
      %v616 = vunpack.c.l.b16 %v606
      %v617 = vpack.c.b16 %v616, %v615
      %v619 = vshrl.u32 %v617, 16
      %v621 = vshll.u32 %v617, 16
      %v623 = vrot.slane %v621, 1
      %v624 = vor.u32 %v619, %v623
      %625 = vrot.lane.b32.xlu0 %v624, 8
      %v626 = vpop.permute.xlu0 %625
      %v628 = vunpack.c.l.b16 %v608
      %v629 = vpack.c.b16 %v628, %v628
      %630 = vrot.lane.b32.xlu0 %v629, 16
      %v631 = vpop.permute.xlu0 %630
      %v633 = vunpack.c.l.b16 %v609
      %v634 = vpack.c.b16 %v633, %v628
      %v636 = vshrl.u32 %v634, 16
      %v638 = vshll.u32 %v634, 16
      %v640 = vrot.slane %v638, 1
      %v641 = vor.u32 %v636, %v640
      %642 = vrot.lane.b32.xlu0 %v641, 24
      %v643 = vpop.permute.xlu0 %642
      %v645 = vunpack.c.l.b16 %v611
      %v646 = vpack.c.b16 %v645, %v645
      %647 = vrot.lane.b32.xlu0 %v646, 32
      %v648 = vpop.permute.xlu0 %647
      %v650 = vunpack.c.l.b16 %v612
      %v651 = vpack.c.b16 %v650, %v645
      %v653 = vshrl.u32 %v651, 16
      %v655 = vshll.u32 %v651, 16
      %v657 = vrot.slane %v655, 1
      %v658 = vor.u32 %v653, %v657
      %659 = vrot.lane.b32.xlu0 %v658, 40
      %v660 = vpop.permute.xlu0 %659
      %v663 = vsel %vm492, %v605, %v626
      %v665 = vsel %vm496, %v663, %v631
      %v667 = vsel %vm499, %v665, %v643
      %v669 = vsel %vm502, %v667, %v648
      %v671 = vsel %vm505, %v669, %v660
      %v672 = vsel %vm527, %v671, 0
      %674 = vmatpush.bf16.msra.mxu0 0
      %675 = vmatpush.bf16.msra.mxu0 0
      %676 = vmatpush.bf16.msra.mxu0 0
      %677 = vmatpush.bf16.msra.mxu0 0
      %678 = vmatpush.bf16.msra.mxu0 0
      %679 = vmatpush.bf16.msra.mxu0 %v523
      %680 = vmatpush.bf16.msra.mxu0 %v522
      %681 = vmatpush.bf16.msra.mxu0 %v521
      %682 = vmatmul.bf16.gmra.mxu0 %v672
      %v683 = vpop.f32.mrf.mxu0
      %v684 = vadd.f32 %v508, %v683
      %v685 = vpop.f32.mrf.mxu0
      %686 = vdwg.mxu0
      %v687 = vmul.f32 %v684, 0.2
      %v688 = vmax.f32 %v684, %v687
      %v689 = vpack.c.bf16 %v688, %v688
      %v691 = vsel %vm549, %v689, 0
      %693 = vmatpush.bf16.msra.mxu0 0
      %694 = vmatpush.bf16.msra.mxu0 0
      %695 = vmatpush.bf16.msra.mxu0 0
      %696 = vmatpush.bf16.msra.mxu0 0
      %697 = vmatpush.bf16.msra.mxu0 0
      %698 = vmatpush.bf16.msra.mxu0 0
      %699 = vmatpush.bf16.msra.mxu0 0
      %700 = vmatpush.bf16.msra.mxu0 %v691
      %701 = vmatmul.bf16.gmra.mxu0 %v547
      %v702 = vpop.f32.mrf.mxu0
      %v703 = vadd.f32 0.0, %v702
      %v704 = vpop.f32.mrf.mxu0
      %705 = vdwg.mxu0
      %v706 = vpack.c.bf16 %v703, %v703
      %707 = vmatpush.bf16.msra.mxu0 0
      %708 = vmatpush.bf16.msra.mxu0 0
      %709 = vmatpush.bf16.msra.mxu0 0
      %710 = vmatpush.bf16.msra.mxu0 0
      %711 = vmatpush.bf16.msra.mxu0 0
      %712 = vmatpush.bf16.msra.mxu0 0
      %713 = vmatpush.bf16.msra.mxu0 0
      %714 = vmatpush.bf16.msra.mxu0 %v691
      %715 = vmatmul.bf16.gmra.mxu0 %v568
      %v716 = vpop.f32.mrf.mxu0
      %v717 = vadd.f32 0.0, %v716
      %v718 = vpop.f32.mrf.mxu0
      %719 = vdwg.mxu0
      %v720 = vpack.c.bf16 %v717, %v717
      %722 = vrot.lane.b32.xlu0 %v706, 16
      %v723 = vpop.permute.xlu0 %722
      %s725 = scalar_lea.vmem [#allocation2], 8
      %726 = vst.msk [vmem:[%s725] sm:$0x3] %vm589, %v723
      %v728 = vshrl.u32 %v720, 16
      %v730 = vrot.slane %v728, 7
      %v731 = vshll.u32 %v720, 16
      %v733 = vor.u32 %v730, %v731
      %v735 = vld [vmem:[%s725] sm:$0x7]
      %v736 = vsel %vm601, %v733, %v735
      %737 = vst [vmem:[%s725] sm:$0x7] %v736
      %v738 = vld [vmem:[%s610] sm:$0xf]
      %v739 = vld [vmem:[%s610 + $0x4] sm:$0x1]
      %s740 = scalar_lea.vmem %s352, 40
      %v741 = vld [vmem:[%s740] sm:$0xf]
      %v742 = vld [vmem:[%s740 + $0x4] sm:$0x1]
      %s743 = scalar_lea.vmem %s352, 48
      %v744 = vld [vmem:[%s743] sm:$0xf]
      %v745 = vld [vmem:[%s743 + $0x4] sm:$0x1]
      %v748 = vunpack.c.l.b16 %v738
      %v749 = vunpack.c.l.b16 %v739
      %v750 = vpack.c.b16 %v749, %v748
      %v752 = vshrl.u32 %v750, 16
      %v754 = vshll.u32 %v750, 16
      %v756 = vrot.slane %v754, 1
      %v757 = vor.u32 %v752, %v756
      %758 = vrot.lane.b32.xlu0 %v757, 8
      %v759 = vpop.permute.xlu0 %758
      %v761 = vunpack.c.l.b16 %v741
      %v762 = vpack.c.b16 %v761, %v761
      %763 = vrot.lane.b32.xlu0 %v762, 16
      %v764 = vpop.permute.xlu0 %763
      %v766 = vunpack.c.l.b16 %v742
      %v767 = vpack.c.b16 %v766, %v761
      %v769 = vshrl.u32 %v767, 16
      %v771 = vshll.u32 %v767, 16
      %v773 = vrot.slane %v771, 1
      %v774 = vor.u32 %v769, %v773
      %775 = vrot.lane.b32.xlu0 %v774, 24
      %v776 = vpop.permute.xlu0 %775
      %v778 = vunpack.c.l.b16 %v744
      %v779 = vpack.c.b16 %v778, %v778
      %780 = vrot.lane.b32.xlu0 %v779, 32
      %v781 = vpop.permute.xlu0 %780
      %v783 = vunpack.c.l.b16 %v745
      %v784 = vpack.c.b16 %v783, %v778
      %v786 = vshrl.u32 %v784, 16
      %v788 = vshll.u32 %v784, 16
      %v790 = vrot.slane %v788, 1
      %v791 = vor.u32 %v786, %v790
      %792 = vrot.lane.b32.xlu0 %v791, 40
      %v793 = vpop.permute.xlu0 %792
      %v796 = vsel %vm492, %v738, %v759
      %v798 = vsel %vm496, %v796, %v764
      %v800 = vsel %vm499, %v798, %v776
      %v802 = vsel %vm502, %v800, %v781
      %v804 = vsel %vm505, %v802, %v793
      %v805 = vsel %vm527, %v804, 0
      %807 = vmatpush.bf16.msra.mxu0 0
      %808 = vmatpush.bf16.msra.mxu0 0
      %809 = vmatpush.bf16.msra.mxu0 0
      %810 = vmatpush.bf16.msra.mxu0 0
      %811 = vmatpush.bf16.msra.mxu0 0
      %812 = vmatpush.bf16.msra.mxu0 %v523
      %813 = vmatpush.bf16.msra.mxu0 %v522
      %814 = vmatpush.bf16.msra.mxu0 %v521
      %815 = vmatmul.bf16.gmra.mxu0 %v805
      %v816 = vpop.f32.mrf.mxu0
      %v817 = vadd.f32 %v508, %v816
      %v818 = vpop.f32.mrf.mxu0
      %819 = vdwg.mxu0
      %v820 = vmul.f32 %v817, 0.2
      %v821 = vmax.f32 %v817, %v820
      %v822 = vpack.c.bf16 %v821, %v821
      %v824 = vsel %vm549, %v822, 0
      %826 = vmatpush.bf16.msra.mxu0 0
      %827 = vmatpush.bf16.msra.mxu0 0
      %828 = vmatpush.bf16.msra.mxu0 0
      %829 = vmatpush.bf16.msra.mxu0 0
      %830 = vmatpush.bf16.msra.mxu0 0
      %831 = vmatpush.bf16.msra.mxu0 0
      %832 = vmatpush.bf16.msra.mxu0 0
      %833 = vmatpush.bf16.msra.mxu0 %v824
      %834 = vmatmul.bf16.gmra.mxu0 %v547
      %v835 = vpop.f32.mrf.mxu0
      %v836 = vadd.f32 0.0, %v835
      %v837 = vpop.f32.mrf.mxu0
      %838 = vdwg.mxu0
      %v839 = vpack.c.bf16 %v836, %v836
      %840 = vmatpush.bf16.msra.mxu0 0
      %841 = vmatpush.bf16.msra.mxu0 0
      %842 = vmatpush.bf16.msra.mxu0 0
      %843 = vmatpush.bf16.msra.mxu0 0
      %844 = vmatpush.bf16.msra.mxu0 0
      %845 = vmatpush.bf16.msra.mxu0 0
      %846 = vmatpush.bf16.msra.mxu0 0
      %847 = vmatpush.bf16.msra.mxu0 %v824
      %848 = vmatmul.bf16.gmra.mxu0 %v568
      %v849 = vpop.f32.mrf.mxu0
      %v850 = vadd.f32 0.0, %v849
      %v851 = vpop.f32.mrf.mxu0
      %852 = vdwg.mxu0
      %v853 = vpack.c.bf16 %v850, %v850
      %855 = vrot.lane.b32.xlu0 %v839, 16
      %v856 = vpop.permute.xlu0 %855
      %s858 = scalar_lea.vmem [#allocation2], 12
      %859 = vst.msk [vmem:[%s858] sm:$0x3] %vm589, %v856
      %v861 = vshrl.u32 %v853, 16
      %v863 = vrot.slane %v861, 7
      %v864 = vshll.u32 %v853, 16
      %v866 = vor.u32 %v863, %v864
      %v868 = vld [vmem:[%s858] sm:$0x7]
      %v869 = vsel %vm601, %v866, %v868
      %870 = vst [vmem:[%s858] sm:$0x7] %v869
      %v871 = vld [vmem:[%s743] sm:$0xf]
      %v872 = vld [vmem:[%s743 + $0x4] sm:$0x1]
      %s873 = scalar_lea.vmem %s352, 56
      %v874 = vld [vmem:[%s873] sm:$0xf]
      %v875 = vld [vmem:[%s873 + $0x4] sm:$0x1]
      %s876 = scalar_lea.vmem %s352, 64
      %v877 = vld [vmem:[%s876] sm:$0xf]
      %v878 = vld [vmem:[%s876 + $0x4] sm:$0x1]
      %v881 = vunpack.c.l.b16 %v871
      %v882 = vunpack.c.l.b16 %v872
      %v883 = vpack.c.b16 %v882, %v881
      %v885 = vshrl.u32 %v883, 16
      %v887 = vshll.u32 %v883, 16
      %v889 = vrot.slane %v887, 1
      %v890 = vor.u32 %v885, %v889
      %891 = vrot.lane.b32.xlu0 %v890, 8
      %v892 = vpop.permute.xlu0 %891
      %v894 = vunpack.c.l.b16 %v874
      %v895 = vpack.c.b16 %v894, %v894
      %896 = vrot.lane.b32.xlu0 %v895, 16
      %v897 = vpop.permute.xlu0 %896
      %v899 = vunpack.c.l.b16 %v875
      %v900 = vpack.c.b16 %v899, %v894
      %v902 = vshrl.u32 %v900, 16
      %v904 = vshll.u32 %v900, 16
      %v906 = vrot.slane %v904, 1
      %v907 = vor.u32 %v902, %v906
      %908 = vrot.lane.b32.xlu0 %v907, 24
      %v909 = vpop.permute.xlu0 %908
      %v911 = vunpack.c.l.b16 %v877
      %v912 = vpack.c.b16 %v911, %v911
      %913 = vrot.lane.b32.xlu0 %v912, 32
      %v914 = vpop.permute.xlu0 %913
      %v916 = vunpack.c.l.b16 %v878
      %v917 = vpack.c.b16 %v916, %v911
      %v919 = vshrl.u32 %v917, 16
      %v921 = vshll.u32 %v917, 16
      %v923 = vrot.slane %v921, 1
      %v924 = vor.u32 %v919, %v923
      %925 = vrot.lane.b32.xlu0 %v924, 40
      %v926 = vpop.permute.xlu0 %925
      %v929 = vsel %vm492, %v871, %v892
      %v931 = vsel %vm496, %v929, %v897
      %v933 = vsel %vm499, %v931, %v909
      %v935 = vsel %vm502, %v933, %v914
      %v937 = vsel %vm505, %v935, %v926
      %v938 = vsel %vm527, %v937, 0
      %940 = vmatpush.bf16.msra.mxu0 0
      %941 = vmatpush.bf16.msra.mxu0 0
      %942 = vmatpush.bf16.msra.mxu0 0
      %943 = vmatpush.bf16.msra.mxu0 0
      %944 = vmatpush.bf16.msra.mxu0 0
      %945 = vmatpush.bf16.msra.mxu0 %v523
      %946 = vmatpush.bf16.msra.mxu0 %v522
      %947 = vmatpush.bf16.msra.mxu0 %v521
      %948 = vmatmul.bf16.gmra.mxu0 %v938
      %v949 = vpop.f32.mrf.mxu0
      %v950 = vadd.f32 %v508, %v949
      %v951 = vpop.f32.mrf.mxu0
      %952 = vdwg.mxu0
      %v953 = vmul.f32 %v950, 0.2
      %v954 = vmax.f32 %v950, %v953
      %v955 = vpack.c.bf16 %v954, %v954
      %v957 = vsel %vm549, %v955, 0
      %959 = vmatpush.bf16.msra.mxu0 0
      %960 = vmatpush.bf16.msra.mxu0 0
      %961 = vmatpush.bf16.msra.mxu0 0
      %962 = vmatpush.bf16.msra.mxu0 0
      %963 = vmatpush.bf16.msra.mxu0 0
      %964 = vmatpush.bf16.msra.mxu0 0
      %965 = vmatpush.bf16.msra.mxu0 0
      %966 = vmatpush.bf16.msra.mxu0 %v957
      %967 = vmatmul.bf16.gmra.mxu0 %v547
      %v968 = vpop.f32.mrf.mxu0
      %v969 = vadd.f32 0.0, %v968
      %v970 = vpop.f32.mrf.mxu0
      %971 = vdwg.mxu0
      %v972 = vpack.c.bf16 %v969, %v969
      %973 = vmatpush.bf16.msra.mxu0 0
      %974 = vmatpush.bf16.msra.mxu0 0
      %975 = vmatpush.bf16.msra.mxu0 0
      %976 = vmatpush.bf16.msra.mxu0 0
      %977 = vmatpush.bf16.msra.mxu0 0
      %978 = vmatpush.bf16.msra.mxu0 0
      %979 = vmatpush.bf16.msra.mxu0 0
      %980 = vmatpush.bf16.msra.mxu0 %v957
      %981 = vmatmul.bf16.gmra.mxu0 %v568
      %v982 = vpop.f32.mrf.mxu0
      %v983 = vadd.f32 0.0, %v982
      %v984 = vpop.f32.mrf.mxu0
      %985 = vdwg.mxu0
      %v986 = vpack.c.bf16 %v983, %v983
      %988 = vrot.lane.b32.xlu0 %v972, 16
      %v989 = vpop.permute.xlu0 %988
      %s991 = scalar_lea.vmem [#allocation2], 16
      %992 = vst.msk [vmem:[%s991] sm:$0x3] %vm589, %v989
      %v994 = vshrl.u32 %v986, 16
      %v996 = vrot.slane %v994, 7
      %v997 = vshll.u32 %v986, 16
      %v999 = vor.u32 %v996, %v997
      %v1001 = vld [vmem:[%s991] sm:$0x7]
      %v1002 = vsel %vm601, %v999, %v1001
      %1003 = vst [vmem:[%s991] sm:$0x7] %v1002
      %v1004 = vld [vmem:[%s876] sm:$0xf]
      %v1005 = vld [vmem:[%s876 + $0x4] sm:$0x1]
      %s1006 = scalar_lea.vmem %s352, 72
      %v1007 = vld [vmem:[%s1006] sm:$0xf]
      %v1008 = vld [vmem:[%s1006 + $0x4] sm:$0x1]
      %s1009 = scalar_lea.vmem %s352, 80
      %v1010 = vld [vmem:[%s1009] sm:$0xf]
      %v1011 = vld [vmem:[%s1009 + $0x4] sm:$0x1]
      %v1014 = vunpack.c.l.b16 %v1004
      %v1015 = vunpack.c.l.b16 %v1005
      %v1016 = vpack.c.b16 %v1015, %v1014
      %v1018 = vshrl.u32 %v1016, 16
      %v1020 = vshll.u32 %v1016, 16
      %v1022 = vrot.slane %v1020, 1
      %v1023 = vor.u32 %v1018, %v1022
      %1024 = vrot.lane.b32.xlu0 %v1023, 8
      %v1025 = vpop.permute.xlu0 %1024
      %v1027 = vunpack.c.l.b16 %v1007
      %v1028 = vpack.c.b16 %v1027, %v1027
      %1029 = vrot.lane.b32.xlu0 %v1028, 16
      %v1030 = vpop.permute.xlu0 %1029
      %v1032 = vunpack.c.l.b16 %v1008
      %v1033 = vpack.c.b16 %v1032, %v1027
      %v1035 = vshrl.u32 %v1033, 16
      %v1037 = vshll.u32 %v1033, 16
      %v1039 = vrot.slane %v1037, 1
      %v1040 = vor.u32 %v1035, %v1039
      %1041 = vrot.lane.b32.xlu0 %v1040, 24
      %v1042 = vpop.permute.xlu0 %1041
      %v1044 = vunpack.c.l.b16 %v1010
      %v1045 = vpack.c.b16 %v1044, %v1044
      %1046 = vrot.lane.b32.xlu0 %v1045, 32
      %v1047 = vpop.permute.xlu0 %1046
      %v1049 = vunpack.c.l.b16 %v1011
      %v1050 = vpack.c.b16 %v1049, %v1044
      %v1052 = vshrl.u32 %v1050, 16
      %v1054 = vshll.u32 %v1050, 16
      %v1056 = vrot.slane %v1054, 1
      %v1057 = vor.u32 %v1052, %v1056
      %1058 = vrot.lane.b32.xlu0 %v1057, 40
      %v1059 = vpop.permute.xlu0 %1058
      %v1062 = vsel %vm492, %v1004, %v1025
      %v1064 = vsel %vm496, %v1062, %v1030
      %v1066 = vsel %vm499, %v1064, %v1042
      %v1068 = vsel %vm502, %v1066, %v1047
      %v1070 = vsel %vm505, %v1068, %v1059
      %v1071 = vsel %vm527, %v1070, 0
      %1073 = vmatpush.bf16.msra.mxu0 0
      %1074 = vmatpush.bf16.msra.mxu0 0
      %1075 = vmatpush.bf16.msra.mxu0 0
      %1076 = vmatpush.bf16.msra.mxu0 0
      %1077 = vmatpush.bf16.msra.mxu0 0
      %1078 = vmatpush.bf16.msra.mxu0 %v523
      %1079 = vmatpush.bf16.msra.mxu0 %v522
      %1080 = vmatpush.bf16.msra.mxu0 %v521
      %1081 = vmatmul.bf16.gmra.mxu0 %v1071
      %v1082 = vpop.f32.mrf.mxu0
      %v1083 = vadd.f32 %v508, %v1082
      %v1084 = vpop.f32.mrf.mxu0
      %1085 = vdwg.mxu0
      %v1086 = vmul.f32 %v1083, 0.2
      %v1087 = vmax.f32 %v1083, %v1086
      %v1088 = vpack.c.bf16 %v1087, %v1087
      %v1090 = vsel %vm549, %v1088, 0
      %1092 = vmatpush.bf16.msra.mxu0 0
      %1093 = vmatpush.bf16.msra.mxu0 0
      %1094 = vmatpush.bf16.msra.mxu0 0
      %1095 = vmatpush.bf16.msra.mxu0 0
      %1096 = vmatpush.bf16.msra.mxu0 0
      %1097 = vmatpush.bf16.msra.mxu0 0
      %1098 = vmatpush.bf16.msra.mxu0 0
      %1099 = vmatpush.bf16.msra.mxu0 %v1090
      %1100 = vmatmul.bf16.gmra.mxu0 %v547
      %v1101 = vpop.f32.mrf.mxu0
      %v1102 = vadd.f32 0.0, %v1101
      %v1103 = vpop.f32.mrf.mxu0
      %1104 = vdwg.mxu0
      %v1105 = vpack.c.bf16 %v1102, %v1102
      %1106 = vmatpush.bf16.msra.mxu0 0
      %1107 = vmatpush.bf16.msra.mxu0 0
      %1108 = vmatpush.bf16.msra.mxu0 0
      %1109 = vmatpush.bf16.msra.mxu0 0
      %1110 = vmatpush.bf16.msra.mxu0 0
      %1111 = vmatpush.bf16.msra.mxu0 0
      %1112 = vmatpush.bf16.msra.mxu0 0
      %1113 = vmatpush.bf16.msra.mxu0 %v1090
      %1114 = vmatmul.bf16.gmra.mxu0 %v568
      %v1115 = vpop.f32.mrf.mxu0
      %v1116 = vadd.f32 0.0, %v1115
      %v1117 = vpop.f32.mrf.mxu0
      %1118 = vdwg.mxu0
      %v1119 = vpack.c.bf16 %v1116, %v1116
      %1121 = vrot.lane.b32.xlu0 %v1105, 16
      %v1122 = vpop.permute.xlu0 %1121
      %s1124 = scalar_lea.vmem [#allocation2], 20
      %1125 = vst.msk [vmem:[%s1124] sm:$0x3] %vm589, %v1122
      %v1127 = vshrl.u32 %v1119, 16
      %v1129 = vrot.slane %v1127, 7
      %v1130 = vshll.u32 %v1119, 16
      %v1132 = vor.u32 %v1129, %v1130
      %v1134 = vld [vmem:[%s1124] sm:$0x7]
      %v1135 = vsel %vm601, %v1132, %v1134
      %1136 = vst [vmem:[%s1124] sm:$0x7] %v1135
      %v1137 = vld [vmem:[%s1009] sm:$0xf]
      %v1138 = vld [vmem:[%s1009 + $0x4] sm:$0x1]
      %s1139 = scalar_lea.vmem %s352, 88
      %v1140 = vld [vmem:[%s1139] sm:$0xf]
      %v1141 = vld [vmem:[%s1139 + $0x4] sm:$0x1]
      %s1142 = scalar_lea.vmem %s352, 96
      %v1143 = vld [vmem:[%s1142] sm:$0xf]
      %v1144 = vld [vmem:[%s1142 + $0x4] sm:$0x1]
      %v1147 = vunpack.c.l.b16 %v1137
      %v1148 = vunpack.c.l.b16 %v1138
      %v1149 = vpack.c.b16 %v1148, %v1147
      %v1151 = vshrl.u32 %v1149, 16
      %v1153 = vshll.u32 %v1149, 16
      %v1155 = vrot.slane %v1153, 1
      %v1156 = vor.u32 %v1151, %v1155
      %1157 = vrot.lane.b32.xlu0 %v1156, 8
      %v1158 = vpop.permute.xlu0 %1157
      %v1160 = vunpack.c.l.b16 %v1140
      %v1161 = vpack.c.b16 %v1160, %v1160
      %1162 = vrot.lane.b32.xlu0 %v1161, 16
      %v1163 = vpop.permute.xlu0 %1162
      %v1165 = vunpack.c.l.b16 %v1141
      %v1166 = vpack.c.b16 %v1165, %v1160
      %v1168 = vshrl.u32 %v1166, 16
      %v1170 = vshll.u32 %v1166, 16
      %v1172 = vrot.slane %v1170, 1
      %v1173 = vor.u32 %v1168, %v1172
      %1174 = vrot.lane.b32.xlu0 %v1173, 24
      %v1175 = vpop.permute.xlu0 %1174
      %v1177 = vunpack.c.l.b16 %v1143
      %v1178 = vpack.c.b16 %v1177, %v1177
      %1179 = vrot.lane.b32.xlu0 %v1178, 32
      %v1180 = vpop.permute.xlu0 %1179
      %v1182 = vunpack.c.l.b16 %v1144
      %v1183 = vpack.c.b16 %v1182, %v1177
      %v1185 = vshrl.u32 %v1183, 16
      %v1187 = vshll.u32 %v1183, 16
      %v1189 = vrot.slane %v1187, 1
      %v1190 = vor.u32 %v1185, %v1189
      %1191 = vrot.lane.b32.xlu0 %v1190, 40
      %v1192 = vpop.permute.xlu0 %1191
      %v1195 = vsel %vm492, %v1137, %v1158
      %v1197 = vsel %vm496, %v1195, %v1163
      %v1199 = vsel %vm499, %v1197, %v1175
      %v1201 = vsel %vm502, %v1199, %v1180
      %v1203 = vsel %vm505, %v1201, %v1192
      %v1204 = vsel %vm527, %v1203, 0
      %1206 = vmatpush.bf16.msra.mxu0 0
      %1207 = vmatpush.bf16.msra.mxu0 0
      %1208 = vmatpush.bf16.msra.mxu0 0
      %1209 = vmatpush.bf16.msra.mxu0 0
      %1210 = vmatpush.bf16.msra.mxu0 0
      %1211 = vmatpush.bf16.msra.mxu0 %v523
      %1212 = vmatpush.bf16.msra.mxu0 %v522
      %1213 = vmatpush.bf16.msra.mxu0 %v521
      %1214 = vmatmul.bf16.gmra.mxu0 %v1204
      %v1215 = vpop.f32.mrf.mxu0
      %v1216 = vadd.f32 %v508, %v1215
      %v1217 = vpop.f32.mrf.mxu0
      %1218 = vdwg.mxu0
      %v1219 = vmul.f32 %v1216, 0.2
      %v1220 = vmax.f32 %v1216, %v1219
      %v1221 = vpack.c.bf16 %v1220, %v1220
      %v1223 = vsel %vm549, %v1221, 0
      %1225 = vmatpush.bf16.msra.mxu0 0
      %1226 = vmatpush.bf16.msra.mxu0 0
      %1227 = vmatpush.bf16.msra.mxu0 0
      %1228 = vmatpush.bf16.msra.mxu0 0
      %1229 = vmatpush.bf16.msra.mxu0 0
      %1230 = vmatpush.bf16.msra.mxu0 0
      %1231 = vmatpush.bf16.msra.mxu0 0
      %1232 = vmatpush.bf16.msra.mxu0 %v1223
      %1233 = vmatmul.bf16.gmra.mxu0 %v547
      %v1234 = vpop.f32.mrf.mxu0
      %v1235 = vadd.f32 0.0, %v1234
      %v1236 = vpop.f32.mrf.mxu0
      %1237 = vdwg.mxu0
      %v1238 = vpack.c.bf16 %v1235, %v1235
      %1239 = vmatpush.bf16.msra.mxu0 0
      %1240 = vmatpush.bf16.msra.mxu0 0
      %1241 = vmatpush.bf16.msra.mxu0 0
      %1242 = vmatpush.bf16.msra.mxu0 0
      %1243 = vmatpush.bf16.msra.mxu0 0
      %1244 = vmatpush.bf16.msra.mxu0 0
      %1245 = vmatpush.bf16.msra.mxu0 0
      %1246 = vmatpush.bf16.msra.mxu0 %v1223
      %1247 = vmatmul.bf16.gmra.mxu0 %v568
      %v1248 = vpop.f32.mrf.mxu0
      %v1249 = vadd.f32 0.0, %v1248
      %v1250 = vpop.f32.mrf.mxu0
      %1251 = vdwg.mxu0
      %v1252 = vpack.c.bf16 %v1249, %v1249
      %1254 = vrot.lane.b32.xlu0 %v1238, 16
      %v1255 = vpop.permute.xlu0 %1254
      %s1257 = scalar_lea.vmem [#allocation2], 24
      %1258 = vst.msk [vmem:[%s1257] sm:$0x3] %vm589, %v1255
      %v1260 = vshrl.u32 %v1252, 16
      %v1262 = vrot.slane %v1260, 7
      %v1263 = vshll.u32 %v1252, 16
      %v1265 = vor.u32 %v1262, %v1263
      %v1267 = vld [vmem:[%s1257] sm:$0x7]
      %v1268 = vsel %vm601, %v1265, %v1267
      %1269 = vst [vmem:[%s1257] sm:$0x7] %v1268
      %v1270 = vld [vmem:[%s1142] sm:$0xf]
      %v1271 = vld [vmem:[%s1142 + $0x4] sm:$0x1]
      %s1272 = scalar_lea.vmem %s352, 104
      %v1273 = vld [vmem:[%s1272] sm:$0xf]
      %v1274 = vld [vmem:[%s1272 + $0x4] sm:$0x1]
      %s1275 = scalar_lea.vmem %s352, 112
      %v1276 = vld [vmem:[%s1275] sm:$0xf]
      %v1277 = vld [vmem:[%s1275 + $0x4] sm:$0x1]
      %v1280 = vunpack.c.l.b16 %v1270
      %v1281 = vunpack.c.l.b16 %v1271
      %v1282 = vpack.c.b16 %v1281, %v1280
      %v1284 = vshrl.u32 %v1282, 16
      %v1286 = vshll.u32 %v1282, 16
      %v1288 = vrot.slane %v1286, 1
      %v1289 = vor.u32 %v1284, %v1288
      %1290 = vrot.lane.b32.xlu0 %v1289, 8
      %v1291 = vpop.permute.xlu0 %1290
      %v1293 = vunpack.c.l.b16 %v1273
      %v1294 = vpack.c.b16 %v1293, %v1293
      %1295 = vrot.lane.b32.xlu0 %v1294, 16
      %v1296 = vpop.permute.xlu0 %1295
      %v1298 = vunpack.c.l.b16 %v1274
      %v1299 = vpack.c.b16 %v1298, %v1293
      %v1301 = vshrl.u32 %v1299, 16
      %v1303 = vshll.u32 %v1299, 16
      %v1305 = vrot.slane %v1303, 1
      %v1306 = vor.u32 %v1301, %v1305
      %1307 = vrot.lane.b32.xlu0 %v1306, 24
      %v1308 = vpop.permute.xlu0 %1307
      %v1310 = vunpack.c.l.b16 %v1276
      %v1311 = vpack.c.b16 %v1310, %v1310
      %1312 = vrot.lane.b32.xlu0 %v1311, 32
      %v1313 = vpop.permute.xlu0 %1312
      %v1315 = vunpack.c.l.b16 %v1277
      %v1316 = vpack.c.b16 %v1315, %v1310
      %v1318 = vshrl.u32 %v1316, 16
      %v1320 = vshll.u32 %v1316, 16
      %v1322 = vrot.slane %v1320, 1
      %v1323 = vor.u32 %v1318, %v1322
      %1324 = vrot.lane.b32.xlu0 %v1323, 40
      %v1325 = vpop.permute.xlu0 %1324
      %v1328 = vsel %vm492, %v1270, %v1291
      %v1330 = vsel %vm496, %v1328, %v1296
      %v1332 = vsel %vm499, %v1330, %v1308
      %v1334 = vsel %vm502, %v1332, %v1313
      %v1336 = vsel %vm505, %v1334, %v1325
      %v1337 = vsel %vm527, %v1336, 0
      %1339 = vmatpush.bf16.msra.mxu0 0
      %1340 = vmatpush.bf16.msra.mxu0 0
      %1341 = vmatpush.bf16.msra.mxu0 0
      %1342 = vmatpush.bf16.msra.mxu0 0
      %1343 = vmatpush.bf16.msra.mxu0 0
      %1344 = vmatpush.bf16.msra.mxu0 %v523
      %1345 = vmatpush.bf16.msra.mxu0 %v522
      %1346 = vmatpush.bf16.msra.mxu0 %v521
      %1347 = vmatmul.bf16.gmra.mxu0 %v1337
      %v1348 = vpop.f32.mrf.mxu0
      %v1349 = vadd.f32 %v508, %v1348
      %v1350 = vpop.f32.mrf.mxu0
      %1351 = vdwg.mxu0
      %v1352 = vmul.f32 %v1349, 0.2
      %v1353 = vmax.f32 %v1349, %v1352
      %v1354 = vpack.c.bf16 %v1353, %v1353
      %v1356 = vsel %vm549, %v1354, 0
      %1358 = vmatpush.bf16.msra.mxu0 0
      %1359 = vmatpush.bf16.msra.mxu0 0
      %1360 = vmatpush.bf16.msra.mxu0 0
      %1361 = vmatpush.bf16.msra.mxu0 0
      %1362 = vmatpush.bf16.msra.mxu0 0
      %1363 = vmatpush.bf16.msra.mxu0 0
      %1364 = vmatpush.bf16.msra.mxu0 0
      %1365 = vmatpush.bf16.msra.mxu0 %v1356
      %1366 = vmatmul.bf16.gmra.mxu0 %v547
      %v1367 = vpop.f32.mrf.mxu0
      %v1368 = vadd.f32 0.0, %v1367
      %v1369 = vpop.f32.mrf.mxu0
      %1370 = vdwg.mxu0
      %v1371 = vpack.c.bf16 %v1368, %v1368
      %1372 = vmatpush.bf16.msra.mxu0 0
      %1373 = vmatpush.bf16.msra.mxu0 0
      %1374 = vmatpush.bf16.msra.mxu0 0
      %1375 = vmatpush.bf16.msra.mxu0 0
      %1376 = vmatpush.bf16.msra.mxu0 0
      %1377 = vmatpush.bf16.msra.mxu0 0
      %1378 = vmatpush.bf16.msra.mxu0 0
      %1379 = vmatpush.bf16.msra.mxu0 %v1356
      %1380 = vmatmul.bf16.gmra.mxu0 %v568
      %v1381 = vpop.f32.mrf.mxu0
      %v1382 = vadd.f32 0.0, %v1381
      %v1383 = vpop.f32.mrf.mxu0
      %1384 = vdwg.mxu0
      %v1385 = vpack.c.bf16 %v1382, %v1382
      %1387 = vrot.lane.b32.xlu0 %v1371, 16
      %v1388 = vpop.permute.xlu0 %1387
      %s1390 = scalar_lea.vmem [#allocation2], 28
      %1391 = vst.msk [vmem:[%s1390] sm:$0x3] %vm589, %v1388
      %v1393 = vshrl.u32 %v1385, 16
      %v1395 = vrot.slane %v1393, 7
      %v1396 = vshll.u32 %v1385, 16
      %v1398 = vor.u32 %v1395, %v1396
      %v1400 = vld [vmem:[%s1390] sm:$0x7]
      %v1401 = vsel %vm601, %v1398, %v1400
      %1402 = vst [vmem:[%s1390] sm:$0x7] %v1401
      %v1403 = vld [vmem:[%s1275] sm:$0xf]
      %v1404 = vld [vmem:[%s1275 + $0x4] sm:$0x1]
      %s1405 = scalar_lea.vmem %s352, 120
      %v1406 = vld [vmem:[%s1405] sm:$0xf]
      %v1407 = vld [vmem:[%s1405 + $0x4] sm:$0x1]
      %s1408 = scalar_lea.vmem %s352, 128
      %v1409 = vld [vmem:[%s1408] sm:$0xf]
      %v1410 = vld [vmem:[%s1408 + $0x4] sm:$0x1]
      %v1413 = vunpack.c.l.b16 %v1403
      %v1414 = vunpack.c.l.b16 %v1404
      %v1415 = vpack.c.b16 %v1414, %v1413
      %v1417 = vshrl.u32 %v1415, 16
      %v1419 = vshll.u32 %v1415, 16
      %v1421 = vrot.slane %v1419, 1
      %v1422 = vor.u32 %v1417, %v1421
      %1423 = vrot.lane.b32.xlu0 %v1422, 8
      %v1424 = vpop.permute.xlu0 %1423
      %v1426 = vunpack.c.l.b16 %v1406
      %v1427 = vpack.c.b16 %v1426, %v1426
      %1428 = vrot.lane.b32.xlu0 %v1427, 16
      %v1429 = vpop.permute.xlu0 %1428
      %v1431 = vunpack.c.l.b16 %v1407
      %v1432 = vpack.c.b16 %v1431, %v1426
      %v1434 = vshrl.u32 %v1432, 16
      %v1436 = vshll.u32 %v1432, 16
      %v1438 = vrot.slane %v1436, 1
      %v1439 = vor.u32 %v1434, %v1438
      %1440 = vrot.lane.b32.xlu0 %v1439, 24
      %v1441 = vpop.permute.xlu0 %1440
      %v1443 = vunpack.c.l.b16 %v1409
      %v1444 = vpack.c.b16 %v1443, %v1443
      %1445 = vrot.lane.b32.xlu0 %v1444, 32
      %v1446 = vpop.permute.xlu0 %1445
      %v1448 = vunpack.c.l.b16 %v1410
      %v1449 = vpack.c.b16 %v1448, %v1443
      %v1451 = vshrl.u32 %v1449, 16
      %v1453 = vshll.u32 %v1449, 16
      %v1455 = vrot.slane %v1453, 1
      %v1456 = vor.u32 %v1451, %v1455
      %1457 = vrot.lane.b32.xlu0 %v1456, 40
      %v1458 = vpop.permute.xlu0 %1457
      %v1461 = vsel %vm492, %v1403, %v1424
      %v1463 = vsel %vm496, %v1461, %v1429
      %v1465 = vsel %vm499, %v1463, %v1441
      %v1467 = vsel %vm502, %v1465, %v1446
      %v1469 = vsel %vm505, %v1467, %v1458
      %v1470 = vsel %vm527, %v1469, 0
      %1472 = vmatpush.bf16.msra.mxu0 0
      %1473 = vmatpush.bf16.msra.mxu0 0
      %1474 = vmatpush.bf16.msra.mxu0 0
      %1475 = vmatpush.bf16.msra.mxu0 0
      %1476 = vmatpush.bf16.msra.mxu0 0
      %1477 = vmatpush.bf16.msra.mxu0 %v523
      %1478 = vmatpush.bf16.msra.mxu0 %v522
      %1479 = vmatpush.bf16.msra.mxu0 %v521
      %1480 = vmatmul.bf16.gmra.mxu0 %v1470
      %v1481 = vpop.f32.mrf.mxu0
      %v1482 = vadd.f32 %v508, %v1481
      %v1483 = vpop.f32.mrf.mxu0
      %1484 = vdwg.mxu0
      %v1485 = vmul.f32 %v1482, 0.2
      %v1486 = vmax.f32 %v1482, %v1485
      %v1487 = vpack.c.bf16 %v1486, %v1486
      %v1489 = vsel %vm549, %v1487, 0
      %1491 = vmatpush.bf16.msra.mxu0 0
      %1492 = vmatpush.bf16.msra.mxu0 0
      %1493 = vmatpush.bf16.msra.mxu0 0
      %1494 = vmatpush.bf16.msra.mxu0 0
      %1495 = vmatpush.bf16.msra.mxu0 0
      %1496 = vmatpush.bf16.msra.mxu0 0
      %1497 = vmatpush.bf16.msra.mxu0 0
      %1498 = vmatpush.bf16.msra.mxu0 %v1489
      %1499 = vmatmul.bf16.gmra.mxu0 %v547
      %v1500 = vpop.f32.mrf.mxu0
      %v1501 = vadd.f32 0.0, %v1500
      %v1502 = vpop.f32.mrf.mxu0
      %1503 = vdwg.mxu0
      %v1504 = vpack.c.bf16 %v1501, %v1501
      %1505 = vmatpush.bf16.msra.mxu0 0
      %1506 = vmatpush.bf16.msra.mxu0 0
      %1507 = vmatpush.bf16.msra.mxu0 0
      %1508 = vmatpush.bf16.msra.mxu0 0
      %1509 = vmatpush.bf16.msra.mxu0 0
      %1510 = vmatpush.bf16.msra.mxu0 0
      %1511 = vmatpush.bf16.msra.mxu0 0
      %1512 = vmatpush.bf16.msra.mxu0 %v1489
      %1513 = vmatmul.bf16.gmra.mxu0 %v568
      %v1514 = vpop.f32.mrf.mxu0
      %v1515 = vadd.f32 0.0, %v1514
      %v1516 = vpop.f32.mrf.mxu0
      %1517 = vdwg.mxu0
      %v1518 = vpack.c.bf16 %v1515, %v1515
      %1520 = vrot.lane.b32.xlu0 %v1504, 16
      %v1521 = vpop.permute.xlu0 %1520
      %s1523 = scalar_lea.vmem [#allocation2], 32
      %1524 = vst.msk [vmem:[%s1523] sm:$0x3] %vm589, %v1521
      %v1526 = vshrl.u32 %v1518, 16
      %v1528 = vrot.slane %v1526, 7
      %v1529 = vshll.u32 %v1518, 16
      %v1531 = vor.u32 %v1528, %v1529
      %v1533 = vld [vmem:[%s1523] sm:$0x7]
      %v1534 = vsel %vm601, %v1531, %v1533
      %1535 = vst [vmem:[%s1523] sm:$0x7] %v1534
      %v1536 = vld [vmem:[%s3] sm:$0xf]
      %v1537 = vld [vmem:[%s3 + $0x4] sm:$0xf]
      %v1538 = vld [vmem:[%s3 + $0x8] sm:$0xf]
      %v1539 = vld [vmem:[%s3 + $0xc] sm:$0xf]
      %v1540 = vld [vmem:[%s3 + $0x10] sm:$0xf]
      %v1541 = vld [vmem:[%s3 + $0x14] sm:$0xf]
      %v1542 = vld [vmem:[%s3 + $0x18] sm:$0xf]
      %v1543 = vld [vmem:[%s3 + $0x1c] sm:$0xf]
      %v1544 = vld [vmem:[%s3 + $0x20] sm:$0xf]
      %v1545 = vld [vmem:[%s3 + $0x24] sm:$0xf]
      %v1546 = vld [vmem:[%s3 + $0x28] sm:$0xf]
      %v1547 = vld [vmem:[%s3 + $0x2c] sm:$0xf]
      %v1548 = vld [vmem:[%s3 + $0x30] sm:$0xf]
      %v1549 = vld [vmem:[%s3 + $0x34] sm:$0xf]
      %v1550 = vld [vmem:[%s3 + $0x38] sm:$0xf]
      %v1551 = vld [vmem:[%s3 + $0x3c] sm:$0xf]
      %v1552 = vld [vmem:[%s3 + $0x40] sm:$0xf]
      %v1553 = vld [vmem:[%s3 + $0x44] sm:$0xf]
      %v1554 = vld [vmem:[%s3 + $0x48] sm:$0xf]
      %v1555 = vld [vmem:[%s3 + $0x4c] sm:$0xf]
      %v1556 = vld [vmem:[%s3 + $0x50] sm:$0xf]
      %v1557 = vld [vmem:[%s3 + $0x54] sm:$0xf]
      %v1558 = vld [vmem:[%s3 + $0x58] sm:$0xf]
      %v1559 = vld [vmem:[%s3 + $0x5c] sm:$0xf]
      %v1560 = vld [vmem:[%s4] sm:$0x1]
      %v1561 = vld [vmem:[%s4 + $0x1] sm:$0x1]
      %v1562 = vld [vmem:[%s4 + $0x2] sm:$0x1]
      %v1563 = vld [vmem:[#allocation2] sm:$0x3]
      %v1564 = vld [vmem:[#allocation2] sm:$0x7]
      %v1565 = vld [vmem:[%s588] sm:$0x3]
      %v1566 = vld [vmem:[%s588] sm:$0x7]
      %v1567 = vld [vmem:[%s725] sm:$0x3]
      %v1568 = vld [vmem:[%s725] sm:$0x7]
      %v1570 = vunpack.c.l.b16 %v1564
      %v1571 = vpack.c.b16 %v1570, %v1570
      %v1573 = vshrl.u32 %v1571, 16
      %v1575 = vshll.u32 %v1571, 16
      %v1577 = vrot.slane %v1575, 1
      %v1578 = vor.u32 %v1573, %v1577
      %1579 = vrot.lane.b32.xlu0 %v1578, 32
      %v1580 = vpop.permute.xlu0 %1579
      %v1582 = vunpack.c.l.b16 %v1565
      %v1583 = vpack.c.b16 %v1582, %v1582
      %1584 = vrot.lane.b32.xlu0 %v1583, 64
      %v1585 = vpop.permute.xlu0 %1584
      %v1587 = vunpack.c.l.b16 %v1566
      %v1588 = vpack.c.b16 %v1587, %v1587
      %v1590 = vshrl.u32 %v1588, 16
      %v1592 = vshll.u32 %v1588, 16
      %v1594 = vrot.slane %v1592, 1
      %v1595 = vor.u32 %v1590, %v1594
      %1596 = vrot.lane.b32.xlu0 %v1595, 96
      %v1597 = vpop.permute.xlu0 %1596
      %v1599 = vunpack.c.l.b16 %v1568
      %v1600 = vpack.c.b16 %v1599, %v1599
      %v1602 = vshrl.u32 %v1600, 16
      %v1604 = vshll.u32 %v1600, 16
      %v1606 = vrot.slane %v1604, 1
      %v1607 = vor.u32 %v1602, %v1606
      %1608 = vrot.lane.b32.xlu0 %v1607, 32
      %v1609 = vpop.permute.xlu0 %1608
      %v1612 = vsel %vm502, %v1563, %v1580
      %vm1613 = vcmask 523264
      %v1615 = vsel %vm1613, %v1612, %v1585
      %vm1616 = vcmask 785408
      %v1618 = vsel %vm1616, %v1615, %v1597
      %v1622 = vsel %vm502, %v1567, %v1609
      %v1623 = vperm.slane %v1560, 0
      %v1648 = vunpack.c.l.b16 %v1536
      %v1649 = vunpack.c.l.b16 %v1537
      %v1650 = vunpack.c.l.b16 %v1538
      %v1651 = vunpack.c.l.b16 %v1539
      %v1652 = vunpack.c.l.b16 %v1540
      %v1653 = vunpack.c.l.b16 %v1541
      %v1654 = vunpack.c.l.b16 %v1542
      %v1655 = vunpack.c.l.b16 %v1543
      %v1656 = vunpack.c.l.b16 %v1544
      %v1657 = vunpack.c.l.b16 %v1545
      %v1658 = vunpack.c.l.b16 %v1546
      %v1659 = vunpack.c.l.b16 %v1547
      %v1660 = vunpack.c.l.b16 %v1548
      %v1661 = vunpack.c.l.b16 %v1549
      %v1662 = vunpack.c.l.b16 %v1550
      %v1663 = vunpack.c.l.b16 %v1551
      %v1664 = vunpack.c.l.b16 %v1552
      %v1665 = vunpack.c.l.b16 %v1553
      %v1666 = vunpack.c.l.b16 %v1554
      %v1667 = vunpack.c.l.b16 %v1555
      %v1668 = vunpack.c.l.b16 %v1556
      %v1669 = vunpack.c.l.b16 %v1557
      %v1670 = vunpack.c.l.b16 %v1558
      %v1671 = vunpack.c.l.b16 %v1559
      %v1672 = vpack.c.b16 %v1649, %v1648
      %v1673 = vpack.c.b16 %v1651, %v1650
      %v1674 = vpack.c.b16 %v1653, %v1652
      %v1675 = vpack.c.b16 %v1655, %v1654
      %v1676 = vpack.c.b16 %v1657, %v1656
      %v1677 = vpack.c.b16 %v1659, %v1658
      %v1678 = vpack.c.b16 %v1661, %v1660
      %v1679 = vpack.c.b16 %v1663, %v1662
      %v1680 = vpack.c.b16 %v1665, %v1664
      %v1681 = vpack.c.b16 %v1667, %v1666
      %v1682 = vpack.c.b16 %v1669, %v1668
      %v1683 = vpack.c.b16 %v1671, %v1670
      %v1696 = vsel %vm1613, %v1622, 0
      %1698 = vmatpush.bf16.msra.mxu0 %v1679
      %1699 = vmatpush.bf16.msra.mxu0 %v1678
      %1700 = vmatpush.bf16.msra.mxu0 %v1677
      %1701 = vmatpush.bf16.msra.mxu0 %v1676
      %1702 = vmatpush.bf16.msra.mxu0 %v1675
      %1703 = vmatpush.bf16.msra.mxu0 %v1674
      %1704 = vmatpush.bf16.msra.mxu0 %v1673
      %1705 = vmatpush.bf16.msra.mxu0 %v1672
      %1706 = vmatmul.bf16.gmra.mxu0 %v1618
      %v1707 = vpop.f32.mrf.mxu0
      %v1708 = vadd.f32 %v1623, %v1707
      %v1709 = vpop.f32.mrf.mxu0
      %1710 = vdwg.mxu0
      %1711 = vmatpush.bf16.msra.mxu0 0
      %1712 = vmatpush.bf16.msra.mxu0 0
      %1713 = vmatpush.bf16.msra.mxu0 0
      %1714 = vmatpush.bf16.msra.mxu0 0
      %1715 = vmatpush.bf16.msra.mxu0 %v1683
      %1716 = vmatpush.bf16.msra.mxu0 %v1682
      %1717 = vmatpush.bf16.msra.mxu0 %v1681
      %1718 = vmatpush.bf16.msra.mxu0 %v1680
      %1719 = vmatmul.bf16.gmra.mxu0 %v1696
      %v1720 = vpop.f32.mrf.mxu0
      %v1721 = vadd.f32 %v1708, %v1720
      %v1722 = vpop.f32.mrf.mxu0
      %1723 = vdwg.mxu0
      %v1724 = vmul.f32 %v1721, 0.2
      %v1725 = vmax.f32 %v1721, %v1724
      %v1726 = vperm.slane %v1561, 0
      %v1727 = vmul.f32 %v1725, %v1726
      %v1728 = vperm.slane %v1562, 0
      %v1729 = vadd.f32 %v1727, %v1728
      %v1730 = vpack.c.bf16 %v1729, %v1729
      %vm1731 = vcmask 31744
      %v1732 = vsel %vm1731, %v423, 0
      %vm1734 = vcmask 1041408
      %v1736 = vsel %vm1734, %v1730, 0
      %1738 = vmatpush.bf16.msra.mxu0 0
      %1739 = vmatpush.bf16.msra.mxu0 0
      %1740 = vmatpush.bf16.msra.mxu0 0
      %1741 = vmatpush.bf16.msra.mxu0 0
      %1742 = vmatpush.bf16.msra.mxu0 0
      %1743 = vmatpush.bf16.msra.mxu0 0
      %1744 = vmatpush.bf16.msra.mxu0 0
      %1745 = vmatpush.bf16.msra.mxu0 %v1736
      %1746 = vmatmul.bf16.gmra.mxu0 %v1732
      %v1747 = vpop.f32.mrf.mxu0
      %v1748 = vadd.f32 0.0, %v1747
      %v1749 = vpop.f32.mrf.mxu0
      %1750 = vdwg.mxu0
      %v1751 = vpack.c.bf16 %v1748, %v1748
      %v1752 = vsel %vm1731, %v428, 0
      %1754 = vmatpush.bf16.msra.mxu0 0
      %1755 = vmatpush.bf16.msra.mxu0 0
      %1756 = vmatpush.bf16.msra.mxu0 0
      %1757 = vmatpush.bf16.msra.mxu0 0
      %1758 = vmatpush.bf16.msra.mxu0 0
      %1759 = vmatpush.bf16.msra.mxu0 0
      %1760 = vmatpush.bf16.msra.mxu0 0
      %1761 = vmatpush.bf16.msra.mxu0 %v1736
      %1762 = vmatmul.bf16.gmra.mxu0 %v1752
      %v1763 = vpop.f32.mrf.mxu0
      %v1764 = vadd.f32 0.0, %v1763
      %v1765 = vpop.f32.mrf.mxu0
      %1766 = vdwg.mxu0
      %v1767 = vpack.c.bf16 %v1764, %v1764
      %v1769 = vrot.slane %v1751, 2
      %v1772 = vsel %vm1734, %v1751, %v1769
      %1774 = vrot.lane.b32.xlu0 %v1772, 32
      %v1775 = vpop.permute.xlu0 %1774
      %s1777 = scalar_lea.vmem [#allocation3], 2
      %vm1778 = vcmask 516352
      %1779 = vst.msk [vmem:[%s1777] sm:$0x1] %vm1778, %v1775
      %v1781 = vrot.slane %v1767, 2
      %v1784 = vsel %vm1734, %v1767, %v1781
      %v1785 = vshrl.u32 %v1784, 16
      %v1787 = vrot.slane %v1785, 7
      %v1788 = vshll.u32 %v1784, 16
      %v1790 = vor.u32 %v1787, %v1788
      %vm1792 = vcmask 254976
      %vm1793 = vsmask.f32 1282
      %vm1794 = vmand %vm1792, %vm1793
      %v1795 = vld [vmem:[%s1777] sm:$0x3]
      %v1796 = vsel %vm1794, %v1790, %v1795
      %1797 = vst [vmem:[%s1777] sm:$0x3] %v1796
      %v1798 = vld [vmem:[%s725] sm:$0x3]
      %v1799 = vld [vmem:[%s725] sm:$0x7]
      %v1800 = vld [vmem:[%s858] sm:$0x3]
      %v1801 = vld [vmem:[%s858] sm:$0x7]
      %v1802 = vld [vmem:[%s991] sm:$0x3]
      %v1803 = vld [vmem:[%s991] sm:$0x7]
      %v1805 = vunpack.c.l.b16 %v1799
      %v1806 = vpack.c.b16 %v1805, %v1805
      %v1808 = vshrl.u32 %v1806, 16
      %v1810 = vshll.u32 %v1806, 16
      %v1812 = vrot.slane %v1810, 1
      %v1813 = vor.u32 %v1808, %v1812
      %1814 = vrot.lane.b32.xlu0 %v1813, 32
      %v1815 = vpop.permute.xlu0 %1814
      %v1817 = vunpack.c.l.b16 %v1800
      %v1818 = vpack.c.b16 %v1817, %v1817
      %1819 = vrot.lane.b32.xlu0 %v1818, 64
      %v1820 = vpop.permute.xlu0 %1819
      %v1822 = vunpack.c.l.b16 %v1801
      %v1823 = vpack.c.b16 %v1822, %v1822
      %v1825 = vshrl.u32 %v1823, 16
      %v1827 = vshll.u32 %v1823, 16
      %v1829 = vrot.slane %v1827, 1
      %v1830 = vor.u32 %v1825, %v1829
      %1831 = vrot.lane.b32.xlu0 %v1830, 96
      %v1832 = vpop.permute.xlu0 %1831
      %v1834 = vunpack.c.l.b16 %v1803
      %v1835 = vpack.c.b16 %v1834, %v1834
      %v1837 = vshrl.u32 %v1835, 16
      %v1839 = vshll.u32 %v1835, 16
      %v1841 = vrot.slane %v1839, 1
      %v1842 = vor.u32 %v1837, %v1841
      %1843 = vrot.lane.b32.xlu0 %v1842, 32
      %v1844 = vpop.permute.xlu0 %1843
      %v1847 = vsel %vm502, %v1798, %v1815
      %v1849 = vsel %vm1613, %v1847, %v1820
      %v1851 = vsel %vm1616, %v1849, %v1832
      %v1855 = vsel %vm502, %v1802, %v1844
      %v1856 = vsel %vm1613, %v1855, 0
      %1858 = vmatpush.bf16.msra.mxu0 %v1679
      %1859 = vmatpush.bf16.msra.mxu0 %v1678
      %1860 = vmatpush.bf16.msra.mxu0 %v1677
      %1861 = vmatpush.bf16.msra.mxu0 %v1676
      %1862 = vmatpush.bf16.msra.mxu0 %v1675
      %1863 = vmatpush.bf16.msra.mxu0 %v1674
      %1864 = vmatpush.bf16.msra.mxu0 %v1673
      %1865 = vmatpush.bf16.msra.mxu0 %v1672
      %1866 = vmatmul.bf16.gmra.mxu0 %v1851
      %v1867 = vpop.f32.mrf.mxu0
      %v1868 = vadd.f32 %v1623, %v1867
      %v1869 = vpop.f32.mrf.mxu0
      %1870 = vdwg.mxu0
      %1871 = vmatpush.bf16.msra.mxu0 0
      %1872 = vmatpush.bf16.msra.mxu0 0
      %1873 = vmatpush.bf16.msra.mxu0 0
      %1874 = vmatpush.bf16.msra.mxu0 0
      %1875 = vmatpush.bf16.msra.mxu0 %v1683
      %1876 = vmatpush.bf16.msra.mxu0 %v1682
      %1877 = vmatpush.bf16.msra.mxu0 %v1681
      %1878 = vmatpush.bf16.msra.mxu0 %v1680
      %1879 = vmatmul.bf16.gmra.mxu0 %v1856
      %v1880 = vpop.f32.mrf.mxu0
      %v1881 = vadd.f32 %v1868, %v1880
      %v1882 = vpop.f32.mrf.mxu0
      %1883 = vdwg.mxu0
      %v1884 = vmul.f32 %v1881, 0.2
      %v1885 = vmax.f32 %v1881, %v1884
      %v1886 = vmul.f32 %v1885, %v1726
      %v1887 = vadd.f32 %v1886, %v1728
      %v1888 = vpack.c.bf16 %v1887, %v1887
      %v1890 = vsel %vm1734, %v1888, 0
      %1892 = vmatpush.bf16.msra.mxu0 0
      %1893 = vmatpush.bf16.msra.mxu0 0
      %1894 = vmatpush.bf16.msra.mxu0 0
      %1895 = vmatpush.bf16.msra.mxu0 0
      %1896 = vmatpush.bf16.msra.mxu0 0
      %1897 = vmatpush.bf16.msra.mxu0 0
      %1898 = vmatpush.bf16.msra.mxu0 0
      %1899 = vmatpush.bf16.msra.mxu0 %v1890
      %1900 = vmatmul.bf16.gmra.mxu0 %v1732
      %v1901 = vpop.f32.mrf.mxu0
      %v1902 = vadd.f32 0.0, %v1901
      %v1903 = vpop.f32.mrf.mxu0
      %1904 = vdwg.mxu0
      %v1905 = vpack.c.bf16 %v1902, %v1902
      %1906 = vmatpush.bf16.msra.mxu0 0
      %1907 = vmatpush.bf16.msra.mxu0 0
      %1908 = vmatpush.bf16.msra.mxu0 0
      %1909 = vmatpush.bf16.msra.mxu0 0
      %1910 = vmatpush.bf16.msra.mxu0 0
      %1911 = vmatpush.bf16.msra.mxu0 0
      %1912 = vmatpush.bf16.msra.mxu0 0
      %1913 = vmatpush.bf16.msra.mxu0 %v1890
      %1914 = vmatmul.bf16.gmra.mxu0 %v1752
      %v1915 = vpop.f32.mrf.mxu0
      %v1916 = vadd.f32 0.0, %v1915
      %v1917 = vpop.f32.mrf.mxu0
      %1918 = vdwg.mxu0
      %v1919 = vpack.c.bf16 %v1916, %v1916
      %v1921 = vrot.slane %v1905, 2
      %v1924 = vsel %vm1734, %v1905, %v1921
      %1926 = vrot.lane.b32.xlu0 %v1924, 32
      %v1927 = vpop.permute.xlu0 %1926
      %s1929 = scalar_lea.vmem [#allocation3], 4
      %1930 = vst.msk [vmem:[%s1929] sm:$0x1] %vm1778, %v1927
      %v1932 = vrot.slane %v1919, 2
      %v1935 = vsel %vm1734, %v1919, %v1932
      %v1936 = vshrl.u32 %v1935, 16
      %v1938 = vrot.slane %v1936, 7
      %v1939 = vshll.u32 %v1935, 16
      %v1941 = vor.u32 %v1938, %v1939
      %v1943 = vld [vmem:[%s1929] sm:$0x3]
      %v1944 = vsel %vm1794, %v1941, %v1943
      %1945 = vst [vmem:[%s1929] sm:$0x3] %v1944
      %v1946 = vld [vmem:[%s991] sm:$0x3]
      %v1947 = vld [vmem:[%s991] sm:$0x7]
      %v1948 = vld [vmem:[%s1124] sm:$0x3]
      %v1949 = vld [vmem:[%s1124] sm:$0x7]
      %v1950 = vld [vmem:[%s1257] sm:$0x3]
      %v1951 = vld [vmem:[%s1257] sm:$0x7]
      %v1953 = vunpack.c.l.b16 %v1947
      %v1954 = vpack.c.b16 %v1953, %v1953
      %v1956 = vshrl.u32 %v1954, 16
      %v1958 = vshll.u32 %v1954, 16
      %v1960 = vrot.slane %v1958, 1
      %v1961 = vor.u32 %v1956, %v1960
      %1962 = vrot.lane.b32.xlu0 %v1961, 32
      %v1963 = vpop.permute.xlu0 %1962
      %v1965 = vunpack.c.l.b16 %v1948
      %v1966 = vpack.c.b16 %v1965, %v1965
      %1967 = vrot.lane.b32.xlu0 %v1966, 64
      %v1968 = vpop.permute.xlu0 %1967
      %v1970 = vunpack.c.l.b16 %v1949
      %v1971 = vpack.c.b16 %v1970, %v1970
      %v1973 = vshrl.u32 %v1971, 16
      %v1975 = vshll.u32 %v1971, 16
      %v1977 = vrot.slane %v1975, 1
      %v1978 = vor.u32 %v1973, %v1977
      %1979 = vrot.lane.b32.xlu0 %v1978, 96
      %v1980 = vpop.permute.xlu0 %1979
      %v1982 = vunpack.c.l.b16 %v1951
      %v1983 = vpack.c.b16 %v1982, %v1982
      %v1985 = vshrl.u32 %v1983, 16
      %v1987 = vshll.u32 %v1983, 16
      %v1989 = vrot.slane %v1987, 1
      %v1990 = vor.u32 %v1985, %v1989
      %1991 = vrot.lane.b32.xlu0 %v1990, 32
      %v1992 = vpop.permute.xlu0 %1991
      %v1995 = vsel %vm502, %v1946, %v1963
      %v1997 = vsel %vm1613, %v1995, %v1968
      %v1999 = vsel %vm1616, %v1997, %v1980
      %v2003 = vsel %vm502, %v1950, %v1992
      %v2004 = vsel %vm1613, %v2003, 0
      %2006 = vmatpush.bf16.msra.mxu0 %v1679
      %2007 = vmatpush.bf16.msra.mxu0 %v1678
      %2008 = vmatpush.bf16.msra.mxu0 %v1677
      %2009 = vmatpush.bf16.msra.mxu0 %v1676
      %2010 = vmatpush.bf16.msra.mxu0 %v1675
      %2011 = vmatpush.bf16.msra.mxu0 %v1674
      %2012 = vmatpush.bf16.msra.mxu0 %v1673
      %2013 = vmatpush.bf16.msra.mxu0 %v1672
      %2014 = vmatmul.bf16.gmra.mxu0 %v1999
      %v2015 = vpop.f32.mrf.mxu0
      %v2016 = vadd.f32 %v1623, %v2015
      %v2017 = vpop.f32.mrf.mxu0
      %2018 = vdwg.mxu0
      %2019 = vmatpush.bf16.msra.mxu0 0
      %2020 = vmatpush.bf16.msra.mxu0 0
      %2021 = vmatpush.bf16.msra.mxu0 0
      %2022 = vmatpush.bf16.msra.mxu0 0
      %2023 = vmatpush.bf16.msra.mxu0 %v1683
      %2024 = vmatpush.bf16.msra.mxu0 %v1682
      %2025 = vmatpush.bf16.msra.mxu0 %v1681
      %2026 = vmatpush.bf16.msra.mxu0 %v1680
      %2027 = vmatmul.bf16.gmra.mxu0 %v2004
      %v2028 = vpop.f32.mrf.mxu0
      %v2029 = vadd.f32 %v2016, %v2028
      %v2030 = vpop.f32.mrf.mxu0
      %2031 = vdwg.mxu0
      %v2032 = vmul.f32 %v2029, 0.2
      %v2033 = vmax.f32 %v2029, %v2032
      %v2034 = vmul.f32 %v2033, %v1726
      %v2035 = vadd.f32 %v2034, %v1728
      %v2036 = vpack.c.bf16 %v2035, %v2035
      %v2038 = vsel %vm1734, %v2036, 0
      %2040 = vmatpush.bf16.msra.mxu0 0
      %2041 = vmatpush.bf16.msra.mxu0 0
      %2042 = vmatpush.bf16.msra.mxu0 0
      %2043 = vmatpush.bf16.msra.mxu0 0
      %2044 = vmatpush.bf16.msra.mxu0 0
      %2045 = vmatpush.bf16.msra.mxu0 0
      %2046 = vmatpush.bf16.msra.mxu0 0
      %2047 = vmatpush.bf16.msra.mxu0 %v2038
      %2048 = vmatmul.bf16.gmra.mxu0 %v1732
      %v2049 = vpop.f32.mrf.mxu0
      %v2050 = vadd.f32 0.0, %v2049
      %v2051 = vpop.f32.mrf.mxu0
      %2052 = vdwg.mxu0
      %v2053 = vpack.c.bf16 %v2050, %v2050
      %2054 = vmatpush.bf16.msra.mxu0 0
      %2055 = vmatpush.bf16.msra.mxu0 0
      %2056 = vmatpush.bf16.msra.mxu0 0
      %2057 = vmatpush.bf16.msra.mxu0 0
      %2058 = vmatpush.bf16.msra.mxu0 0
      %2059 = vmatpush.bf16.msra.mxu0 0
      %2060 = vmatpush.bf16.msra.mxu0 0
      %2061 = vmatpush.bf16.msra.mxu0 %v2038
      %2062 = vmatmul.bf16.gmra.mxu0 %v1752
      %v2063 = vpop.f32.mrf.mxu0
      %v2064 = vadd.f32 0.0, %v2063
      %v2065 = vpop.f32.mrf.mxu0
      %2066 = vdwg.mxu0
      %v2067 = vpack.c.bf16 %v2064, %v2064
      %v2069 = vrot.slane %v2053, 2
      %v2072 = vsel %vm1734, %v2053, %v2069
      %2074 = vrot.lane.b32.xlu0 %v2072, 32
      %v2075 = vpop.permute.xlu0 %2074
      %s2077 = scalar_lea.vmem [#allocation3], 6
      %2078 = vst.msk [vmem:[%s2077] sm:$0x1] %vm1778, %v2075
      %v2080 = vrot.slane %v2067, 2
      %v2083 = vsel %vm1734, %v2067, %v2080
      %v2084 = vshrl.u32 %v2083, 16
      %v2086 = vrot.slane %v2084, 7
      %v2087 = vshll.u32 %v2083, 16
      %v2089 = vor.u32 %v2086, %v2087
      %v2091 = vld [vmem:[%s2077] sm:$0x3]
      %v2092 = vsel %vm1794, %v2089, %v2091
      %2093 = vst [vmem:[%s2077] sm:$0x3] %v2092
      %v2094 = vld [vmem:[%s1257] sm:$0x3]
      %v2095 = vld [vmem:[%s1257] sm:$0x7]
      %v2096 = vld [vmem:[%s1390] sm:$0x3]
      %v2097 = vld [vmem:[%s1390] sm:$0x7]
      %v2098 = vld [vmem:[%s1523] sm:$0x3]
      %v2099 = vld [vmem:[%s1523] sm:$0x7]
      %v2101 = vunpack.c.l.b16 %v2095
      %v2102 = vpack.c.b16 %v2101, %v2101
      %v2104 = vshrl.u32 %v2102, 16
      %v2106 = vshll.u32 %v2102, 16
      %v2108 = vrot.slane %v2106, 1
      %v2109 = vor.u32 %v2104, %v2108
      %2110 = vrot.lane.b32.xlu0 %v2109, 32
      %v2111 = vpop.permute.xlu0 %2110
      %v2113 = vunpack.c.l.b16 %v2096
      %v2114 = vpack.c.b16 %v2113, %v2113
      %2115 = vrot.lane.b32.xlu0 %v2114, 64
      %v2116 = vpop.permute.xlu0 %2115
      %v2118 = vunpack.c.l.b16 %v2097
      %v2119 = vpack.c.b16 %v2118, %v2118
      %v2121 = vshrl.u32 %v2119, 16
      %v2123 = vshll.u32 %v2119, 16
      %v2125 = vrot.slane %v2123, 1
      %v2126 = vor.u32 %v2121, %v2125
      %2127 = vrot.lane.b32.xlu0 %v2126, 96
      %v2128 = vpop.permute.xlu0 %2127
      %v2130 = vunpack.c.l.b16 %v2099
      %v2131 = vpack.c.b16 %v2130, %v2130
      %v2133 = vshrl.u32 %v2131, 16
      %v2135 = vshll.u32 %v2131, 16
      %v2137 = vrot.slane %v2135, 1
      %v2138 = vor.u32 %v2133, %v2137
      %2139 = vrot.lane.b32.xlu0 %v2138, 32
      %v2140 = vpop.permute.xlu0 %2139
      %v2143 = vsel %vm502, %v2094, %v2111
      %v2145 = vsel %vm1613, %v2143, %v2116
      %v2147 = vsel %vm1616, %v2145, %v2128
      %v2151 = vsel %vm502, %v2098, %v2140
      %v2152 = vsel %vm1613, %v2151, 0
      %2154 = vmatpush.bf16.msra.mxu0 %v1679
      %2155 = vmatpush.bf16.msra.mxu0 %v1678
      %2156 = vmatpush.bf16.msra.mxu0 %v1677
      %2157 = vmatpush.bf16.msra.mxu0 %v1676
      %2158 = vmatpush.bf16.msra.mxu0 %v1675
      %2159 = vmatpush.bf16.msra.mxu0 %v1674
      %2160 = vmatpush.bf16.msra.mxu0 %v1673
      %2161 = vmatpush.bf16.msra.mxu0 %v1672
      %2162 = vmatmul.bf16.gmra.mxu0 %v2147
      %v2163 = vpop.f32.mrf.mxu0
      %v2164 = vadd.f32 %v1623, %v2163
      %v2165 = vpop.f32.mrf.mxu0
      %2166 = vdwg.mxu0
      %2167 = vmatpush.bf16.msra.mxu0 0
      %2168 = vmatpush.bf16.msra.mxu0 0
      %2169 = vmatpush.bf16.msra.mxu0 0
      %2170 = vmatpush.bf16.msra.mxu0 0
      %2171 = vmatpush.bf16.msra.mxu0 %v1683
      %2172 = vmatpush.bf16.msra.mxu0 %v1682
      %2173 = vmatpush.bf16.msra.mxu0 %v1681
      %2174 = vmatpush.bf16.msra.mxu0 %v1680
      %2175 = vmatmul.bf16.gmra.mxu0 %v2152
      %v2176 = vpop.f32.mrf.mxu0
      %v2177 = vadd.f32 %v2164, %v2176
      %v2178 = vpop.f32.mrf.mxu0
      %2179 = vdwg.mxu0
      %v2180 = vmul.f32 %v2177, 0.2
      %v2181 = vmax.f32 %v2177, %v2180
      %v2182 = vmul.f32 %v2181, %v1726
      %v2183 = vadd.f32 %v2182, %v1728
      %v2184 = vpack.c.bf16 %v2183, %v2183
      %v2186 = vsel %vm1734, %v2184, 0
      %2188 = vmatpush.bf16.msra.mxu0 0
      %2189 = vmatpush.bf16.msra.mxu0 0
      %2190 = vmatpush.bf16.msra.mxu0 0
      %2191 = vmatpush.bf16.msra.mxu0 0
      %2192 = vmatpush.bf16.msra.mxu0 0
      %2193 = vmatpush.bf16.msra.mxu0 0
      %2194 = vmatpush.bf16.msra.mxu0 0
      %2195 = vmatpush.bf16.msra.mxu0 %v2186
      %2196 = vmatmul.bf16.gmra.mxu0 %v1732
      %v2197 = vpop.f32.mrf.mxu0
      %v2198 = vadd.f32 0.0, %v2197
      %v2199 = vpop.f32.mrf.mxu0
      %2200 = vdwg.mxu0
      %v2201 = vpack.c.bf16 %v2198, %v2198
      %2202 = vmatpush.bf16.msra.mxu0 0
      %2203 = vmatpush.bf16.msra.mxu0 0
      %2204 = vmatpush.bf16.msra.mxu0 0
      %2205 = vmatpush.bf16.msra.mxu0 0
      %2206 = vmatpush.bf16.msra.mxu0 0
      %2207 = vmatpush.bf16.msra.mxu0 0
      %2208 = vmatpush.bf16.msra.mxu0 0
      %2209 = vmatpush.bf16.msra.mxu0 %v2186
      %2210 = vmatmul.bf16.gmra.mxu0 %v1752
      %v2211 = vpop.f32.mrf.mxu0
      %v2212 = vadd.f32 0.0, %v2211
      %v2213 = vpop.f32.mrf.mxu0
      %2214 = vdwg.mxu0
      %v2215 = vpack.c.bf16 %v2212, %v2212
      %v2217 = vrot.slane %v2201, 2
      %v2220 = vsel %vm1734, %v2201, %v2217
      %2222 = vrot.lane.b32.xlu0 %v2220, 32
      %v2223 = vpop.permute.xlu0 %2222
      %s2225 = scalar_lea.vmem [#allocation3], 8
      %2226 = vst.msk [vmem:[%s2225] sm:$0x1] %vm1778, %v2223
      %v2228 = vrot.slane %v2215, 2
      %v2231 = vsel %vm1734, %v2215, %v2228
      %v2232 = vshrl.u32 %v2231, 16
      %v2234 = vrot.slane %v2232, 7
      %v2235 = vshll.u32 %v2231, 16
      %v2237 = vor.u32 %v2234, %v2235
      %v2239 = vld [vmem:[%s2225] sm:$0x3]
      %v2240 = vsel %vm1794, %v2237, %v2239
      %2241 = vst [vmem:[%s2225] sm:$0x3] %v2240
      %v2242 = vld [vmem:[%s5] sm:$0xf]
      %v2243 = vld [vmem:[%s5 + $0x4] sm:$0xf]
      %v2244 = vld [vmem:[%s5 + $0x8] sm:$0xf]
      %v2245 = vld [vmem:[%s5 + $0xc] sm:$0xf]
      %v2246 = vld [vmem:[%s5 + $0x10] sm:$0xf]
      %v2247 = vld [vmem:[%s5 + $0x14] sm:$0xf]
      %v2248 = vld [vmem:[%s5 + $0x18] sm:$0xf]
      %v2249 = vld [vmem:[%s5 + $0x1c] sm:$0xf]
      %v2250 = vld [vmem:[%s5 + $0x20] sm:$0xf]
      %v2251 = vld [vmem:[%s5 + $0x24] sm:$0xf]
      %v2252 = vld [vmem:[%s5 + $0x28] sm:$0xf]
      %v2253 = vld [vmem:[%s5 + $0x2c] sm:$0xf]
      %v2254 = vld [vmem:[%s5 + $0x30] sm:$0xf]
      %v2255 = vld [vmem:[%s5 + $0x34] sm:$0xf]
      %v2256 = vld [vmem:[%s5 + $0x38] sm:$0xf]
      %v2257 = vld [vmem:[%s5 + $0x3c] sm:$0xf]
      %v2258 = vld [vmem:[%s5 + $0x40] sm:$0xf]
      %v2259 = vld [vmem:[%s5 + $0x44] sm:$0xf]
      %v2260 = vld [vmem:[%s5 + $0x48] sm:$0xf]
      %v2261 = vld [vmem:[%s5 + $0x4c] sm:$0xf]
      %v2262 = vld [vmem:[%s5 + $0x50] sm:$0xf]
      %v2263 = vld [vmem:[%s5 + $0x54] sm:$0xf]
      %v2264 = vld [vmem:[%s5 + $0x58] sm:$0xf]
      %v2265 = vld [vmem:[%s5 + $0x5c] sm:$0xf]
      %v2266 = vld [vmem:[%s5 + $0x60] sm:$0xf]
      %v2267 = vld [vmem:[%s5 + $0x64] sm:$0xf]
      %v2268 = vld [vmem:[%s5 + $0x68] sm:$0xf]
      %v2269 = vld [vmem:[%s5 + $0x6c] sm:$0xf]
      %v2270 = vld [vmem:[%s5 + $0x70] sm:$0xf]
      %v2271 = vld [vmem:[%s5 + $0x74] sm:$0xf]
      %v2272 = vld [vmem:[%s5 + $0x78] sm:$0xf]
      %v2273 = vld [vmem:[%s5 + $0x7c] sm:$0xf]
      %v2274 = vld [vmem:[%s5 + $0x80] sm:$0xf]
      %v2275 = vld [vmem:[%s5 + $0x84] sm:$0xf]
      %v2276 = vld [vmem:[%s5 + $0x88] sm:$0xf]
      %v2277 = vld [vmem:[%s5 + $0x8c] sm:$0xf]
      %v2278 = vld [vmem:[%s5 + $0x90] sm:$0xf]
      %v2279 = vld [vmem:[%s5 + $0x94] sm:$0xf]
      %v2280 = vld [vmem:[%s5 + $0x98] sm:$0xf]
      %v2281 = vld [vmem:[%s5 + $0x9c] sm:$0xf]
      %v2282 = vld [vmem:[%s5 + $0xa0] sm:$0xf]
      %v2283 = vld [vmem:[%s5 + $0xa4] sm:$0xf]
      %v2284 = vld [vmem:[%s5 + $0xa8] sm:$0xf]
      %v2285 = vld [vmem:[%s5 + $0xac] sm:$0xf]
      %v2286 = vld [vmem:[%s5 + $0xb0] sm:$0xf]
      %v2287 = vld [vmem:[%s5 + $0xb4] sm:$0xf]
      %v2288 = vld [vmem:[%s5 + $0xb8] sm:$0xf]
      %v2289 = vld [vmem:[%s5 + $0xbc] sm:$0xf]
      %v2290 = vld [vmem:[%s6] sm:$0x1]
      %v2291 = vld [vmem:[%s6 + $0x1] sm:$0x1]
      %v2292 = vld [vmem:[%s6 + $0x2] sm:$0x1]
      %v2293 = vld [vmem:[#allocation3] sm:$0x1]
      %v2294 = vld [vmem:[#allocation3] sm:$0x3]
      %v2295 = vld [vmem:[%s1777] sm:$0x1]
      %v2296 = vld [vmem:[%s1777] sm:$0x3]
      %v2297 = vld [vmem:[%s1929] sm:$0x1]
      %v2298 = vld [vmem:[%s1929] sm:$0x3]
      %2300 = vst [vmem:[#allocation1] ss:$4 sm:$0xff] %v2294
      %v2301 = vld.sshfl [vmem:[#allocation1] sm:$0xff pattern:$0x73625140]
      %v2302 = vshrl.u32 %v2301, 16
      %v2304 = vshll.u32 %v2301, 16
      %v2306 = vrot.slane %v2304, 1
      %v2307 = vor.u32 %v2302, %v2306
      %2308 = vrot.lane.b32.xlu0 %v2307, 64
      %v2309 = vpop.permute.xlu0 %2308
      %2311 = vst [vmem:[#allocation1] ss:$4 sm:$0xff] %v2296
      %v2312 = vld.sshfl [vmem:[#allocation1] sm:$0xff pattern:$0x73625140]
      %v2313 = vshrl.u32 %v2312, 16
      %v2315 = vshll.u32 %v2312, 16
      %v2317 = vrot.slane %v2315, 1
      %v2318 = vor.u32 %v2313, %v2317
      %2319 = vrot.lane.b32.xlu0 %v2318, 64
      %v2320 = vpop.permute.xlu0 %2319
      %2322 = vst [vmem:[#allocation1] ss:$4 sm:$0xff] %v2298
      %v2323 = vld.sshfl [vmem:[#allocation1] sm:$0xff pattern:$0x73625140]
      %v2324 = vshrl.u32 %v2323, 16
      %v2326 = vshll.u32 %v2323, 16
      %v2328 = vrot.slane %v2326, 1
      %v2329 = vor.u32 %v2324, %v2328
      %2330 = vrot.lane.b32.xlu0 %v2329, 64
      %v2331 = vpop.permute.xlu0 %2330
      %v2334 = vsel %vm1613, %v2293, %v2309
      %v2338 = vsel %vm1613, %v2295, %v2320
      %v2342 = vsel %vm1613, %v2297, %v2331
      %v2344 = vperm.slane %v2290, 0
      %v2393 = vunpack.c.l.b16 %v2242
      %v2394 = vunpack.c.l.b16 %v2243
      %v2395 = vunpack.c.l.b16 %v2244
      %v2396 = vunpack.c.l.b16 %v2245
      %v2397 = vunpack.c.l.b16 %v2246
      %v2398 = vunpack.c.l.b16 %v2247
      %v2399 = vunpack.c.l.b16 %v2248
      %v2400 = vunpack.c.l.b16 %v2249
      %v2401 = vunpack.c.l.b16 %v2250
      %v2402 = vunpack.c.l.b16 %v2251
      %v2403 = vunpack.c.l.b16 %v2252
      %v2404 = vunpack.c.l.b16 %v2253
      %v2405 = vunpack.c.l.b16 %v2254
      %v2406 = vunpack.c.l.b16 %v2255
      %v2407 = vunpack.c.l.b16 %v2256
      %v2408 = vunpack.c.l.b16 %v2257
      %v2409 = vunpack.c.l.b16 %v2258
      %v2410 = vunpack.c.l.b16 %v2259
      %v2411 = vunpack.c.l.b16 %v2260
      %v2412 = vunpack.c.l.b16 %v2261
      %v2413 = vunpack.c.l.b16 %v2262
      %v2414 = vunpack.c.l.b16 %v2263
      %v2415 = vunpack.c.l.b16 %v2264
      %v2416 = vunpack.c.l.b16 %v2265
      %v2417 = vunpack.c.l.b16 %v2266
      %v2418 = vunpack.c.l.b16 %v2267
      %v2419 = vunpack.c.l.b16 %v2268
      %v2420 = vunpack.c.l.b16 %v2269
      %v2421 = vunpack.c.l.b16 %v2270
      %v2422 = vunpack.c.l.b16 %v2271
      %v2423 = vunpack.c.l.b16 %v2272
      %v2424 = vunpack.c.l.b16 %v2273
      %v2425 = vunpack.c.l.b16 %v2274
      %v2426 = vunpack.c.l.b16 %v2275
      %v2427 = vunpack.c.l.b16 %v2276
      %v2428 = vunpack.c.l.b16 %v2277
      %v2429 = vunpack.c.l.b16 %v2278
      %v2430 = vunpack.c.l.b16 %v2279
      %v2431 = vunpack.c.l.b16 %v2280
      %v2432 = vunpack.c.l.b16 %v2281
      %v2433 = vunpack.c.l.b16 %v2282
      %v2434 = vunpack.c.l.b16 %v2283
      %v2435 = vunpack.c.l.b16 %v2284
      %v2436 = vunpack.c.l.b16 %v2285
      %v2437 = vunpack.c.l.b16 %v2286
      %v2438 = vunpack.c.l.b16 %v2287
      %v2439 = vunpack.c.l.b16 %v2288
      %v2440 = vunpack.c.l.b16 %v2289
      %v2441 = vpack.c.b16 %v2394, %v2393
      %v2442 = vpack.c.b16 %v2396, %v2395
      %v2443 = vpack.c.b16 %v2398, %v2397
      %v2444 = vpack.c.b16 %v2400, %v2399
      %v2445 = vpack.c.b16 %v2402, %v2401
      %v2446 = vpack.c.b16 %v2404, %v2403
      %v2447 = vpack.c.b16 %v2406, %v2405
      %v2448 = vpack.c.b16 %v2408, %v2407
      %v2449 = vpack.c.b16 %v2410, %v2409
      %v2450 = vpack.c.b16 %v2412, %v2411
      %v2451 = vpack.c.b16 %v2414, %v2413
      %v2452 = vpack.c.b16 %v2416, %v2415
      %v2453 = vpack.c.b16 %v2418, %v2417
      %v2454 = vpack.c.b16 %v2420, %v2419
      %v2455 = vpack.c.b16 %v2422, %v2421
      %v2456 = vpack.c.b16 %v2424, %v2423
      %v2457 = vpack.c.b16 %v2426, %v2425
      %v2458 = vpack.c.b16 %v2428, %v2427
      %v2459 = vpack.c.b16 %v2430, %v2429
      %v2460 = vpack.c.b16 %v2432, %v2431
      %v2461 = vpack.c.b16 %v2434, %v2433
      %v2462 = vpack.c.b16 %v2436, %v2435
      %v2463 = vpack.c.b16 %v2438, %v2437
      %v2464 = vpack.c.b16 %v2440, %v2439
      %2489 = vmatpush.bf16.msra.mxu0 %v2448
      %2490 = vmatpush.bf16.msra.mxu0 %v2447
      %2491 = vmatpush.bf16.msra.mxu0 %v2446
      %2492 = vmatpush.bf16.msra.mxu0 %v2445
      %2493 = vmatpush.bf16.msra.mxu0 %v2444
      %2494 = vmatpush.bf16.msra.mxu0 %v2443
      %2495 = vmatpush.bf16.msra.mxu0 %v2442
      %2496 = vmatpush.bf16.msra.mxu0 %v2441
      %2497 = vmatmul.bf16.gmra.mxu0 %v2334
      %v2498 = vpop.f32.mrf.mxu0
      %v2499 = vadd.f32 %v2344, %v2498
      %v2500 = vpop.f32.mrf.mxu0
      %2501 = vdwg.mxu0
      %2502 = vmatpush.bf16.msra.mxu0 %v2456
      %2503 = vmatpush.bf16.msra.mxu0 %v2455
      %2504 = vmatpush.bf16.msra.mxu0 %v2454
      %2505 = vmatpush.bf16.msra.mxu0 %v2453
      %2506 = vmatpush.bf16.msra.mxu0 %v2452
      %2507 = vmatpush.bf16.msra.mxu0 %v2451
      %2508 = vmatpush.bf16.msra.mxu0 %v2450
      %2509 = vmatpush.bf16.msra.mxu0 %v2449
      %2510 = vmatmul.bf16.gmra.mxu0 %v2338
      %v2511 = vpop.f32.mrf.mxu0
      %v2512 = vadd.f32 %v2499, %v2511
      %v2513 = vpop.f32.mrf.mxu0
      %2514 = vdwg.mxu0
      %2515 = vmatpush.bf16.msra.mxu0 %v2464
      %2516 = vmatpush.bf16.msra.mxu0 %v2463
      %2517 = vmatpush.bf16.msra.mxu0 %v2462
      %2518 = vmatpush.bf16.msra.mxu0 %v2461
      %2519 = vmatpush.bf16.msra.mxu0 %v2460
      %2520 = vmatpush.bf16.msra.mxu0 %v2459
      %2521 = vmatpush.bf16.msra.mxu0 %v2458
      %2522 = vmatpush.bf16.msra.mxu0 %v2457
      %2523 = vmatmul.bf16.gmra.mxu0 %v2342
      %v2524 = vpop.f32.mrf.mxu0
      %v2525 = vadd.f32 %v2512, %v2524
      %v2526 = vpop.f32.mrf.mxu0
      %2527 = vdwg.mxu0
      %v2528 = vmul.f32 %v2525, 0.2
      %v2529 = vmax.f32 %v2525, %v2528
      %v2530 = vperm.slane %v2291, 0
      %v2531 = vmul.f32 %v2529, %v2530
      %v2532 = vperm.slane %v2292, 0
      %v2533 = vadd.f32 %v2531, %v2532
      %v2534 = vpack.c.bf16 %v2533, %v2533
      %v2536 = vrot.slane %v2534, 3
      %vm2537 = vcmask 1040384
      %v2540 = vsel %vm2537, %v2534, %v2536
      %2542 = vrot.lane.b32.xlu0 %v2540, 64
      %v2543 = vpop.permute.xlu0 %2542
      %s2545 = scalar_lea.vmem [#allocation4], 1
      %vm2546 = vcmask 1040896
      %vm2547 = vsmask.f32 256
      %vm2548 = vmand %vm2546, %vm2547
      %v2549 = vld [vmem:[%s2545] sm:$0x1]
      %v2550 = vsel %vm2548, %v2543, %v2549
      %2551 = vst [vmem:[%s2545] sm:$0x1] %v2550
      %vm2552 = vcmask 516096
      %vm2553 = vsmask.f32 7938
      %vm2554 = vmand %vm2552, %vm2553
      %v2555 = vld [vmem:[%s2545] sm:$0x1]
      %v2556 = vsel %vm2554, %v2534, %v2555
      %2557 = vst [vmem:[%s2545] sm:$0x1] %v2556
      %v2558 = vld [vmem:[%s1929] sm:$0x1]
      %v2559 = vld [vmem:[%s1929] sm:$0x3]
      %v2560 = vld [vmem:[%s2077] sm:$0x1]
      %v2561 = vld [vmem:[%s2077] sm:$0x3]
      %v2562 = vld [vmem:[%s2225] sm:$0x1]
      %v2563 = vld [vmem:[%s2225] sm:$0x3]
      %2565 = vst [vmem:[#allocation1] ss:$4 sm:$0xff] %v2559
      %v2566 = vld.sshfl [vmem:[#allocation1] sm:$0xff pattern:$0x73625140]
      %v2567 = vshrl.u32 %v2566, 16
      %v2569 = vshll.u32 %v2566, 16
      %v2571 = vrot.slane %v2569, 1
      %v2572 = vor.u32 %v2567, %v2571
      %2573 = vrot.lane.b32.xlu0 %v2572, 64
      %v2574 = vpop.permute.xlu0 %2573
      %2576 = vst [vmem:[#allocation1] ss:$4 sm:$0xff] %v2561
      %v2577 = vld.sshfl [vmem:[#allocation1] sm:$0xff pattern:$0x73625140]
      %v2578 = vshrl.u32 %v2577, 16
      %v2580 = vshll.u32 %v2577, 16
      %v2582 = vrot.slane %v2580, 1
      %v2583 = vor.u32 %v2578, %v2582
      %2584 = vrot.lane.b32.xlu0 %v2583, 64
      %v2585 = vpop.permute.xlu0 %2584
      %2587 = vst [vmem:[#allocation1] ss:$4 sm:$0xff] %v2563
      %v2588 = vld.sshfl [vmem:[#allocation1] sm:$0xff pattern:$0x73625140]
      %v2589 = vshrl.u32 %v2588, 16
      %v2591 = vshll.u32 %v2588, 16
      %v2593 = vrot.slane %v2591, 1
      %v2594 = vor.u32 %v2589, %v2593
      %2595 = vrot.lane.b32.xlu0 %v2594, 64
      %v2596 = vpop.permute.xlu0 %2595
      %v2599 = vsel %vm1613, %v2558, %v2574
      %v2603 = vsel %vm1613, %v2560, %v2585
      %v2607 = vsel %vm1613, %v2562, %v2596
      %2609 = vmatpush.bf16.msra.mxu0 %v2448
      %2610 = vmatpush.bf16.msra.mxu0 %v2447
      %2611 = vmatpush.bf16.msra.mxu0 %v2446
      %2612 = vmatpush.bf16.msra.mxu0 %v2445
      %2613 = vmatpush.bf16.msra.mxu0 %v2444
      %2614 = vmatpush.bf16.msra.mxu0 %v2443
      %2615 = vmatpush.bf16.msra.mxu0 %v2442
      %2616 = vmatpush.bf16.msra.mxu0 %v2441
      %2617 = vmatmul.bf16.gmra.mxu0 %v2599
      %v2618 = vpop.f32.mrf.mxu0
      %v2619 = vadd.f32 %v2344, %v2618
      %v2620 = vpop.f32.mrf.mxu0
      %2621 = vdwg.mxu0
      %2622 = vmatpush.bf16.msra.mxu0 %v2456
      %2623 = vmatpush.bf16.msra.mxu0 %v2455
      %2624 = vmatpush.bf16.msra.mxu0 %v2454
      %2625 = vmatpush.bf16.msra.mxu0 %v2453
      %2626 = vmatpush.bf16.msra.mxu0 %v2452
      %2627 = vmatpush.bf16.msra.mxu0 %v2451
      %2628 = vmatpush.bf16.msra.mxu0 %v2450
      %2629 = vmatpush.bf16.msra.mxu0 %v2449
      %2630 = vmatmul.bf16.gmra.mxu0 %v2603
      %v2631 = vpop.f32.mrf.mxu0
      %v2632 = vadd.f32 %v2619, %v2631
      %v2633 = vpop.f32.mrf.mxu0
      %2634 = vdwg.mxu0
      %2635 = vmatpush.bf16.msra.mxu0 %v2464
      %2636 = vmatpush.bf16.msra.mxu0 %v2463
      %2637 = vmatpush.bf16.msra.mxu0 %v2462
      %2638 = vmatpush.bf16.msra.mxu0 %v2461
      %2639 = vmatpush.bf16.msra.mxu0 %v2460
      %2640 = vmatpush.bf16.msra.mxu0 %v2459
      %2641 = vmatpush.bf16.msra.mxu0 %v2458
      %2642 = vmatpush.bf16.msra.mxu0 %v2457
      %2643 = vmatmul.bf16.gmra.mxu0 %v2607
      %v2644 = vpop.f32.mrf.mxu0
      %v2645 = vadd.f32 %v2632, %v2644
      %v2646 = vpop.f32.mrf.mxu0
      %2647 = vdwg.mxu0
      %v2648 = vmul.f32 %v2645, 0.2
      %v2649 = vmax.f32 %v2645, %v2648
      %v2650 = vmul.f32 %v2649, %v2530
      %v2651 = vadd.f32 %v2650, %v2532
      %v2652 = vpack.c.bf16 %v2651, %v2651
      %v2654 = vrot.slane %v2652, 3
      %v2657 = vsel %vm2537, %v2652, %v2654
      %2659 = vrot.lane.b32.xlu0 %v2657, 64
      %v2660 = vpop.permute.xlu0 %2659
      %s2662 = scalar_lea.vmem [#allocation4], 2
      %v2663 = vld [vmem:[%s2662] sm:$0x1]
      %v2664 = vsel %vm2548, %v2660, %v2663
      %2665 = vst [vmem:[%s2662] sm:$0x1] %v2664
      %v2666 = vld [vmem:[%s2662] sm:$0x1]
      %v2667 = vsel %vm2554, %v2652, %v2666
      %2668 = vst [vmem:[%s2662] sm:$0x1] %v2667
      %v2669 = vld [vmem:[%s7] sm:$0xf]
      %v2670 = vld [vmem:[%s7 + $0x4] sm:$0xf]
      %v2671 = vld [vmem:[%s7 + $0x8] sm:$0xf]
      %v2672 = vld [vmem:[%s7 + $0xc] sm:$0xf]
      %v2673 = vld [vmem:[%s7 + $0x10] sm:$0xf]
      %v2674 = vld [vmem:[%s7 + $0x14] sm:$0xf]
      %v2675 = vld [vmem:[%s7 + $0x18] sm:$0xf]
      %v2676 = vld [vmem:[%s7 + $0x1c] sm:$0xf]
      %v2677 = vld [vmem:[%s7 + $0x20] sm:$0xf]
      %v2678 = vld [vmem:[%s7 + $0x24] sm:$0xf]
      %v2679 = vld [vmem:[%s7 + $0x28] sm:$0xf]
      %v2680 = vld [vmem:[%s7 + $0x2c] sm:$0xf]
      %v2681 = vld [vmem:[%s7 + $0x30] sm:$0xf]
      %v2682 = vld [vmem:[%s7 + $0x34] sm:$0xf]
      %v2683 = vld [vmem:[%s7 + $0x38] sm:$0xf]
      %v2684 = vld [vmem:[%s7 + $0x3c] sm:$0xf]
      %v2685 = vld [vmem:[%s7 + $0x40] sm:$0xf]
      %v2686 = vld [vmem:[%s7 + $0x44] sm:$0xf]
      %v2687 = vld [vmem:[%s7 + $0x48] sm:$0xf]
      %v2688 = vld [vmem:[%s7 + $0x4c] sm:$0xf]
      %v2689 = vld [vmem:[%s7 + $0x50] sm:$0xf]
      %v2690 = vld [vmem:[%s7 + $0x54] sm:$0xf]
      %v2691 = vld [vmem:[%s7 + $0x58] sm:$0xf]
      %v2692 = vld [vmem:[%s7 + $0x5c] sm:$0xf]
      %v2693 = vld [vmem:[%s7 + $0x60] sm:$0xf]
      %v2694 = vld [vmem:[%s7 + $0x64] sm:$0xf]
      %v2695 = vld [vmem:[%s7 + $0x68] sm:$0xf]
      %v2696 = vld [vmem:[%s7 + $0x6c] sm:$0xf]
      %v2697 = vld [vmem:[%s7 + $0x70] sm:$0xf]
      %v2698 = vld [vmem:[%s7 + $0x74] sm:$0xf]
      %v2699 = vld [vmem:[%s7 + $0x78] sm:$0xf]
      %v2700 = vld [vmem:[%s7 + $0x7c] sm:$0xf]
      %v2701 = vld [vmem:[%s7 + $0x80] sm:$0xf]
      %v2702 = vld [vmem:[%s7 + $0x84] sm:$0xf]
      %v2703 = vld [vmem:[%s7 + $0x88] sm:$0xf]
      %v2704 = vld [vmem:[%s7 + $0x8c] sm:$0xf]
      %v2705 = vld [vmem:[%s7 + $0x90] sm:$0xf]
      %v2706 = vld [vmem:[%s7 + $0x94] sm:$0xf]
      %v2707 = vld [vmem:[%s7 + $0x98] sm:$0xf]
      %v2708 = vld [vmem:[%s7 + $0x9c] sm:$0xf]
      %v2709 = vld [vmem:[%s7 + $0xa0] sm:$0xf]
      %v2710 = vld [vmem:[%s7 + $0xa4] sm:$0xf]
      %v2711 = vld [vmem:[%s7 + $0xa8] sm:$0xf]
      %v2712 = vld [vmem:[%s7 + $0xac] sm:$0xf]
      %v2713 = vld [vmem:[%s7 + $0xb0] sm:$0xf]
      %v2714 = vld [vmem:[%s7 + $0xb4] sm:$0xf]
      %v2715 = vld [vmem:[%s7 + $0xb8] sm:$0xf]
      %v2716 = vld [vmem:[%s7 + $0xbc] sm:$0xf]
      %v2717 = vld [vmem:[%s7 + $0xc0] sm:$0xf]
      %v2718 = vld [vmem:[%s7 + $0xc4] sm:$0xf]
      %v2719 = vld [vmem:[%s7 + $0xc8] sm:$0xf]
      %v2720 = vld [vmem:[%s7 + $0xcc] sm:$0xf]
      %v2721 = vld [vmem:[%s7 + $0xd0] sm:$0xf]
      %v2722 = vld [vmem:[%s7 + $0xd4] sm:$0xf]
      %v2723 = vld [vmem:[%s7 + $0xd8] sm:$0xf]
      %v2724 = vld [vmem:[%s7 + $0xdc] sm:$0xf]
      %v2725 = vld [vmem:[%s7 + $0xe0] sm:$0xf]
      %v2726 = vld [vmem:[%s7 + $0xe4] sm:$0xf]
      %v2727 = vld [vmem:[%s7 + $0xe8] sm:$0xf]
      %v2728 = vld [vmem:[%s7 + $0xec] sm:$0xf]
      %v2729 = vld [vmem:[%s7 + $0xf0] sm:$0xf]
      %v2730 = vld [vmem:[%s7 + $0xf4] sm:$0xf]
      %v2731 = vld [vmem:[%s7 + $0xf8] sm:$0xf]
      %v2732 = vld [vmem:[%s7 + $0xfc] sm:$0xf]
      %v2733 = vld [vmem:[%s7 + $0x100] sm:$0xf]
      %v2734 = vld [vmem:[%s7 + $0x104] sm:$0xf]
      %v2735 = vld [vmem:[%s7 + $0x108] sm:$0xf]
      %v2736 = vld [vmem:[%s7 + $0x10c] sm:$0xf]
      %v2737 = vld [vmem:[%s7 + $0x110] sm:$0xf]
      %v2738 = vld [vmem:[%s7 + $0x114] sm:$0xf]
      %v2739 = vld [vmem:[%s7 + $0x118] sm:$0xf]
      %v2740 = vld [vmem:[%s7 + $0x11c] sm:$0xf]
      %v2741 = vld [vmem:[%s7 + $0x120] sm:$0xf]
      %v2742 = vld [vmem:[%s7 + $0x124] sm:$0xf]
      %v2743 = vld [vmem:[%s7 + $0x128] sm:$0xf]
      %v2744 = vld [vmem:[%s7 + $0x12c] sm:$0xf]
      %v2745 = vld [vmem:[%s7 + $0x130] sm:$0xf]
      %v2746 = vld [vmem:[%s7 + $0x134] sm:$0xf]
      %v2747 = vld [vmem:[%s7 + $0x138] sm:$0xf]
      %v2748 = vld [vmem:[%s7 + $0x13c] sm:$0xf]
      %v2749 = vld [vmem:[%s7 + $0x140] sm:$0xf]
      %v2750 = vld [vmem:[%s7 + $0x144] sm:$0xf]
      %v2751 = vld [vmem:[%s7 + $0x148] sm:$0xf]
      %v2752 = vld [vmem:[%s7 + $0x14c] sm:$0xf]
      %v2753 = vld [vmem:[%s7 + $0x150] sm:$0xf]
      %v2754 = vld [vmem:[%s7 + $0x154] sm:$0xf]
      %v2755 = vld [vmem:[%s7 + $0x158] sm:$0xf]
      %v2756 = vld [vmem:[%s7 + $0x15c] sm:$0xf]
      %v2757 = vld [vmem:[%s7 + $0x160] sm:$0xf]
      %v2758 = vld [vmem:[%s7 + $0x164] sm:$0xf]
      %v2759 = vld [vmem:[%s7 + $0x168] sm:$0xf]
      %v2760 = vld [vmem:[%s7 + $0x16c] sm:$0xf]
      %v2761 = vld [vmem:[%s7 + $0x170] sm:$0xf]
      %v2762 = vld [vmem:[%s7 + $0x174] sm:$0xf]
      %v2763 = vld [vmem:[%s7 + $0x178] sm:$0xf]
      %v2764 = vld [vmem:[%s7 + $0x17c] sm:$0xf]
      %v2765 = vld [vmem:[%s8] sm:$0x1]
      %v2766 = vld [vmem:[%s8 + $0x1] sm:$0x1]
      %v2767 = vld [vmem:[%s8 + $0x2] sm:$0x1]
      %v2768 = vld [vmem:[#allocation4] sm:$0x1]
      %v2769 = vld [vmem:[%s2545] sm:$0x1]
      %v2770 = vld [vmem:[%s2662] sm:$0x1]
      %2772 = vst [vmem:[#allocation1] ss:$9 sm:$0xff] %v2768
      %v2773 = vld [vmem:[#allocation1] sm:$0xff]
      %v2774 = vshrl.u32 %v2773, 16
      %2778 = vst [vmem:[#allocation1] ss:$9 sm:$0xff] %v2769
      %v2779 = vld [vmem:[#allocation1] sm:$0xff]
      %v2780 = vshrl.u32 %v2779, 16
      %2784 = vst [vmem:[#allocation1] ss:$9 sm:$0xff] %v2770
      %v2785 = vld [vmem:[#allocation1] sm:$0xff]
      %v2786 = vshrl.u32 %v2785, 16
      %v2885 = vunpack.c.l.b16 %v2669
      %v2886 = vunpack.c.l.b16 %v2670
      %v2887 = vunpack.c.l.b16 %v2671
      %v2888 = vunpack.c.l.b16 %v2672
      %v2889 = vunpack.c.l.b16 %v2673
      %v2890 = vunpack.c.l.b16 %v2674
      %v2891 = vunpack.c.l.b16 %v2675
      %v2892 = vunpack.c.l.b16 %v2676
      %v2893 = vunpack.c.l.b16 %v2677
      %v2894 = vunpack.c.l.b16 %v2678
      %v2895 = vunpack.c.l.b16 %v2679
      %v2896 = vunpack.c.l.b16 %v2680
      %v2897 = vunpack.c.l.b16 %v2681
      %v2898 = vunpack.c.l.b16 %v2682
      %v2899 = vunpack.c.l.b16 %v2683
      %v2900 = vunpack.c.l.b16 %v2684
      %v2901 = vunpack.c.l.b16 %v2685
      %v2902 = vunpack.c.l.b16 %v2686
      %v2903 = vunpack.c.l.b16 %v2687
      %v2904 = vunpack.c.l.b16 %v2688
      %v2905 = vunpack.c.l.b16 %v2689
      %v2906 = vunpack.c.l.b16 %v2690
      %v2907 = vunpack.c.l.b16 %v2691
      %v2908 = vunpack.c.l.b16 %v2692
      %v2909 = vunpack.c.l.b16 %v2693
      %v2910 = vunpack.c.l.b16 %v2694
      %v2911 = vunpack.c.l.b16 %v2695
      %v2912 = vunpack.c.l.b16 %v2696
      %v2913 = vunpack.c.l.b16 %v2697
      %v2914 = vunpack.c.l.b16 %v2698
      %v2915 = vunpack.c.l.b16 %v2699
      %v2916 = vunpack.c.l.b16 %v2700
      %v2917 = vunpack.c.l.b16 %v2701
      %v2918 = vunpack.c.l.b16 %v2702
      %v2919 = vunpack.c.l.b16 %v2703
      %v2920 = vunpack.c.l.b16 %v2704
      %v2921 = vunpack.c.l.b16 %v2705
      %v2922 = vunpack.c.l.b16 %v2706
      %v2923 = vunpack.c.l.b16 %v2707
      %v2924 = vunpack.c.l.b16 %v2708
      %v2925 = vunpack.c.l.b16 %v2709
      %v2926 = vunpack.c.l.b16 %v2710
      %v2927 = vunpack.c.l.b16 %v2711
      %v2928 = vunpack.c.l.b16 %v2712
      %v2929 = vunpack.c.l.b16 %v2713
      %v2930 = vunpack.c.l.b16 %v2714
      %v2931 = vunpack.c.l.b16 %v2715
      %v2932 = vunpack.c.l.b16 %v2716
      %v2933 = vunpack.c.l.b16 %v2717
      %v2934 = vunpack.c.l.b16 %v2718
      %v2935 = vunpack.c.l.b16 %v2719
      %v2936 = vunpack.c.l.b16 %v2720
      %v2937 = vunpack.c.l.b16 %v2721
      %v2938 = vunpack.c.l.b16 %v2722
      %v2939 = vunpack.c.l.b16 %v2723
      %v2940 = vunpack.c.l.b16 %v2724
      %v2941 = vunpack.c.l.b16 %v2725
      %v2942 = vunpack.c.l.b16 %v2726
      %v2943 = vunpack.c.l.b16 %v2727
      %v2944 = vunpack.c.l.b16 %v2728
      %v2945 = vunpack.c.l.b16 %v2729
      %v2946 = vunpack.c.l.b16 %v2730
      %v2947 = vunpack.c.l.b16 %v2731
      %v2948 = vunpack.c.l.b16 %v2732
      %v2949 = vunpack.c.l.b16 %v2733
      %v2950 = vunpack.c.l.b16 %v2734
      %v2951 = vunpack.c.l.b16 %v2735
      %v2952 = vunpack.c.l.b16 %v2736
      %v2953 = vunpack.c.l.b16 %v2737
      %v2954 = vunpack.c.l.b16 %v2738
      %v2955 = vunpack.c.l.b16 %v2739
      %v2956 = vunpack.c.l.b16 %v2740
      %v2957 = vunpack.c.l.b16 %v2741
      %v2958 = vunpack.c.l.b16 %v2742
      %v2959 = vunpack.c.l.b16 %v2743
      %v2960 = vunpack.c.l.b16 %v2744
      %v2961 = vunpack.c.l.b16 %v2745
      %v2962 = vunpack.c.l.b16 %v2746
      %v2963 = vunpack.c.l.b16 %v2747
      %v2964 = vunpack.c.l.b16 %v2748
      %v2965 = vunpack.c.l.b16 %v2749
      %v2966 = vunpack.c.l.b16 %v2750
      %v2967 = vunpack.c.l.b16 %v2751
      %v2968 = vunpack.c.l.b16 %v2752
      %v2969 = vunpack.c.l.b16 %v2753
      %v2970 = vunpack.c.l.b16 %v2754
      %v2971 = vunpack.c.l.b16 %v2755
      %v2972 = vunpack.c.l.b16 %v2756
      %v2973 = vunpack.c.l.b16 %v2757
      %v2974 = vunpack.c.l.b16 %v2758
      %v2975 = vunpack.c.l.b16 %v2759
      %v2976 = vunpack.c.l.b16 %v2760
      %v2977 = vunpack.c.l.b16 %v2761
      %v2978 = vunpack.c.l.b16 %v2762
      %v2979 = vunpack.c.l.b16 %v2763
      %v2980 = vunpack.c.l.b16 %v2764
      %v2981 = vpack.c.b16 %v2886, %v2885
      %v2982 = vpack.c.b16 %v2888, %v2887
      %v2983 = vpack.c.b16 %v2890, %v2889
      %v2984 = vpack.c.b16 %v2892, %v2891
      %v2985 = vpack.c.b16 %v2894, %v2893
      %v2986 = vpack.c.b16 %v2896, %v2895
      %v2987 = vpack.c.b16 %v2898, %v2897
      %v2988 = vpack.c.b16 %v2900, %v2899
      %v2989 = vpack.c.b16 %v2902, %v2901
      %v2990 = vpack.c.b16 %v2904, %v2903
      %v2991 = vpack.c.b16 %v2906, %v2905
      %v2992 = vpack.c.b16 %v2908, %v2907
      %v2993 = vpack.c.b16 %v2910, %v2909
      %v2994 = vpack.c.b16 %v2912, %v2911
      %v2995 = vpack.c.b16 %v2914, %v2913
      %v2996 = vpack.c.b16 %v2916, %v2915
      %v2997 = vpack.c.b16 %v2918, %v2917
      %v2998 = vpack.c.b16 %v2920, %v2919
      %v2999 = vpack.c.b16 %v2922, %v2921
      %v3000 = vpack.c.b16 %v2924, %v2923
      %v3001 = vpack.c.b16 %v2926, %v2925
      %v3002 = vpack.c.b16 %v2928, %v2927
      %v3003 = vpack.c.b16 %v2930, %v2929
      %v3004 = vpack.c.b16 %v2932, %v2931
      %v3005 = vpack.c.b16 %v2934, %v2933
      %v3006 = vpack.c.b16 %v2936, %v2935
      %v3007 = vpack.c.b16 %v2938, %v2937
      %v3008 = vpack.c.b16 %v2940, %v2939
      %v3009 = vpack.c.b16 %v2942, %v2941
      %v3010 = vpack.c.b16 %v2944, %v2943
      %v3011 = vpack.c.b16 %v2946, %v2945
      %v3012 = vpack.c.b16 %v2948, %v2947
      %v3013 = vpack.c.b16 %v2950, %v2949
      %v3014 = vpack.c.b16 %v2952, %v2951
      %v3015 = vpack.c.b16 %v2954, %v2953
      %v3016 = vpack.c.b16 %v2956, %v2955
      %v3017 = vpack.c.b16 %v2958, %v2957
      %v3018 = vpack.c.b16 %v2960, %v2959
      %v3019 = vpack.c.b16 %v2962, %v2961
      %v3020 = vpack.c.b16 %v2964, %v2963
      %v3021 = vpack.c.b16 %v2966, %v2965
      %v3022 = vpack.c.b16 %v2968, %v2967
      %v3023 = vpack.c.b16 %v2970, %v2969
      %v3024 = vpack.c.b16 %v2972, %v2971
      %v3025 = vpack.c.b16 %v2974, %v2973
      %v3026 = vpack.c.b16 %v2976, %v2975
      %v3027 = vpack.c.b16 %v2978, %v2977
      %v3028 = vpack.c.b16 %v2980, %v2979
      %3077 = vmatpush.bf16.msra.mxu0 %v2988
      %3078 = vmatpush.bf16.msra.mxu0 %v2987
      %3079 = vmatpush.bf16.msra.mxu0 %v2986
      %3080 = vmatpush.bf16.msra.mxu0 %v2985
      %3081 = vmatpush.bf16.msra.mxu0 %v2984
      %3082 = vmatpush.bf16.msra.mxu0 %v2983
      %3083 = vmatpush.bf16.msra.mxu0 %v2982
      %3084 = vmatpush.bf16.msra.mxu0 %v2981
      %3085 = vmatmul.bf16.gmra.mxu0 %v2768
      %v3086 = vpop.f32.mrf.mxu0
      %v3087 = vadd.f32 %v2765, %v3086
      %v3088 = vpop.f32.mrf.mxu0
      %3089 = vdwg.mxu0
      %3090 = vmatpush.bf16.msra.mxu0 %v2996
      %3091 = vmatpush.bf16.msra.mxu0 %v2995
      %3092 = vmatpush.bf16.msra.mxu0 %v2994
      %3093 = vmatpush.bf16.msra.mxu0 %v2993
      %3094 = vmatpush.bf16.msra.mxu0 %v2992
      %3095 = vmatpush.bf16.msra.mxu0 %v2991
      %3096 = vmatpush.bf16.msra.mxu0 %v2990
      %3097 = vmatpush.bf16.msra.mxu0 %v2989
      %3098 = vmatmul.bf16.gmra.mxu0 %v2774
      %v3099 = vpop.f32.mrf.mxu0
      %v3100 = vadd.f32 %v3087, %v3099
      %v3101 = vpop.f32.mrf.mxu0
      %3102 = vdwg.mxu0
      %3103 = vmatpush.bf16.msra.mxu0 %v3004
      %3104 = vmatpush.bf16.msra.mxu0 %v3003
      %3105 = vmatpush.bf16.msra.mxu0 %v3002
      %3106 = vmatpush.bf16.msra.mxu0 %v3001
      %3107 = vmatpush.bf16.msra.mxu0 %v3000
      %3108 = vmatpush.bf16.msra.mxu0 %v2999
      %3109 = vmatpush.bf16.msra.mxu0 %v2998
      %3110 = vmatpush.bf16.msra.mxu0 %v2997
      %3111 = vmatmul.bf16.gmra.mxu0 %v2769
      %v3112 = vpop.f32.mrf.mxu0
      %v3113 = vadd.f32 %v3100, %v3112
      %v3114 = vpop.f32.mrf.mxu0
      %3115 = vdwg.mxu0
      %3116 = vmatpush.bf16.msra.mxu0 %v3012
      %3117 = vmatpush.bf16.msra.mxu0 %v3011
      %3118 = vmatpush.bf16.msra.mxu0 %v3010
      %3119 = vmatpush.bf16.msra.mxu0 %v3009
      %3120 = vmatpush.bf16.msra.mxu0 %v3008
      %3121 = vmatpush.bf16.msra.mxu0 %v3007
      %3122 = vmatpush.bf16.msra.mxu0 %v3006
      %3123 = vmatpush.bf16.msra.mxu0 %v3005
      %3124 = vmatmul.bf16.gmra.mxu0 %v2780
      %v3125 = vpop.f32.mrf.mxu0
      %v3126 = vadd.f32 %v3113, %v3125
      %v3127 = vpop.f32.mrf.mxu0
      %3128 = vdwg.mxu0
      %3129 = vmatpush.bf16.msra.mxu0 %v3020
      %3130 = vmatpush.bf16.msra.mxu0 %v3019
      %3131 = vmatpush.bf16.msra.mxu0 %v3018
      %3132 = vmatpush.bf16.msra.mxu0 %v3017
      %3133 = vmatpush.bf16.msra.mxu0 %v3016
      %3134 = vmatpush.bf16.msra.mxu0 %v3015
      %3135 = vmatpush.bf16.msra.mxu0 %v3014
      %3136 = vmatpush.bf16.msra.mxu0 %v3013
      %3137 = vmatmul.bf16.gmra.mxu0 %v2770
      %v3138 = vpop.f32.mrf.mxu0
      %v3139 = vadd.f32 %v3126, %v3138
      %v3140 = vpop.f32.mrf.mxu0
      %3141 = vdwg.mxu0
      %3142 = vmatpush.bf16.msra.mxu0 %v3028
      %3143 = vmatpush.bf16.msra.mxu0 %v3027
      %3144 = vmatpush.bf16.msra.mxu0 %v3026
      %3145 = vmatpush.bf16.msra.mxu0 %v3025
      %3146 = vmatpush.bf16.msra.mxu0 %v3024
      %3147 = vmatpush.bf16.msra.mxu0 %v3023
      %3148 = vmatpush.bf16.msra.mxu0 %v3022
      %3149 = vmatpush.bf16.msra.mxu0 %v3021
      %3150 = vmatmul.bf16.gmra.mxu0 %v2786
      %v3151 = vpop.f32.mrf.mxu0
      %v3152 = vadd.f32 %v3139, %v3151
      %v3153 = vpop.f32.mrf.mxu0
      %3154 = vdwg.mxu0
      %v3155 = vmul.f32 %v3152, 0.2
      %v3156 = vmax.f32 %v3152, %v3155
      %v3157 = vmul.f32 %v3156, %v2766
      %v3158 = vadd.f32 %v3157, %v2767
      %v3159 = vld [vmem:[%s9] sm:$0xff]
      %v3160 = vld [vmem:[%s9 + $0x8] sm:$0xff]
      %v3161 = vld [vmem:[%s9 + $0x10] sm:$0xff]
      %v3162 = vld [vmem:[%s9 + $0x18] sm:$0xff]
      %v3163 = vld [vmem:[%s9 + $0x20] sm:$0xff]
      %v3164 = vld [vmem:[%s9 + $0x28] sm:$0xff]
      %v3165 = vld [vmem:[%s9 + $0x30] sm:$0xff]
      %v3166 = vld [vmem:[%s9 + $0x38] sm:$0xff]
      %v3167 = vld [vmem:[%s9 + $0x40] sm:$0xff]
      %v3168 = vld [vmem:[%s9 + $0x48] sm:$0xff]
      %v3169 = vld [vmem:[%s9 + $0x50] sm:$0xff]
      %v3170 = vld [vmem:[%s9 + $0x58] sm:$0xff]
      %v3171 = vld [vmem:[%s9 + $0x60] sm:$0xff]
      %v3172 = vld [vmem:[%s9 + $0x68] sm:$0xff]
      %v3173 = vld [vmem:[%s9 + $0x70] sm:$0xff]
      %v3174 = vld [vmem:[%s9 + $0x78] sm:$0xff]
      %3175 = vmatpush.msra.mxu0 %v3174
      %3176 = vmatpush.msra.mxu0 %v3173
      %3177 = vmatpush.msra.mxu0 %v3172
      %3178 = vmatpush.msra.mxu0 %v3171
      %3179 = vmatpush.msra.mxu0 %v3170
      %3180 = vmatpush.msra.mxu0 %v3169
      %3181 = vmatpush.msra.mxu0 %v3168
      %3182 = vmatpush.msra.mxu0 %v3167
      %3183 = vmatpush.msra.mxu0 %v3166
      %3184 = vmatpush.msra.mxu0 %v3165
      %3185 = vmatpush.msra.mxu0 %v3164
      %3186 = vmatpush.msra.mxu0 %v3163
      %3187 = vmatpush.msra.mxu0 %v3162
      %3188 = vmatpush.msra.mxu0 %v3161
      %3189 = vmatpush.msra.mxu0 %v3160
      %3190 = vmatpush.msra.mxu0 %v3159
      %3191 = vmatmul.f32.gmra.mxu0 %v3158
      %v3192 = vpop.f32.mrf.mxu0
      %v3193 = vadd.f32 0.0, %v3192
      %3194 = vdwg.mxu0
      %vm3195 = vcmask 0
      %3196 = vst.msk [vmem:[%s355] sm:$0x1] %vm3195, %v3193
      %p3197 = scmp.lt.s32.totalorder %s21, 1
      %s3198 = scalar_select %p3197, %s21, 1
      %s3199 = scalar_lea.vmem %s10, %s3198
      // Predicated region
      $region61: #{discriminator_forward.1} parent=59 // pred_check
        %p3200 = pneg %p254
      $region62: #{discriminator_forward.1} parent=59 // pred_check_branch
        %3202 = sbr.rel (%p3200) target = $region64
      $region63: #{discriminator_forward.1} parent=59 // pred_region
        _
      $region64: #{discriminator_forward.1} parent=59 // pred_fallthru
        _
    $region60: #{discriminator_forward.1} parent=5 // pred_fallthru
      _
    %p3203 = scmp.le.s32.totalorder 2, %s16
    // Predicated region
    $region65: #{discriminator_forward.1} parent=5 // pred_check
      %p3204 = pneg %p3203
    $region66: #{discriminator_forward.1} parent=5 // pred_check_branch
      %3206 = sbr.rel (%p3204) target = $region68
    $region67: #{discriminator_forward.1} parent=5 // pred_region
      %s3207 = ssub.s32 %s16, 2
      // Predicated region
      $region69: #{discriminator_forward.1} parent=67 // pred_check
        %p3208 = pneg %p260
      $region70: #{discriminator_forward.1} parent=67 // pred_check_branch
        %3210 = sbr.rel (%p3208) target = $region72
      $region71: #{discriminator_forward.1} parent=67 // pred_region
        %p3211 = scmp.lt.s32.totalorder %s22, 1
        %s3212 = scalar_select %p3211, %s22, 1
        %s3213 = scalar_lea.vmem %s10, %s3212
      $region72: #{discriminator_forward.1} parent=67 // pred_fallthru
        _
    $region68: #{discriminator_forward.1} parent=5 // pred_fallthru
      _
  $region6: #{discriminator_forward.1} parent=0 // loop_footer
    %s20 = sadd.s32 1, %s16
  $region7: #{discriminator_forward.1} parent=0 // loop_footer_branch
    %15 = sbr.rel target = $region3
  $region8: #{discriminator_forward.1} parent=0 // loop_exit
    _

</llo_original>
